<compile_context>
chip_gen: v7x
topology: tpu7x:2x2x1
jax: 0.10.0
libtpu: 0.0.40
codegen_flags: <defaults>
</compile_context>

<pallas_src>
import functools
import math

import jax
import jax.numpy as jnp
from jax.experimental import pallas as pl
from jax.experimental.pallas import tpu as pltpu

EPS = 1e-5
NEG_BIG = -1e30


def _ru(x, m):
    return ((x + m - 1) // m) * m


# ----------------------------------------------------------------------------
# Tiled matmul + bias (+ optional ReLU on A)
# ----------------------------------------------------------------------------
def _mm_kernel(a_ref, b_ref, bias_ref, o_ref, acc_ref, *, relu_a):
    k = pl.program_id(2)

    @pl.when(k == 0)
    def _():
        acc_ref[...] = jnp.zeros_like(acc_ref)

    a = a_ref[...]
    if relu_a:
        a = jnp.maximum(a, jnp.zeros_like(a))
    acc_ref[...] += jnp.dot(a, b_ref[...], preferred_element_type=jnp.float32)

    @pl.when(k == pl.num_programs(2) - 1)
    def _():
        o_ref[...] = (acc_ref[...] + bias_ref[...]).astype(o_ref.dtype)


def matmul_bias(a, b, bias, relu_a=False, out_dtype=jnp.bfloat16):
    """C = relu?(A) @ B + bias.  A:(M,K) B:(K,N) bias:(N,).  bf16 in, f32 acc."""
    M, K = a.shape
    _, N = b.shape
    a = a.astype(jnp.bfloat16)
    b = b.astype(jnp.bfloat16)
    bias = bias.astype(jnp.float32).reshape(1, N)

    tm = min(256, _ru(M, 8))
    tk = K if K <= 512 else 512
    tn = N if N <= 256 else 256
    Mp, Kp, Np = _ru(M, tm), _ru(K, tk), _ru(N, tn)
    if (Mp, Kp) != (M, K):
        a = jnp.pad(a, ((0, Mp - M), (0, Kp - K)))
    if (Kp, Np) != (K, N):
        b = jnp.pad(b, ((0, Kp - K), (0, Np - N)))
    if Np != N:
        bias = jnp.pad(bias, ((0, 0), (0, Np - N)))

    out = pl.pallas_call(
        functools.partial(_mm_kernel, relu_a=relu_a),
        out_shape=jax.ShapeDtypeStruct((Mp, Np), out_dtype),
        grid=(Mp // tm, Np // tn, Kp // tk),
        in_specs=[pl.BlockSpec((tm, tk), lambda i, j, k: (i, k)),
                  pl.BlockSpec((tk, tn), lambda i, j, k: (k, j)),
                  pl.BlockSpec((1, tn), lambda i, j, k: (0, j))],
        out_specs=pl.BlockSpec((tm, tn), lambda i, j, k: (i, j)),
        scratch_shapes=[pltpu.VMEM((tm, tn), jnp.float32)],
        compiler_params=pltpu.CompilerParams(
            dimension_semantics=("parallel", "parallel", "arbitrary")),
    )(a, b, bias)
    if (Mp, Np) != (M, N):
        out = out[:M, :N]
    return out


def conv1x1(x, w, bias, stride=1, relu_in=False, offset=0):
    """1x1 conv (any stride) as a plain matmul -- no patch extraction."""
    if stride == 2:
        x = x[:, offset::2, offset::2, :]
    N, H, W, C = x.shape
    cout = w.shape[-1]
    y = matmul_bias(x.reshape(N * H * W, C), w.reshape(-1, cout), bias,
                    relu_a=relu_in)
    return y.reshape(N, H, W, cout)


# ----------------------------------------------------------------------------
# "Tap" kernels: stride-1 kxk conv / depthwise conv / pool without HBM im2col.
# The padded input is flattened to (rows, C); output row r needs input rows
# r + di*dil*Wp + dj*dil, a constant shift per tap.
# ----------------------------------------------------------------------------
def _prep_taps(x, k, pad, dilation, pad_value, tm_target=256):
    N, H, W, C = x.shape
    Hp, Wp = H + 2 * pad, W + 2 * pad
    Ho, Wo = Hp - dilation * (k - 1), Wp - dilation * (k - 1)
    xp = jnp.pad(x.astype(jnp.float32),
                 ((0, 0), (pad, pad), (pad, pad), (0, 0)),
                 constant_values=pad_value)
    M = N * Hp * Wp
    tm = min(tm_target, _ru(M, 8))
    Mp = _ru(M, tm)
    offsets = tuple(di * dilation * Wp + dj * dilation
                    for di in range(k) for dj in range(k))
    rows = _ru(Mp + offsets[-1], 8)
    xf = jnp.pad(xp.reshape(M, C), ((0, rows - M), (0, 0)),
                 constant_values=pad_value)
    info = dict(N=N, H=H, W=W, Hp=Hp, Wp=Wp, Ho=Ho, Wo=Wo, C=C,
                M=M, Mp=Mp, tm=tm, rows=rows)
    return xf, offsets, info


def _crop_taps(out_flat, info, cout):
    y = out_flat[:info["M"]].reshape(info["N"], info["Hp"], info["Wp"], cout)
    return y[:, :info["Ho"], :info["Wo"], :]


def _conv_tap_kernel(x_ref, w_ref, b_ref, o_ref, *, offsets, tm, relu_in):
    m0 = pl.multiple_of(pl.program_id(0) * tm, 8)
    acc = jnp.zeros(o_ref.shape, jnp.float32)
    for t, off in enumerate(offsets):
        xs = x_ref[pl.ds(m0 + off, tm), :]
        if relu_in:
            xs = jnp.maximum(xs, 0.0)
        acc = acc + jnp.dot(xs, w_ref[t], preferred_element_type=jnp.float32)
    o_ref[...] = (acc + b_ref[...]).astype(o_ref.dtype)


def conv2d_kxk_s1(x, w, bias, pad, dilation=1, relu_in=False):
    """Dense kxk stride-1 conv.  w: (k,k,Cin,Cout)."""
    k = w.shape[0]
    cin, cout = w.shape[2], w.shape[3]
    xf, offsets, info = _prep_taps(x, k, pad, dilation, 0.0)
    wf = w.reshape(k * k, cin, cout).astype(jnp.float32)
    b2 = bias.astype(jnp.float32).reshape(1, cout)
    out = pl.pallas_call(
        functools.partial(_conv_tap_kernel, offsets=offsets, tm=info["tm"],
                          relu_in=relu_in),
        out_shape=jax.ShapeDtypeStruct((info["Mp"], cout), jnp.bfloat16),
        grid=(info["Mp"] // info["tm"],),
        in_specs=[pl.BlockSpec((info["rows"], cin), lambda i: (0, 0)),
                  pl.BlockSpec((k * k, cin, cout), lambda i: (0, 0, 0)),
                  pl.BlockSpec((1, cout), lambda i: (0, 0))],
        out_specs=pl.BlockSpec((info["tm"], cout), lambda i: (i, 0)),
        compiler_params=pltpu.CompilerParams(dimension_semantics=("parallel",)),
    )(xf, wf, b2)
    return _crop_taps(out, info, cout)


def _dw_tap_kernel(x_ref, w_ref, o_ref, *, offsets, tm, relu_in):
    m0 = pl.multiple_of(pl.program_id(0) * tm, 8)
    acc = jnp.zeros(o_ref.shape, jnp.float32)
    for t, off in enumerate(offsets):
        xs = x_ref[pl.ds(m0 + off, tm), :]
        if relu_in:
            xs = jnp.maximum(xs, 0.0)
        acc = acc + xs * w_ref[t]
    o_ref[...] = acc.astype(o_ref.dtype)


def depthwise_conv_s1(x, w, pad, dilation=1, relu_in=False):
    """Depthwise kxk stride-1 conv.  w: (k,k,C).  9 shifted VPU FMA slabs."""
    k = w.shape[0]
    C = x.shape[-1]
    xf, offsets, info = _prep_taps(x, k, pad, dilation, 0.0)
    wf = w.reshape(k * k, 1, C).astype(jnp.float32)
    out = pl.pallas_call(
        functools.partial(_dw_tap_kernel, offsets=offsets, tm=info["tm"],
                          relu_in=relu_in),
        out_shape=jax.ShapeDtypeStruct((info["Mp"], C), jnp.bfloat16),
        grid=(info["Mp"] // info["tm"],),
        in_specs=[pl.BlockSpec((info["rows"], C), lambda i: (0, 0)),
                  pl.BlockSpec((k * k, 1, C), lambda i: (0, 0, 0))],
        out_specs=pl.BlockSpec((info["tm"], C), lambda i: (i, 0)),
        compiler_params=pltpu.CompilerParams(dimension_semantics=("parallel",)),
    )(xf, wf)
    return _crop_taps(out, info, C)


def _pool_tap_kernel(x_ref, invc_ref, sc_ref, sh_ref, o_ref, *, offsets, tm, mode):
    m0 = pl.multiple_of(pl.program_id(0) * tm, 8)
    if mode == "max":
        acc = jnp.full(o_ref.shape, -jnp.inf, jnp.float32)
        for off in offsets:
            acc = jnp.maximum(acc, x_ref[pl.ds(m0 + off, tm), :])
    else:  # avg, count_include_pad=False
        acc = jnp.zeros(o_ref.shape, jnp.float32)
        for off in offsets:
            acc = acc + x_ref[pl.ds(m0 + off, tm), :]
        acc = acc * invc_ref[...]
    o_ref[...] = (acc * sc_ref[...] + sh_ref[...]).astype(o_ref.dtype)


def pool3x3_s1(x, mode, scale, shift):
    """3x3 stride-1 pool (max / avg) followed by folded BN scale+shift."""
    N, H, W, C = x.shape
    k, pad = 3, 1
    pad_value = NEG_BIG if mode == "max" else 0.0
    xf, offsets, info = _prep_taps(x, k, pad, 1, pad_value)
    Hp, Wp, Mp = info["Hp"], info["Wp"], info["Mp"]
    if mode == "avg":
        ii = jnp.arange(Hp)
        ci = jnp.clip(jnp.minimum(ii + k, pad + H) - jnp.maximum(ii, pad), 1, k)
        jj = jnp.arange(Wp)
        cj = jnp.clip(jnp.minimum(jj + k, pad + W) - jnp.maximum(jj, pad), 1, k)
        cnt = (ci[:, None] * cj[None, :]).astype(jnp.float32)      # (Hp, Wp)
        invc = jnp.tile((1.0 / cnt).reshape(-1), info["N"])
        invc = jnp.pad(invc, (0, Mp - invc.shape[0]), constant_values=1.0)
    else:
        invc = jnp.ones((Mp,), jnp.float32)
    invc = invc.reshape(Mp, 1)
    sc = scale.astype(jnp.float32).reshape(1, C)
    sh = shift.astype(jnp.float32).reshape(1, C)
    out = pl.pallas_call(
        functools.partial(_pool_tap_kernel, offsets=offsets, tm=info["tm"],
                          mode=mode),
        out_shape=jax.ShapeDtypeStruct((Mp, C), jnp.bfloat16),
        grid=(Mp // info["tm"],),
        in_specs=[pl.BlockSpec((info["rows"], C), lambda i: (0, 0)),
                  pl.BlockSpec((info["tm"], 1), lambda i: (i, 0)),
                  pl.BlockSpec((1, C), lambda i: (0, 0)),
                  pl.BlockSpec((1, C), lambda i: (0, 0))],
        out_specs=pl.BlockSpec((info["tm"], C), lambda i: (i, 0)),
        compiler_params=pltpu.CompilerParams(dimension_semantics=("parallel",)),
    )(xf, invc, sc, sh)
    return _crop_taps(out, info, C)


# ----------------------------------------------------------------------------
# Fused weighted sum of n tensors (MixedEdge mixing + per-node edge sum)
# ----------------------------------------------------------------------------
def _wsum_kernel(*refs, n):
    w_ref = refs[0]                      # (n,) f32 in SMEM
    x_refs = refs[1:1 + n]
    o_ref = refs[1 + n]
    acc = jnp.zeros(o_ref.shape, jnp.float32)
    for i in range(n):
        acc = acc + x_refs[i][...].astype(jnp.float32) * w_ref[i]
    o_ref[...] = acc.astype(o_ref.dtype)


def weighted_sum(tensors, weights):
    """sum_i weights[i] * tensors[i]; all tensors share one NHWC shape."""
    n = len(tensors)
    shape = tensors[0].shape
    C = shape[-1]
    M = math.prod(shape[:-1])
    flats = [t.reshape(M, C).astype(jnp.bfloat16) for t in tensors]
    tm = min(512, _ru(M, 8))
    Mp = _ru(M, tm)
    if Mp != M:
        flats = [jnp.pad(f, ((0, Mp - M), (0, 0))) for f in flats]
    in_specs = [pl.BlockSpec(memory_space=pltpu.MemorySpace.SMEM)]
    in_specs += [pl.BlockSpec((tm, C), lambda i: (i, 0)) for _ in range(n)]
    out = pl.pallas_call(
        functools.partial(_wsum_kernel, n=n),
        out_shape=jax.ShapeDtypeStruct((Mp, C), jnp.bfloat16),
        grid=(Mp // tm,),
        in_specs=in_specs,
        out_specs=pl.BlockSpec((tm, C), lambda i: (i, 0)),
        compiler_params=pltpu.CompilerParams(dimension_semantics=("parallel",)),
    )(weights.astype(jnp.float32), *flats)
    if Mp != M:
        out = out[:M]
    return out.reshape(shape)


# ----------------------------------------------------------------------------
# Fused global-average-pool + classifier
# ----------------------------------------------------------------------------
def _gap_fc_kernel(x_ref, w_ref, b_ref, o_ref, acc_ref, *, inv_hw):
    s = pl.program_id(0)

    @pl.when(s == 0)
    def _():
        acc_ref[...] = jnp.zeros_like(acc_ref)

    acc_ref[...] += jnp.sum(x_ref[...].astype(jnp.float32), axis=1)

    @pl.when(s == pl.num_programs(0) - 1)
    def _():
        pooled = acc_ref[...] * inv_hw
        o_ref[...] = (jnp.dot(pooled, w_ref[...],
                              preferred_element_type=jnp.float32) + b_ref[...])


def gap_classifier(x, w, bias):
    """AdaptiveAvgPool2d(1) + Linear fused: (N,H,W,C) -> (N, num_classes)."""
    N, H, W, C = x.shape
    HW = H * W
    xr = x.reshape(N, HW, C).astype(jnp.bfloat16)
    thw = min(512, _ru(HW, 8))
    HWp = _ru(HW, thw)
    if HWp != HW:
        xr = jnp.pad(xr, ((0, 0), (0, HWp - HW), (0, 0)))
    ncls = w.shape[1]
    return pl.pallas_call(
        functools.partial(_gap_fc_kernel, inv_hw=1.0 / HW),
        out_shape=jax.ShapeDtypeStruct((N, ncls), jnp.float32),
        grid=(HWp // thw,),
        in_specs=[pl.BlockSpec((N, thw, C), lambda s: (0, s, 0)),
                  pl.BlockSpec((C, ncls), lambda s: (0, 0)),
                  pl.BlockSpec((1, ncls), lambda s: (0, 0))],
        out_specs=pl.BlockSpec((N, ncls), lambda s: (0, 0)),
        scratch_shapes=[pltpu.VMEM((N, C), jnp.float32)],
        compiler_params=pltpu.CompilerParams(dimension_semantics=("arbitrary",)),
    )(xr, w.astype(jnp.float32), bias.astype(jnp.float32).reshape(1, ncls))


# ----------------------------------------------------------------------------
# Deterministic parameter construction
# ----------------------------------------------------------------------------
class KeyGen:
    def __init__(self, seed=0):
        self.key = jax.random.PRNGKey(seed)

    def __call__(self):
        self.key, sub = jax.random.split(self.key)
        return sub


def bn_fold(kg, c_out):
    """Eval-mode BatchNorm (running_mean=0, running_var=1) as scale/shift."""
    gamma = 1.0 + 0.1 * jax.random.normal(kg(), (c_out,), jnp.float32)
    beta = 0.1 * jax.random.normal(kg(), (c_out,), jnp.float32)
    scale = gamma / jnp.sqrt(1.0 + EPS)
    shift = beta
    return scale, shift


def conv_w(kg, shape):
    return 0.1 * jax.random.normal(kg(), shape, jnp.float32)


# ----------------------------------------------------------------------------
# Modules (functional, BN folded where applicable)
# ----------------------------------------------------------------------------
class ReLUConvBN:
    def __init__(self, kg, c_in, c_out, k=1, stride=1, pad=0):
        assert k == 1 and stride == 1 and pad == 0  # only config used here
        w = conv_w(kg, (1, 1, c_in, c_out))
        scale, shift = bn_fold(kg, c_out)
        self.w = (w * scale).astype(jnp.bfloat16)
        self.b = shift

    def __call__(self, x):
        return conv1x1(x, self.w, self.b, relu_in=True)


class FactorizedReduce:
    def __init__(self, kg, c_in, c_out):
        assert c_out % 2 == 0
        h = c_out // 2
        w1 = conv_w(kg, (1, 1, c_in, h))
        w2 = conv_w(kg, (1, 1, c_in, h))
        scale, shift = bn_fold(kg, c_out)
        self.w1, self.b1 = (w1 * scale[:h]).astype(jnp.bfloat16), shift[:h]
        self.w2, self.b2 = (w2 * scale[h:]).astype(jnp.bfloat16), shift[h:]

    def __call__(self, x):
        y1 = conv1x1(x, self.w1, self.b1, stride=2, relu_in=True, offset=0)
        y2 = conv1x1(x, self.w2, self.b2, stride=2, relu_in=True, offset=1)
        return jnp.concatenate([y1, y2], axis=-1)


class SepConv:
    def __init__(self, kg, c, k, stride):
        self.k, self.stride = k, stride
        self.dw1 = conv_w(kg, (k, k, c))
        s1, sh1 = bn_fold(kg, c)
        self.pw1, self.pb1 = (conv_w(kg, (1, 1, c, c)) * s1).astype(jnp.bfloat16), sh1
        self.dw2 = conv_w(kg, (k, k, c))
        s2, sh2 = bn_fold(kg, c)
        self.pw2, self.pb2 = (conv_w(kg, (1, 1, c, c)) * s2).astype(jnp.bfloat16), sh2

    def __call__(self, x):
        pad = self.k // 2
        y = depthwise_conv_s1(x, self.dw1, pad, 1, relu_in=True)
        if self.stride == 2:
            y = y[:, ::2, ::2, :]
        y = conv1x1(y, self.pw1, self.pb1)
        y = depthwise_conv_s1(y, self.dw2, pad, 1, relu_in=True)
        y = conv1x1(y, self.pw2, self.pb2)
        return y


class DilConv:
    def __init__(self, kg, c, k, stride):
        self.k, self.stride = k, stride
        self.dw = conv_w(kg, (k, k, c))
        s, sh = bn_fold(kg, c)
        self.pw, self.pb = (conv_w(kg, (1, 1, c, c)) * s).astype(jnp.bfloat16), sh

    def __call__(self, x):
        pad = 2 * (self.k // 2)  # dilation-2 "same" padding
        y = depthwise_conv_s1(x, self.dw, pad, 2, relu_in=True)
        if self.stride == 2:
            y = y[:, ::2, ::2, :]
        return conv1x1(y, self.pw, self.pb)


class PoolBN:
    def __init__(self, kg, c, stride, mode):
        self.stride, self.mode = stride, mode
        self.scale, self.shift = bn_fold(kg, c)

    def __call__(self, x):
        y = pool3x3_s1(x, self.mode, self.scale, self.shift)
        if self.stride == 2:
            y = y[:, ::2, ::2, :]
        return y


class Skip:
    def __init__(self, kg, c, stride):
        self.fr = FactorizedReduce(kg, c, c) if stride == 2 else None

    def __call__(self, x):
        return x if self.fr is None else self.fr(x)


normal_candidates = ["skip_connect", "max_pool_3x3", "avg_pool_3x3",
                     "sep_conv_3x3", "dil_conv_3x3"]


class MixedEdge:
    def __init__(self, kg, c, stride):
        self.ops = [Skip(kg, c, stride),
                    PoolBN(kg, c, stride, "max"),
                    PoolBN(kg, c, stride, "avg"),
                    SepConv(kg, c, 3, stride),
                    DilConv(kg, c, 3, stride)]
        self.alpha = 1e-3 * jax.random.normal(kg(), (len(self.ops),), jnp.float32)

    def candidate_outputs(self, x):
        # All 5 candidates are evaluated; the softmax mixing happens in one
        # fused Pallas weighted-sum together with the per-node edge sum.
        return [op(x) for op in self.ops], jax.nn.softmax(self.alpha)


class Cell:
    def __init__(self, kg, steps, multiplier, ppc, pc, cc, reduction, prev_reduction):
        if prev_reduction:
            self.preprocess0 = FactorizedReduce(kg, ppc, cc)
        else:
            self.preprocess0 = ReLUConvBN(kg, ppc, cc, 1, 1, 0)
        self.preprocess1 = ReLUConvBN(kg, pc, cc, 1, 1, 0)
        self._steps, self._multiplier = steps, multiplier
        self.edges = []
        for i in range(steps):
            for j in range(2 + i):
                stride = 2 if reduction and j < 2 else 1
                self.edges.append(MixedEdge(kg, cc, stride))

    def __call__(self, s0, s1):
        s0 = self.preprocess0(s0)
        s1 = self.preprocess1(s1)
        states = [s0, s1]
        offset = 0
        for _ in range(self._steps):
            outs, wts = [], []
            for j, h in enumerate(states):
                cand, w = self.edges[offset + j].candidate_outputs(h)
                outs.extend(cand)
                wts.append(w)
            s = weighted_sum(outs, jnp.concatenate(wts))
            offset += len(states)
            states.append(s)
        return jnp.concatenate(states[-self._multiplier:], axis=-1)


class Network:
    def __init__(self, kg, C, num_classes, layers,
                 steps=4, multiplier=4, stem_multiplier=3):
        curr = stem_multiplier * C
        w = conv_w(kg, (3, 3, 3, curr))
        scale, shift = bn_fold(kg, curr)
        self.stem_w, self.stem_b = w * scale, shift
        ppc, pc, cc = curr, curr, C
        self.cells = []
        prev_red = False
        for idx in range(layers):
            if idx in [layers // 3, 2 * layers // 3]:
                cc *= 2
                red = True
            else:
                red = False
            cell = Cell(kg, steps, multiplier, ppc, pc, cc, red, prev_red)
            self.cells.append(cell)
            prev_red = red
            ppc, pc = pc, multiplier * cc
        # data_mode == 'supervised' classifier
        self.cls_w = conv_w(kg, (pc, num_classes))
        self.cls_b = 0.1 * jax.random.normal(kg(), (num_classes,), jnp.float32)

    def __call__(self, x_nchw):
        x = jnp.transpose(x_nchw, (0, 2, 3, 1)).astype(jnp.float32)  # NCHW->NHWC
        s0 = s1 = conv2d_kxk_s1(x, self.stem_w, self.stem_b, pad=1, relu_in=False)
        for cell in self.cells:
            s0, s1 = s1, cell(s0, s1)
        return gap_classifier(s1, self.cls_w, self.cls_b)


# ----------------------------------------------------------------------------
if __name__ == "__main__":
    kg = KeyGen(0)
    # Small shapes: C=4, num_classes=10, layers=3 (reduction cells at idx 1, 2)
    net = Network(kg, C=4, num_classes=10, layers=3,
                  steps=4, multiplier=4, stem_multiplier=3)

    x = jax.random.normal(jax.random.PRNGKey(0), (2, 3, 16, 16), jnp.float32)  # NCHW
    logits = net(x)
    logits = jax.block_until_ready(logits)
    assert logits.shape == (2, 10)
    assert bool(jnp.all(jnp.isfinite(logits)))
    print("KERNEL_OK")
</pallas_src>

<mosaic_0001>
module attributes {stable_mosaic.version = 11 : i64} {
  func.func @_conv_tap_kernel(%arg0: i32, %arg1: memref<808x3xf32, #tpu.memory_space<vmem>>, %arg2: memref<9x3x12xf32, #tpu.memory_space<vmem>>, %arg3: memref<1x12xf32, #tpu.memory_space<vmem>>, %arg4: memref<256x12xbf16, #tpu.memory_space<vmem>>) attributes {dimension_semantics = [#tpu.dimension_semantics<parallel>], iteration_bounds = array<i64: 3>, scalar_prefetch = 0 : i64, scratch_operands = 0 : i64, tpu.core_type = #tpu.core_type<tc>, window_params = [{pipeline_mode = #tpu.pipeline_mode<synchronous>, transform_indices = @transform_0, window_bounds = array<i64: 808, 3>}, {pipeline_mode = #tpu.pipeline_mode<synchronous>, transform_indices = @transform_1, window_bounds = array<i64: 9, 3, 12>}, {pipeline_mode = #tpu.pipeline_mode<synchronous>, transform_indices = @transform_2, window_bounds = array<i64: 1, 12>}, {transform_indices = @transform_3, window_bounds = array<i64: 256, 12>}]} {
    %c256_i32 = arith.constant 256 : i32
    %0 = arith.muli %arg0, %c256_i32 : i32
    %1 = tpu.assume_multiple %0, 8 : i32
    %cst = arith.constant 0.000000e+00 : f32
    %2 = vector.broadcast %cst : f32 to vector<256x12xf32>
    %c0_i32 = arith.constant 0 : i32
    %3 = arith.addi %1, %c0_i32 : i32
    %4 = arith.index_cast %3 : i32 to index
    %c0 = arith.constant 0 : index
    %5 = vector.load %arg1[%4, %c0] : memref<808x3xf32, #tpu.memory_space<vmem>>, vector<256x3xf32>
    %c0_0 = arith.constant 0 : index
    %c0_1 = arith.constant 0 : index
    %c0_2 = arith.constant 0 : index
    %6 = vector.load %arg2[%c0_0, %c0_1, %c0_2] : memref<9x3x12xf32, #tpu.memory_space<vmem>>, vector<1x3x12xf32>
    %7 = vector.shape_cast %6 : vector<1x3x12xf32> to vector<3x12xf32>
    %cst_3 = arith.constant dense<0.000000e+00> : vector<256x12xf32>
    %8 = tpu.matmul %5, %7, %cst_3 {dimension_numbers = #tpu.dot_dimension_numbers<[1], [0], [0], [1], [0, 0, 1, 1], [], []>} : vector<256x3xf32>, vector<3x12xf32>, vector<256x12xf32> -> vector<256x12xf32>
    %9 = arith.addf %2, %8 : vector<256x12xf32>
    %c1_i32 = arith.constant 1 : i32
    %10 = arith.addi %1, %c1_i32 : i32
    %11 = arith.index_cast %10 : i32 to index
    %c0_4 = arith.constant 0 : index
    %12 = vector.load %arg1[%11, %c0_4] : memref<808x3xf32, #tpu.memory_space<vmem>>, vector<256x3xf32>
    %c1 = arith.constant 1 : index
    %c0_5 = arith.constant 0 : index
    %c0_6 = arith.constant 0 : index
    %13 = vector.load %arg2[%c1, %c0_5, %c0_6] : memref<9x3x12xf32, #tpu.memory_space<vmem>>, vector<1x3x12xf32>
    %14 = vector.shape_cast %13 : vector<1x3x12xf32> to vector<3x12xf32>
    %cst_7 = arith.constant dense<0.000000e+00> : vector<256x12xf32>
    %15 = tpu.matmul %12, %14, %cst_7 {dimension_numbers = #tpu.dot_dimension_numbers<[1], [0], [0], [1], [0, 0, 1, 1], [], []>} : vector<256x3xf32>, vector<3x12xf32>, vector<256x12xf32> -> vector<256x12xf32>
    %16 = arith.addf %9, %15 : vector<256x12xf32>
    %c2_i32 = arith.constant 2 : i32
    %17 = arith.addi %1, %c2_i32 : i32
    %18 = arith.index_cast %17 : i32 to index
    %c0_8 = arith.constant 0 : index
    %19 = vector.load %arg1[%18, %c0_8] : memref<808x3xf32, #tpu.memory_space<vmem>>, vector<256x3xf32>
    %c2 = arith.constant 2 : index
    %c0_9 = arith.constant 0 : index
    %c0_10 = arith.constant 0 : index
    %20 = vector.load %arg2[%c2, %c0_9, %c0_10] : memref<9x3x12xf32, #tpu.memory_space<vmem>>, vector<1x3x12xf32>
    %21 = vector.shape_cast %20 : vector<1x3x12xf32> to vector<3x12xf32>
    %cst_11 = arith.constant dense<0.000000e+00> : vector<256x12xf32>
    %22 = tpu.matmul %19, %21, %cst_11 {dimension_numbers = #tpu.dot_dimension_numbers<[1], [0], [0], [1], [0, 0, 1, 1], [], []>} : vector<256x3xf32>, vector<3x12xf32>, vector<256x12xf32> -> vector<256x12xf32>
    %23 = arith.addf %16, %22 : vector<256x12xf32>
    %c18_i32 = arith.constant 18 : i32
    %24 = arith.addi %1, %c18_i32 : i32
    %25 = arith.index_cast %24 : i32 to index
    %c0_12 = arith.constant 0 : index
    %26 = vector.load %arg1[%25, %c0_12] : memref<808x3xf32, #tpu.memory_space<vmem>>, vector<256x3xf32>
    %c3 = arith.constant 3 : index
    %c0_13 = arith.constant 0 : index
    %c0_14 = arith.constant 0 : index
    %27 = vector.load %arg2[%c3, %c0_13, %c0_14] : memref<9x3x12xf32, #tpu.memory_space<vmem>>, vector<1x3x12xf32>
    %28 = vector.shape_cast %27 : vector<1x3x12xf32> to vector<3x12xf32>
    %cst_15 = arith.constant dense<0.000000e+00> : vector<256x12xf32>
    %29 = tpu.matmul %26, %28, %cst_15 {dimension_numbers = #tpu.dot_dimension_numbers<[1], [0], [0], [1], [0, 0, 1, 1], [], []>} : vector<256x3xf32>, vector<3x12xf32>, vector<256x12xf32> -> vector<256x12xf32>
    %30 = arith.addf %23, %29 : vector<256x12xf32>
    %c19_i32 = arith.constant 19 : i32
    %31 = arith.addi %1, %c19_i32 : i32
    %32 = arith.index_cast %31 : i32 to index
    %c0_16 = arith.constant 0 : index
    %33 = vector.load %arg1[%32, %c0_16] : memref<808x3xf32, #tpu.memory_space<vmem>>, vector<256x3xf32>
    %c4 = arith.constant 4 : index
    %c0_17 = arith.constant 0 : index
    %c0_18 = arith.constant 0 : index
    %34 = vector.load %arg2[%c4, %c0_17, %c0_18] : memref<9x3x12xf32, #tpu.memory_space<vmem>>, vector<1x3x12xf32>
    %35 = vector.shape_cast %34 : vector<1x3x12xf32> to vector<3x12xf32>
    %cst_19 = arith.constant dense<0.000000e+00> : vector<256x12xf32>
    %36 = tpu.matmul %33, %35, %cst_19 {dimension_numbers = #tpu.dot_dimension_numbers<[1], [0], [0], [1], [0, 0, 1, 1], [], []>} : vector<256x3xf32>, vector<3x12xf32>, vector<256x12xf32> -> vector<256x12xf32>
    %37 = arith.addf %30, %36 : vector<256x12xf32>
    %c20_i32 = arith.constant 20 : i32
    %38 = arith.addi %1, %c20_i32 : i32
    %39 = arith.index_cast %38 : i32 to index
    %c0_20 = arith.constant 0 : index
    %40 = vector.load %arg1[%39, %c0_20] : memref<808x3xf32, #tpu.memory_space<vmem>>, vector<256x3xf32>
    %c5 = arith.constant 5 : index
    %c0_21 = arith.constant 0 : index
    %c0_22 = arith.constant 0 : index
    %41 = vector.load %arg2[%c5, %c0_21, %c0_22] : memref<9x3x12xf32, #tpu.memory_space<vmem>>, vector<1x3x12xf32>
    %42 = vector.shape_cast %41 : vector<1x3x12xf32> to vector<3x12xf32>
    %cst_23 = arith.constant dense<0.000000e+00> : vector<256x12xf32>
    %43 = tpu.matmul %40, %42, %cst_23 {dimension_numbers = #tpu.dot_dimension_numbers<[1], [0], [0], [1], [0, 0, 1, 1], [], []>} : vector<256x3xf32>, vector<3x12xf32>, vector<256x12xf32> -> vector<256x12xf32>
    %44 = arith.addf %37, %43 : vector<256x12xf32>
    %c36_i32 = arith.constant 36 : i32
    %45 = arith.addi %1, %c36_i32 : i32
    %46 = arith.index_cast %45 : i32 to index
    %c0_24 = arith.constant 0 : index
    %47 = vector.load %arg1[%46, %c0_24] : memref<808x3xf32, #tpu.memory_space<vmem>>, vector<256x3xf32>
    %c6 = arith.constant 6 : index
    %c0_25 = arith.constant 0 : index
    %c0_26 = arith.constant 0 : index
    %48 = vector.load %arg2[%c6, %c0_25, %c0_26] : memref<9x3x12xf32, #tpu.memory_space<vmem>>, vector<1x3x12xf32>
    %49 = vector.shape_cast %48 : vector<1x3x12xf32> to vector<3x12xf32>
    %cst_27 = arith.constant dense<0.000000e+00> : vector<256x12xf32>
    %50 = tpu.matmul %47, %49, %cst_27 {dimension_numbers = #tpu.dot_dimension_numbers<[1], [0], [0], [1], [0, 0, 1, 1], [], []>} : vector<256x3xf32>, vector<3x12xf32>, vector<256x12xf32> -> vector<256x12xf32>
    %51 = arith.addf %44, %50 : vector<256x12xf32>
    %c37_i32 = arith.constant 37 : i32
    %52 = arith.addi %1, %c37_i32 : i32
    %53 = arith.index_cast %52 : i32 to index
    %c0_28 = arith.constant 0 : index
    %54 = vector.load %arg1[%53, %c0_28] : memref<808x3xf32, #tpu.memory_space<vmem>>, vector<256x3xf32>
    %c7 = arith.constant 7 : index
    %c0_29 = arith.constant 0 : index
    %c0_30 = arith.constant 0 : index
    %55 = vector.load %arg2[%c7, %c0_29, %c0_30] : memref<9x3x12xf32, #tpu.memory_space<vmem>>, vector<1x3x12xf32>
    %56 = vector.shape_cast %55 : vector<1x3x12xf32> to vector<3x12xf32>
    %cst_31 = arith.constant dense<0.000000e+00> : vector<256x12xf32>
    %57 = tpu.matmul %54, %56, %cst_31 {dimension_numbers = #tpu.dot_dimension_numbers<[1], [0], [0], [1], [0, 0, 1, 1], [], []>} : vector<256x3xf32>, vector<3x12xf32>, vector<256x12xf32> -> vector<256x12xf32>
    %58 = arith.addf %51, %57 : vector<256x12xf32>
    %c38_i32 = arith.constant 38 : i32
    %59 = arith.addi %1, %c38_i32 : i32
    %60 = arith.index_cast %59 : i32 to index
    %c0_32 = arith.constant 0 : index
    %61 = vector.load %arg1[%60, %c0_32] : memref<808x3xf32, #tpu.memory_space<vmem>>, vector<256x3xf32>
    %c8 = arith.constant 8 : index
    %c0_33 = arith.constant 0 : index
    %c0_34 = arith.constant 0 : index
    %62 = vector.load %arg2[%c8, %c0_33, %c0_34] : memref<9x3x12xf32, #tpu.memory_space<vmem>>, vector<1x3x12xf32>
    %63 = vector.shape_cast %62 : vector<1x3x12xf32> to vector<3x12xf32>
    %cst_35 = arith.constant dense<0.000000e+00> : vector<256x12xf32>
    %64 = tpu.matmul %61, %63, %cst_35 {dimension_numbers = #tpu.dot_dimension_numbers<[1], [0], [0], [1], [0, 0, 1, 1], [], []>} : vector<256x3xf32>, vector<3x12xf32>, vector<256x12xf32> -> vector<256x12xf32>
    %65 = arith.addf %58, %64 : vector<256x12xf32>
    %c0_36 = arith.constant 0 : index
    %c0_37 = arith.constant 0 : index
    %66 = vector.load %arg3[%c0_36, %c0_37] : memref<1x12xf32, #tpu.memory_space<vmem>>, vector<1x12xf32>
    %67 = vector.broadcast %66 : vector<1x12xf32> to vector<256x12xf32>
    %68 = arith.addf %65, %67 : vector<256x12xf32>
    %69 = arith.truncf %68 : vector<256x12xf32> to vector<256x12xbf16>
    %c0_38 = arith.constant 0 : index
    %c0_39 = arith.constant 0 : index
    %70 = vector.load %arg4[%c0_38, %c0_39] : memref<256x12xbf16, #tpu.memory_space<vmem>>, vector<256x12xbf16>
    tpu.vector_store %arg4[%c0_38, %c0_39], %69 {strides = array<i32>} : memref<256x12xbf16, #tpu.memory_space<vmem>>, vector<256x12xbf16>,
    return
  }
  func.func @transform_0(%arg0: i32) -> (i32, i32) {
    %c0_i32 = arith.constant 0 : i32
    %c0_i32_0 = arith.constant 0 : i32
    %c0_i32_1 = arith.constant 0 : i32
    return %c0_i32, %c0_i32_0 : i32, i32
  }
  func.func @transform_1(%arg0: i32) -> (i32, i32, i32) {
    %c0_i32 = arith.constant 0 : i32
    %c0_i32_0 = arith.constant 0 : i32
    %c0_i32_1 = arith.constant 0 : i32
    %c0_i32_2 = arith.constant 0 : i32
    return %c0_i32, %c0_i32_0, %c0_i32_1 : i32, i32, i32
  }
  func.func @transform_2(%arg0: i32) -> (i32, i32) {
    %c0_i32 = arith.constant 0 : i32
    %c0_i32_0 = arith.constant 0 : i32
    %c0_i32_1 = arith.constant 0 : i32
    return %c0_i32, %c0_i32_0 : i32, i32
  }
  func.func @transform_3(%arg0: i32) -> (i32, i32) {
    %c0_i32 = arith.constant 0 : i32
    %c0_i32_0 = arith.constant 0 : i32
    return %arg0, %c0_i32 : i32, i32
  }
}

</mosaic_0001>

<llo_original>
// kernel: tpu_custom_call.1
$region0: #{tpu_custom_call.1}
  #allocation0 [shape = 'u32[]', space=smem, size = 0x4, offset = 0x4, fixed_abs, tag = 'smem constant byte address 0x4 - core index']
  #allocation1 [shape = 'u32[144,128]{1,0:T(1,128)}', space=vmem, size = 0x12000, scoped, tag = 'internal scratch']
  %s0 = inlined_call_operand.vmem [shape: f32[808,3], index: 0, kind: input, shape index: {}]
  %s1 = inlined_call_operand.vmem [shape: f32[9,3,12], index: 1, kind: input, shape index: {}]
  %s2 = inlined_call_operand.vmem [shape: f32[1,12], index: 2, kind: input, shape index: {}]
  %s3 = inlined_call_operand.vmem [shape: bf16[768,12], index: 3, kind: output, shape index: {}]
  %s4 = sld [smem:[#allocation0]]
  $region45: #{tpu_custom_call.1} parent=0
    _
  %s6 = ssub.s32 1, %s4
  %s7 = scalar_select 0, %s6, %s4
  loop: start=0, step=1, limit=5
  $region2: #{tpu_custom_call.1} parent=0 // loop_pre_header
    _
  $region3: #{tpu_custom_call.1} parent=0 // loop_header
    %s9 = sphi 0, %s13
    %p10 = scmp.ge.s32.totalorder %s9, 5
    %s17 = sphi 0, %s17
    %s19 = sphi 0, %s17
    %s20 = sphi 0, %s19
    %s34 = sphi 0, %s20
    %s38 = sphi 0, %s38
    %s40 = sphi 0, %s38
    %s41 = sphi 0, %s40
    %s55 = sphi 0, %s41
    %s59 = sphi 0, %s59
    %s61 = sphi 0, %s59
    %s62 = sphi 0, %s61
    %s76 = sphi 0, %s62
    %s82 = sphi 0, %s84
    %s85 = sphi 0, %s82
    %s86 = sphi 0, %s85
    %s102 = sphi 0, %s86
  $region4: #{tpu_custom_call.1} parent=0 // loop_header_branch
    %12 = sbr.rel (%p10) target = $region8
  $region5: #{tpu_custom_call.1} parent=0 // loop_body
    %s14 = ssub.s32 %s9, 1
    %s15 = ssub.s32 %s9, 2
    %s16 = sadd.s32 %s9, 1
    %s18 = sadd.s32 %s17, 1
    %p21 = scmp.eq.s32.totalorder %s9, 2
    %p22 = scmp.ne.s32.totalorder %s17, %s19
    %p23 = scmp.eq.s32.totalorder %s9, 0
    %p24 = por %p22, %p23
    %p25 = scmp.ne.s32.totalorder %s17, %s19
    %p26 = scmp.eq.s32.totalorder %s14, 2
    %p27 = por %p25, %p26
    %p28 = scmp.ne.s32.totalorder %s19, %s20
    %p29 = scmp.eq.s32.totalorder %s14, 0
    %p30 = por %p28, %p29
    %p31 = scmp.ne.s32.totalorder %s19, %s20
    %p32 = scmp.eq.s32.totalorder %s15, 2
    %p33 = por %p31, %p32
    %p35 = scmp.ne.s32.totalorder %s20, %s34
    %p36 = scmp.eq.s32.totalorder %s15, 0
    %p37 = por %p35, %p36
    %s39 = sadd.s32 %s38, 1
    %p42 = scmp.eq.s32.totalorder %s9, 2
    %p43 = scmp.ne.s32.totalorder %s38, %s40
    %p44 = scmp.eq.s32.totalorder %s9, 0
    %p45 = por %p43, %p44
    %p46 = scmp.ne.s32.totalorder %s38, %s40
    %p47 = scmp.eq.s32.totalorder %s14, 2
    %p48 = por %p46, %p47
    %p49 = scmp.ne.s32.totalorder %s40, %s41
    %p50 = scmp.eq.s32.totalorder %s14, 0
    %p51 = por %p49, %p50
    %p52 = scmp.ne.s32.totalorder %s40, %s41
    %p53 = scmp.eq.s32.totalorder %s15, 2
    %p54 = por %p52, %p53
    %p56 = scmp.ne.s32.totalorder %s41, %s55
    %p57 = scmp.eq.s32.totalorder %s15, 0
    %p58 = por %p56, %p57
    %s60 = sadd.s32 %s59, 1
    %p63 = scmp.eq.s32.totalorder %s9, 2
    %p64 = scmp.ne.s32.totalorder %s59, %s61
    %p65 = scmp.eq.s32.totalorder %s9, 0
    %p66 = por %p64, %p65
    %p67 = scmp.ne.s32.totalorder %s59, %s61
    %p68 = scmp.eq.s32.totalorder %s14, 2
    %p69 = por %p67, %p68
    %p70 = scmp.ne.s32.totalorder %s61, %s62
    %p71 = scmp.eq.s32.totalorder %s14, 0
    %p72 = por %p70, %p71
    %p73 = scmp.ne.s32.totalorder %s61, %s62
    %p74 = scmp.eq.s32.totalorder %s15, 2
    %p75 = por %p73, %p74
    %p77 = scmp.ne.s32.totalorder %s62, %s76
    %p78 = scmp.eq.s32.totalorder %s15, 0
    %p79 = por %p77, %p78
    %s80 = ssub.s32 %s9, %s16
    %p81 = scmp.eq.s32.totalorder %s80, 0
    %s83 = sadd.s32 %s82, 1
    %s84 = scalar_select %p81, %s82, %s83
    %p87 = pneg %p81
    %p88 = scmp.eq.s32.totalorder %s9, 2
    %p89 = por %p87, %p88
    %p90 = scmp.ne.s32.totalorder %s82, %s85
    %p91 = scmp.eq.s32.totalorder %s9, 0
    %p92 = por %p90, %p91
    %p93 = scmp.ne.s32.totalorder %s82, %s85
    %p94 = scmp.eq.s32.totalorder %s14, 2
    %p95 = por %p93, %p94
    %p96 = scmp.ne.s32.totalorder %s85, %s86
    %p97 = scmp.eq.s32.totalorder %s14, 0
    %p98 = por %p96, %p97
    %p99 = scmp.ne.s32.totalorder %s85, %s86
    %p100 = scmp.eq.s32.totalorder %s15, 2
    %p101 = por %p99, %p100
    %p103 = scmp.ne.s32.totalorder %s86, %s102
    %p104 = scmp.eq.s32.totalorder %s15, 0
    %p105 = por %p103, %p104
    %p106 = scmp.le.s32.totalorder 1, %s9
    %p107 = scmp.lt.s32.totalorder %s9, 4
    %p108 = pnand %p106, %p107
    %p109 = pneg %p108
    // Predicated region
    $region9: #{tpu_custom_call.1} parent=5 // pred_check
      _
    $region10: #{tpu_custom_call.1} parent=5 // pred_check_branch
      %111 = sbr.rel (%p108) target = $region12
    $region11: #{tpu_custom_call.1} parent=5 // pred_region
      %s112 = ssub.s32 %s9, 1
      // Predicated region
      $region13: #{tpu_custom_call.1} parent=11 // pred_check
        %p113 = pneg %p30
      $region14: #{tpu_custom_call.1} parent=11 // pred_check_branch
        %115 = sbr.rel (%p113) target = $region16
      $region15: #{tpu_custom_call.1} parent=11 // pred_region
        _
      $region16: #{tpu_custom_call.1} parent=11 // pred_fallthru
        _
      // Predicated region
      $region17: #{tpu_custom_call.1} parent=11 // pred_check
        %p116 = pneg %p51
      $region18: #{tpu_custom_call.1} parent=11 // pred_check_branch
        %118 = sbr.rel (%p116) target = $region20
      $region19: #{tpu_custom_call.1} parent=11 // pred_region
        _
      $region20: #{tpu_custom_call.1} parent=11 // pred_fallthru
        _
      // Predicated region
      $region21: #{tpu_custom_call.1} parent=11 // pred_check
        %p119 = pneg %p72
      $region22: #{tpu_custom_call.1} parent=11 // pred_check_branch
        %121 = sbr.rel (%p119) target = $region24
      $region23: #{tpu_custom_call.1} parent=11 // pred_region
        _
      $region24: #{tpu_custom_call.1} parent=11 // pred_fallthru
        _
    $region12: #{tpu_custom_call.1} parent=5 // pred_fallthru
      _
    %p122 = scmp.lt.s32.totalorder %s9, 3
    // Predicated region
    $region25: #{tpu_custom_call.1} parent=5 // pred_check
      %p123 = pneg %p122
    $region26: #{tpu_custom_call.1} parent=5 // pred_check_branch
      %125 = sbr.rel (%p123) target = $region28
    $region27: #{tpu_custom_call.1} parent=5 // pred_region
      _
    $region28: #{tpu_custom_call.1} parent=5 // pred_fallthru
      _
    %p126 = scmp.le.s32.totalorder 1, %s9
    %p127 = scmp.lt.s32.totalorder %s9, 4
    %p128 = pnand %p126, %p127
    %p129 = pneg %p128
    // Predicated region
    $region29: #{tpu_custom_call.1} parent=5 // pred_check
      _
    $region30: #{tpu_custom_call.1} parent=5 // pred_check_branch
      %131 = sbr.rel (%p128) target = $region32
    $region31: #{tpu_custom_call.1} parent=5 // pred_region
      %s132 = ssub.s32 %s9, 1
      %p133 = pneg %p30
      %p134 = pneg %p27
      %p135 = pneg %p51
      %p136 = pneg %p48
      %p137 = pneg %p72
      %p138 = pneg %p69
      %p139 = pneg %p98
      %p140 = pneg %p95
      %s141 = smul.u32 32, %s14
      %p142 = scmp.lt.s32.totalorder %s141, 95
      %s143 = scalar_select %p142, %s141, 95
      %s144 = smul.addr %s143, 4
      %s145 = scalar_lea.vmem %s3, %s144
      %s146 = smul.u32 32, %s14
      %p147 = scmp.lt.s32.totalorder %s146, 95
      %s148 = scalar_select %p147, %s146, 95
      %s149 = smul.addr %s148, 4
      %s150 = scalar_lea.vmem %s3, %s149
      %s151 = smul.u32 32, %s14
      %s152 = smul.u32 %s14, 256
      %s153 = scalar_lea.vmem %s0, %s152
      %v154 = vld [vmem:[%s153] sm:$0xff]
      %v155 = vld [vmem:[%s153 + $0x8] sm:$0xff]
      %v156 = vld [vmem:[%s153 + $0x10] sm:$0xff]
      %v157 = vld [vmem:[%s153 + $0x18] sm:$0xff]
      %v158 = vld [vmem:[%s153 + $0x20] sm:$0xff]
      %v159 = vld [vmem:[%s153 + $0x28] sm:$0xff]
      %v160 = vld [vmem:[%s153 + $0x30] sm:$0xff]
      %v161 = vld [vmem:[%s153 + $0x38] sm:$0xff]
      %v162 = vld [vmem:[%s153 + $0x40] sm:$0xff]
      %v163 = vld [vmem:[%s153 + $0x48] sm:$0xff]
      %v164 = vld [vmem:[%s153 + $0x50] sm:$0xff]
      %v165 = vld [vmem:[%s153 + $0x58] sm:$0xff]
      %v166 = vld [vmem:[%s153 + $0x60] sm:$0xff]
      %v167 = vld [vmem:[%s153 + $0x68] sm:$0xff]
      %v168 = vld [vmem:[%s153 + $0x70] sm:$0xff]
      %v169 = vld [vmem:[%s153 + $0x78] sm:$0xff]
      %v170 = vld [vmem:[%s153 + $0x80] sm:$0xff]
      %v171 = vld [vmem:[%s153 + $0x88] sm:$0xff]
      %v172 = vld [vmem:[%s153 + $0x90] sm:$0xff]
      %v173 = vld [vmem:[%s153 + $0x98] sm:$0xff]
      %v174 = vld [vmem:[%s153 + $0xa0] sm:$0xff]
      %v175 = vld [vmem:[%s153 + $0xa8] sm:$0xff]
      %v176 = vld [vmem:[%s153 + $0xb0] sm:$0xff]
      %v177 = vld [vmem:[%s153 + $0xb8] sm:$0xff]
      %v178 = vld [vmem:[%s153 + $0xc0] sm:$0xff]
      %v179 = vld [vmem:[%s153 + $0xc8] sm:$0xff]
      %v180 = vld [vmem:[%s153 + $0xd0] sm:$0xff]
      %v181 = vld [vmem:[%s153 + $0xd8] sm:$0xff]
      %v182 = vld [vmem:[%s153 + $0xe0] sm:$0xff]
      %v183 = vld [vmem:[%s153 + $0xe8] sm:$0xff]
      %v184 = vld [vmem:[%s153 + $0xf0] sm:$0xff]
      %v185 = vld [vmem:[%s153 + $0xf8] sm:$0xff]
      %v186 = vld [vmem:[%s1] sm:$0x7]
      %s187 = sadd.s32 %s152, 1
      %s188 = scalar_lea.vmem %s0, %s187
      %v189 = vld [vmem:[%s188] sm:$0xff]
      %v190 = vld [vmem:[%s188 + $0x8] sm:$0xff]
      %v191 = vld [vmem:[%s188 + $0x10] sm:$0xff]
      %v192 = vld [vmem:[%s188 + $0x18] sm:$0xff]
      %v193 = vld [vmem:[%s188 + $0x20] sm:$0xff]
      %v194 = vld [vmem:[%s188 + $0x28] sm:$0xff]
      %v195 = vld [vmem:[%s188 + $0x30] sm:$0xff]
      %v196 = vld [vmem:[%s188 + $0x38] sm:$0xff]
      %v197 = vld [vmem:[%s188 + $0x40] sm:$0xff]
      %v198 = vld [vmem:[%s188 + $0x48] sm:$0xff]
      %v199 = vld [vmem:[%s188 + $0x50] sm:$0xff]
      %v200 = vld [vmem:[%s188 + $0x58] sm:$0xff]
      %v201 = vld [vmem:[%s188 + $0x60] sm:$0xff]
      %v202 = vld [vmem:[%s188 + $0x68] sm:$0xff]
      %v203 = vld [vmem:[%s188 + $0x70] sm:$0xff]
      %v204 = vld [vmem:[%s188 + $0x78] sm:$0xff]
      %v205 = vld [vmem:[%s188 + $0x80] sm:$0xff]
      %v206 = vld [vmem:[%s188 + $0x88] sm:$0xff]
      %v207 = vld [vmem:[%s188 + $0x90] sm:$0xff]
      %v208 = vld [vmem:[%s188 + $0x98] sm:$0xff]
      %v209 = vld [vmem:[%s188 + $0xa0] sm:$0xff]
      %v210 = vld [vmem:[%s188 + $0xa8] sm:$0xff]
      %v211 = vld [vmem:[%s188 + $0xb0] sm:$0xff]
      %v212 = vld [vmem:[%s188 + $0xb8] sm:$0xff]
      %v213 = vld [vmem:[%s188 + $0xc0] sm:$0xff]
      %v214 = vld [vmem:[%s188 + $0xc8] sm:$0xff]
      %v215 = vld [vmem:[%s188 + $0xd0] sm:$0xff]
      %v216 = vld [vmem:[%s188 + $0xd8] sm:$0xff]
      %v217 = vld [vmem:[%s188 + $0xe0] sm:$0xff]
      %v218 = vld [vmem:[%s188 + $0xe8] sm:$0xff]
      %v219 = vld [vmem:[%s188 + $0xf0] sm:$0xff]
      %v220 = vld [vmem:[%s188 + $0xf8] sm:$0xff]
      %s221 = scalar_lea.vmem %s1, 4
      %v222 = vld [vmem:[%s221] sm:$0x7]
      %vm223 = vcmask 23552
      %v225 = vsel %vm223, %v189, 0
      %v228 = vsel %vm223, %v190, 0
      %v231 = vsel %vm223, %v191, 0
      %v234 = vsel %vm223, %v192, 0
      %v237 = vsel %vm223, %v193, 0
      %v240 = vsel %vm223, %v194, 0
      %v243 = vsel %vm223, %v195, 0
      %v246 = vsel %vm223, %v196, 0
      %v249 = vsel %vm223, %v197, 0
      %v252 = vsel %vm223, %v198, 0
      %v255 = vsel %vm223, %v199, 0
      %v258 = vsel %vm223, %v200, 0
      %v261 = vsel %vm223, %v201, 0
      %v264 = vsel %vm223, %v202, 0
      %v267 = vsel %vm223, %v203, 0
      %v270 = vsel %vm223, %v204, 0
      %v273 = vsel %vm223, %v205, 0
      %v276 = vsel %vm223, %v206, 0
      %v279 = vsel %vm223, %v207, 0
      %v282 = vsel %vm223, %v208, 0
      %v285 = vsel %vm223, %v209, 0
      %v288 = vsel %vm223, %v210, 0
      %v291 = vsel %vm223, %v211, 0
      %v294 = vsel %vm223, %v212, 0
      %v297 = vsel %vm223, %v213, 0
      %v300 = vsel %vm223, %v214, 0
      %v303 = vsel %vm223, %v215, 0
      %v306 = vsel %vm223, %v216, 0
      %v309 = vsel %vm223, %v217, 0
      %v312 = vsel %vm223, %v218, 0
      %v315 = vsel %vm223, %v219, 0
      %v318 = vsel %vm223, %v220, 0
      %vm320 = vcmask 1042432
      %v322 = vsel %vm320, %v222, 0
      %324 = vmatprep.subr.mxu0 0.0
      %325 = vmatpush1.msra.mxu0 %v322
      %326 = vmatprep.subr.mxu0 0.0
      %327 = vmatpush1.msra.mxu0 0.0
      %328 = vmatprep.subr.mxu0 0.0
      %329 = vmatpush1.msra.mxu0 0.0
      %330 = vmatprep.subr.mxu0 0.0
      %331 = vmatpush1.msra.mxu0 0.0
      %332 = vmatprep.subr.mxu0 0.0
      %333 = vmatpush1.msra.mxu0 0.0
      %334 = vmatprep.subr.mxu0 0.0
      %335 = vmatpush1.msra.mxu0 0.0
      %336 = vmatprep.subr.mxu0 0.0
      %337 = vmatpush1.msra.mxu0 0.0
      %338 = vmatprep.subr.mxu0 0.0
      %339 = vmatpush1.msra.mxu0 0.0
      %340 = vmatprep.subr.mxu0 0.0
      %341 = vmatpush1.msra.mxu0 0.0
      %342 = vmatprep.subr.mxu0 0.0
      %343 = vmatpush1.msra.mxu0 0.0
      %344 = vmatprep.subr.mxu0 0.0
      %345 = vmatpush1.msra.mxu0 0.0
      %346 = vmatprep.subr.mxu0 0.0
      %347 = vmatpush1.msra.mxu0 0.0
      %348 = vmatprep.subr.mxu0 0.0
      %349 = vmatpush1.msra.mxu0 0.0
      %350 = vmatprep.subr.mxu0 0.0
      %351 = vmatpush1.msra.mxu0 0.0
      %352 = vmatprep.subr.mxu0 0.0
      %353 = vmatpush1.msra.mxu0 0.0
      %354 = vmatprep.subr.mxu0 0.0
      %355 = vmatpush1.msra.mxu0 0.0
      %356 = vmatprep.subr.mxu0 0.0
      %357 = vmatpush1.msra.mxu0 0.0
      %358 = vmatprep.subr.mxu0 0.0
      %359 = vmatpush1.msra.mxu0 0.0
      %360 = vmatprep.subr.mxu0 0.0
      %361 = vmatpush1.msra.mxu0 0.0
      %362 = vmatprep.subr.mxu0 0.0
      %363 = vmatpush1.msra.mxu0 0.0
      %364 = vmatprep.subr.mxu0 0.0
      %365 = vmatpush1.msra.mxu0 0.0
      %366 = vmatprep.subr.mxu0 0.0
      %367 = vmatpush1.msra.mxu0 0.0
      %368 = vmatprep.subr.mxu0 0.0
      %369 = vmatpush1.msra.mxu0 0.0
      %370 = vmatprep.subr.mxu0 0.0
      %371 = vmatpush1.msra.mxu0 0.0
      %372 = vmatprep.subr.mxu0 0.0
      %373 = vmatpush1.msra.mxu0 0.0
      %374 = vmatprep.subr.mxu0 0.0
      %375 = vmatpush1.msra.mxu0 0.0
      %376 = vmatprep.subr.mxu0 0.0
      %377 = vmatpush1.msra.mxu0 0.0
      %378 = vmatprep.subr.mxu0 0.0
      %379 = vmatpush1.msra.mxu0 0.0
      %380 = vmatprep.subr.mxu0 0.0
      %381 = vmatpush1.msra.mxu0 0.0
      %382 = vmatprep.subr.mxu0 0.0
      %383 = vmatpush1.msra.mxu0 0.0
      %384 = vmatprep.subr.mxu0 0.0
      %385 = vmatpush1.msra.mxu0 0.0
      %386 = vmatprep.subr.mxu0 0.0
      %387 = vmatpush1.msra.mxu0 0.0
      %388 = vmatprep.mubr.f32.mxu0 0.0
      %389 = vmatmul.mubr.f32.gmra.mrb[0].mxu0 %v225
      %v390 = vpop.f32.mrb[0].mxu0
      %v391 = vadd.f32 0.0, %v390
      %v392 = vpop.f32.mrb[0].mxu0
      %393 = vmatprep.mubr.f32.mxu0 0.0
      %394 = vmatmul.mubr.f32.gmra.mrb[0].mxu0 %v228
      %v395 = vpop.f32.mrb[0].mxu0
      %v396 = vadd.f32 0.0, %v395
      %v397 = vpop.f32.mrb[0].mxu0
      %398 = vmatprep.mubr.f32.mxu0 0.0
      %399 = vmatmul.mubr.f32.gmra.mrb[0].mxu0 %v231
      %v400 = vpop.f32.mrb[0].mxu0
      %v401 = vadd.f32 0.0, %v400
      %v402 = vpop.f32.mrb[0].mxu0
      %403 = vmatprep.mubr.f32.mxu0 0.0
      %404 = vmatmul.mubr.f32.gmra.mrb[0].mxu0 %v234
      %v405 = vpop.f32.mrb[0].mxu0
      %v406 = vadd.f32 0.0, %v405
      %v407 = vpop.f32.mrb[0].mxu0
      %408 = vmatprep.mubr.f32.mxu0 0.0
      %409 = vmatmul.mubr.f32.gmra.mrb[0].mxu0 %v237
      %v410 = vpop.f32.mrb[0].mxu0
      %v411 = vadd.f32 0.0, %v410
      %v412 = vpop.f32.mrb[0].mxu0
      %413 = vmatprep.mubr.f32.mxu0 0.0
      %414 = vmatmul.mubr.f32.gmra.mrb[0].mxu0 %v240
      %v415 = vpop.f32.mrb[0].mxu0
      %v416 = vadd.f32 0.0, %v415
      %v417 = vpop.f32.mrb[0].mxu0
      %418 = vmatprep.mubr.f32.mxu0 0.0
      %419 = vmatmul.mubr.f32.gmra.mrb[0].mxu0 %v243
      %v420 = vpop.f32.mrb[0].mxu0
      %v421 = vadd.f32 0.0, %v420
      %v422 = vpop.f32.mrb[0].mxu0
      %423 = vmatprep.mubr.f32.mxu0 0.0
      %424 = vmatmul.mubr.f32.gmra.mrb[0].mxu0 %v246
      %v425 = vpop.f32.mrb[0].mxu0
      %v426 = vadd.f32 0.0, %v425
      %v427 = vpop.f32.mrb[0].mxu0
      %428 = vmatprep.mubr.f32.mxu0 0.0
      %429 = vmatmul.mubr.f32.gmra.mrb[0].mxu0 %v249
      %v430 = vpop.f32.mrb[0].mxu0
      %v431 = vadd.f32 0.0, %v430
      %v432 = vpop.f32.mrb[0].mxu0
      %433 = vmatprep.mubr.f32.mxu0 0.0
      %434 = vmatmul.mubr.f32.gmra.mrb[0].mxu0 %v252
      %v435 = vpop.f32.mrb[0].mxu0
      %v436 = vadd.f32 0.0, %v435
      %v437 = vpop.f32.mrb[0].mxu0
      %438 = vmatprep.mubr.f32.mxu0 0.0
      %439 = vmatmul.mubr.f32.gmra.mrb[0].mxu0 %v255
      %v440 = vpop.f32.mrb[0].mxu0
      %v441 = vadd.f32 0.0, %v440
      %v442 = vpop.f32.mrb[0].mxu0
      %443 = vmatprep.mubr.f32.mxu0 0.0
      %444 = vmatmul.mubr.f32.gmra.mrb[0].mxu0 %v258
      %v445 = vpop.f32.mrb[0].mxu0
      %v446 = vadd.f32 0.0, %v445
      %v447 = vpop.f32.mrb[0].mxu0
      %448 = vmatprep.mubr.f32.mxu0 0.0
      %449 = vmatmul.mubr.f32.gmra.mrb[0].mxu0 %v261
      %v450 = vpop.f32.mrb[0].mxu0
      %v451 = vadd.f32 0.0, %v450
      %v452 = vpop.f32.mrb[0].mxu0
      %453 = vmatprep.mubr.f32.mxu0 0.0
      %454 = vmatmul.mubr.f32.gmra.mrb[0].mxu0 %v264
      %v455 = vpop.f32.mrb[0].mxu0
      %v456 = vadd.f32 0.0, %v455
      %v457 = vpop.f32.mrb[0].mxu0
      %458 = vmatprep.mubr.f32.mxu0 0.0
      %459 = vmatmul.mubr.f32.gmra.mrb[0].mxu0 %v267
      %v460 = vpop.f32.mrb[0].mxu0
      %v461 = vadd.f32 0.0, %v460
      %v462 = vpop.f32.mrb[0].mxu0
      %463 = vmatprep.mubr.f32.mxu0 0.0
      %464 = vmatmul.mubr.f32.gmra.mrb[0].mxu0 %v270
      %v465 = vpop.f32.mrb[0].mxu0
      %v466 = vadd.f32 0.0, %v465
      %v467 = vpop.f32.mrb[0].mxu0
      %468 = vmatprep.mubr.f32.mxu0 0.0
      %469 = vmatmul.mubr.f32.gmra.mrb[0].mxu0 %v273
      %v470 = vpop.f32.mrb[0].mxu0
      %v471 = vadd.f32 0.0, %v470
      %v472 = vpop.f32.mrb[0].mxu0
      %473 = vmatprep.mubr.f32.mxu0 0.0
      %474 = vmatmul.mubr.f32.gmra.mrb[0].mxu0 %v276
      %v475 = vpop.f32.mrb[0].mxu0
      %v476 = vadd.f32 0.0, %v475
      %v477 = vpop.f32.mrb[0].mxu0
      %478 = vmatprep.mubr.f32.mxu0 0.0
      %479 = vmatmul.mubr.f32.gmra.mrb[0].mxu0 %v279
      %v480 = vpop.f32.mrb[0].mxu0
      %v481 = vadd.f32 0.0, %v480
      %v482 = vpop.f32.mrb[0].mxu0
      %483 = vmatprep.mubr.f32.mxu0 0.0
      %484 = vmatmul.mubr.f32.gmra.mrb[0].mxu0 %v282
      %v485 = vpop.f32.mrb[0].mxu0
      %v486 = vadd.f32 0.0, %v485
      %v487 = vpop.f32.mrb[0].mxu0
      %488 = vmatprep.mubr.f32.mxu0 0.0
      %489 = vmatmul.mubr.f32.gmra.mrb[0].mxu0 %v285
      %v490 = vpop.f32.mrb[0].mxu0
      %v491 = vadd.f32 0.0, %v490
      %v492 = vpop.f32.mrb[0].mxu0
      %493 = vmatprep.mubr.f32.mxu0 0.0
      %494 = vmatmul.mubr.f32.gmra.mrb[0].mxu0 %v288
      %v495 = vpop.f32.mrb[0].mxu0
      %v496 = vadd.f32 0.0, %v495
      %v497 = vpop.f32.mrb[0].mxu0
      %498 = vmatprep.mubr.f32.mxu0 0.0
      %499 = vmatmul.mubr.f32.gmra.mrb[0].mxu0 %v291
      %v500 = vpop.f32.mrb[0].mxu0
      %v501 = vadd.f32 0.0, %v500
      %v502 = vpop.f32.mrb[0].mxu0
      %503 = vmatprep.mubr.f32.mxu0 0.0
      %504 = vmatmul.mubr.f32.gmra.mrb[0].mxu0 %v294
      %v505 = vpop.f32.mrb[0].mxu0
      %v506 = vadd.f32 0.0, %v505
      %v507 = vpop.f32.mrb[0].mxu0
      %508 = vmatprep.mubr.f32.mxu0 0.0
      %509 = vmatmul.mubr.f32.gmra.mrb[0].mxu0 %v297
      %v510 = vpop.f32.mrb[0].mxu0
      %v511 = vadd.f32 0.0, %v510
      %v512 = vpop.f32.mrb[0].mxu0
      %513 = vmatprep.mubr.f32.mxu0 0.0
      %514 = vmatmul.mubr.f32.gmra.mrb[0].mxu0 %v300
      %v515 = vpop.f32.mrb[0].mxu0
      %v516 = vadd.f32 0.0, %v515
      %v517 = vpop.f32.mrb[0].mxu0
      %518 = vmatprep.mubr.f32.mxu0 0.0
      %519 = vmatmul.mubr.f32.gmra.mrb[0].mxu0 %v303
      %v520 = vpop.f32.mrb[0].mxu0
      %v521 = vadd.f32 0.0, %v520
      %v522 = vpop.f32.mrb[0].mxu0
      %523 = vmatprep.mubr.f32.mxu0 0.0
      %524 = vmatmul.mubr.f32.gmra.mrb[0].mxu0 %v306
      %v525 = vpop.f32.mrb[0].mxu0
      %v526 = vadd.f32 0.0, %v525
      %v527 = vpop.f32.mrb[0].mxu0
      %528 = vmatprep.mubr.f32.mxu0 0.0
      %529 = vmatmul.mubr.f32.gmra.mrb[0].mxu0 %v309
      %v530 = vpop.f32.mrb[0].mxu0
      %v531 = vadd.f32 0.0, %v530
      %v532 = vpop.f32.mrb[0].mxu0
      %533 = vmatprep.mubr.f32.mxu0 0.0
      %534 = vmatmul.mubr.f32.gmra.mrb[0].mxu0 %v312
      %v535 = vpop.f32.mrb[0].mxu0
      %v536 = vadd.f32 0.0, %v535
      %v537 = vpop.f32.mrb[0].mxu0
      %538 = vmatprep.mubr.f32.mxu0 0.0
      %539 = vmatmul.mubr.f32.gmra.mrb[0].mxu0 %v315
      %v540 = vpop.f32.mrb[0].mxu0
      %v541 = vadd.f32 0.0, %v540
      %v542 = vpop.f32.mrb[0].mxu0
      %543 = vmatprep.mubr.f32.mxu0 0.0
      %544 = vmatmul.mubr.f32.gmra.mrb[0].mxu0 %v318
      %v545 = vpop.f32.mrb[0].mxu0
      %v546 = vadd.f32 0.0, %v545
      %v547 = vpop.f32.mrb[0].mxu0
      %548 = vdwg.mxu0
      %v550 = vsel %vm223, %v154, 0
      %v553 = vsel %vm223, %v155, 0
      %v556 = vsel %vm223, %v156, 0
      %v559 = vsel %vm223, %v157, 0
      %v562 = vsel %vm223, %v158, 0
      %v565 = vsel %vm223, %v159, 0
      %v568 = vsel %vm223, %v160, 0
      %v571 = vsel %vm223, %v161, 0
      %v574 = vsel %vm223, %v162, 0
      %v577 = vsel %vm223, %v163, 0
      %v580 = vsel %vm223, %v164, 0
      %v583 = vsel %vm223, %v165, 0
      %v586 = vsel %vm223, %v166, 0
      %v589 = vsel %vm223, %v167, 0
      %v592 = vsel %vm223, %v168, 0
      %v595 = vsel %vm223, %v169, 0
      %v598 = vsel %vm223, %v170, 0
      %v601 = vsel %vm223, %v171, 0
      %v604 = vsel %vm223, %v172, 0
      %v607 = vsel %vm223, %v173, 0
      %v610 = vsel %vm223, %v174, 0
      %v613 = vsel %vm223, %v175, 0
      %v616 = vsel %vm223, %v176, 0
      %v619 = vsel %vm223, %v177, 0
      %v622 = vsel %vm223, %v178, 0
      %v625 = vsel %vm223, %v179, 0
      %v628 = vsel %vm223, %v180, 0
      %v631 = vsel %vm223, %v181, 0
      %v634 = vsel %vm223, %v182, 0
      %v637 = vsel %vm223, %v183, 0
      %v640 = vsel %vm223, %v184, 0
      %v643 = vsel %vm223, %v185, 0
      %v646 = vsel %vm320, %v186, 0
      %648 = vmatprep.subr.mxu0 0.0
      %649 = vmatpush1.msra.mxu0 %v646
      %650 = vmatprep.subr.mxu0 0.0
      %651 = vmatpush1.msra.mxu0 0.0
      %652 = vmatprep.subr.mxu0 0.0
      %653 = vmatpush1.msra.mxu0 0.0
      %654 = vmatprep.subr.mxu0 0.0
      %655 = vmatpush1.msra.mxu0 0.0
      %656 = vmatprep.subr.mxu0 0.0
      %657 = vmatpush1.msra.mxu0 0.0
      %658 = vmatprep.subr.mxu0 0.0
      %659 = vmatpush1.msra.mxu0 0.0
      %660 = vmatprep.subr.mxu0 0.0
      %661 = vmatpush1.msra.mxu0 0.0
      %662 = vmatprep.subr.mxu0 0.0
      %663 = vmatpush1.msra.mxu0 0.0
      %664 = vmatprep.subr.mxu0 0.0
      %665 = vmatpush1.msra.mxu0 0.0
      %666 = vmatprep.subr.mxu0 0.0
      %667 = vmatpush1.msra.mxu0 0.0
      %668 = vmatprep.subr.mxu0 0.0
      %669 = vmatpush1.msra.mxu0 0.0
      %670 = vmatprep.subr.mxu0 0.0
      %671 = vmatpush1.msra.mxu0 0.0
      %672 = vmatprep.subr.mxu0 0.0
      %673 = vmatpush1.msra.mxu0 0.0
      %674 = vmatprep.subr.mxu0 0.0
      %675 = vmatpush1.msra.mxu0 0.0
      %676 = vmatprep.subr.mxu0 0.0
      %677 = vmatpush1.msra.mxu0 0.0
      %678 = vmatprep.subr.mxu0 0.0
      %679 = vmatpush1.msra.mxu0 0.0
      %680 = vmatprep.subr.mxu0 0.0
      %681 = vmatpush1.msra.mxu0 0.0
      %682 = vmatprep.subr.mxu0 0.0
      %683 = vmatpush1.msra.mxu0 0.0
      %684 = vmatprep.subr.mxu0 0.0
      %685 = vmatpush1.msra.mxu0 0.0
      %686 = vmatprep.subr.mxu0 0.0
      %687 = vmatpush1.msra.mxu0 0.0
      %688 = vmatprep.subr.mxu0 0.0
      %689 = vmatpush1.msra.mxu0 0.0
      %690 = vmatprep.subr.mxu0 0.0
      %691 = vmatpush1.msra.mxu0 0.0
      %692 = vmatprep.subr.mxu0 0.0
      %693 = vmatpush1.msra.mxu0 0.0
      %694 = vmatprep.subr.mxu0 0.0
      %695 = vmatpush1.msra.mxu0 0.0
      %696 = vmatprep.subr.mxu0 0.0
      %697 = vmatpush1.msra.mxu0 0.0
      %698 = vmatprep.subr.mxu0 0.0
      %699 = vmatpush1.msra.mxu0 0.0
      %700 = vmatprep.subr.mxu0 0.0
      %701 = vmatpush1.msra.mxu0 0.0
      %702 = vmatprep.subr.mxu0 0.0
      %703 = vmatpush1.msra.mxu0 0.0
      %704 = vmatprep.subr.mxu0 0.0
      %705 = vmatpush1.msra.mxu0 0.0
      %706 = vmatprep.subr.mxu0 0.0
      %707 = vmatpush1.msra.mxu0 0.0
      %708 = vmatprep.subr.mxu0 0.0
      %709 = vmatpush1.msra.mxu0 0.0
      %710 = vmatprep.subr.mxu0 0.0
      %711 = vmatpush1.msra.mxu0 0.0
      %712 = vmatprep.mubr.f32.mxu0 0.0
      %713 = vmatmul.mubr.f32.gmra.mrb[0].mxu0 %v550
      %v714 = vpop.f32.mrb[0].mxu0
      %v715 = vadd.f32 %v391, %v714
      %v716 = vpop.f32.mrb[0].mxu0
      %717 = vmatprep.mubr.f32.mxu0 0.0
      %718 = vmatmul.mubr.f32.gmra.mrb[0].mxu0 %v553
      %v719 = vpop.f32.mrb[0].mxu0
      %v720 = vadd.f32 %v396, %v719
      %v721 = vpop.f32.mrb[0].mxu0
      %722 = vmatprep.mubr.f32.mxu0 0.0
      %723 = vmatmul.mubr.f32.gmra.mrb[0].mxu0 %v556
      %v724 = vpop.f32.mrb[0].mxu0
      %v725 = vadd.f32 %v401, %v724
      %v726 = vpop.f32.mrb[0].mxu0
      %727 = vmatprep.mubr.f32.mxu0 0.0
      %728 = vmatmul.mubr.f32.gmra.mrb[0].mxu0 %v559
      %v729 = vpop.f32.mrb[0].mxu0
      %v730 = vadd.f32 %v406, %v729
      %v731 = vpop.f32.mrb[0].mxu0
      %732 = vmatprep.mubr.f32.mxu0 0.0
      %733 = vmatmul.mubr.f32.gmra.mrb[0].mxu0 %v562
      %v734 = vpop.f32.mrb[0].mxu0
      %v735 = vadd.f32 %v411, %v734
      %v736 = vpop.f32.mrb[0].mxu0
      %737 = vmatprep.mubr.f32.mxu0 0.0
      %738 = vmatmul.mubr.f32.gmra.mrb[0].mxu0 %v565
      %v739 = vpop.f32.mrb[0].mxu0
      %v740 = vadd.f32 %v416, %v739
      %v741 = vpop.f32.mrb[0].mxu0
      %742 = vmatprep.mubr.f32.mxu0 0.0
      %743 = vmatmul.mubr.f32.gmra.mrb[0].mxu0 %v568
      %v744 = vpop.f32.mrb[0].mxu0
      %v745 = vadd.f32 %v421, %v744
      %v746 = vpop.f32.mrb[0].mxu0
      %747 = vmatprep.mubr.f32.mxu0 0.0
      %748 = vmatmul.mubr.f32.gmra.mrb[0].mxu0 %v571
      %v749 = vpop.f32.mrb[0].mxu0
      %v750 = vadd.f32 %v426, %v749
      %v751 = vpop.f32.mrb[0].mxu0
      %752 = vmatprep.mubr.f32.mxu0 0.0
      %753 = vmatmul.mubr.f32.gmra.mrb[0].mxu0 %v574
      %v754 = vpop.f32.mrb[0].mxu0
      %v755 = vadd.f32 %v431, %v754
      %v756 = vpop.f32.mrb[0].mxu0
      %757 = vmatprep.mubr.f32.mxu0 0.0
      %758 = vmatmul.mubr.f32.gmra.mrb[0].mxu0 %v577
      %v759 = vpop.f32.mrb[0].mxu0
      %v760 = vadd.f32 %v436, %v759
      %v761 = vpop.f32.mrb[0].mxu0
      %762 = vmatprep.mubr.f32.mxu0 0.0
      %763 = vmatmul.mubr.f32.gmra.mrb[0].mxu0 %v580
      %v764 = vpop.f32.mrb[0].mxu0
      %v765 = vadd.f32 %v441, %v764
      %v766 = vpop.f32.mrb[0].mxu0
      %767 = vmatprep.mubr.f32.mxu0 0.0
      %768 = vmatmul.mubr.f32.gmra.mrb[0].mxu0 %v583
      %v769 = vpop.f32.mrb[0].mxu0
      %v770 = vadd.f32 %v446, %v769
      %v771 = vpop.f32.mrb[0].mxu0
      %772 = vmatprep.mubr.f32.mxu0 0.0
      %773 = vmatmul.mubr.f32.gmra.mrb[0].mxu0 %v586
      %v774 = vpop.f32.mrb[0].mxu0
      %v775 = vadd.f32 %v451, %v774
      %v776 = vpop.f32.mrb[0].mxu0
      %777 = vmatprep.mubr.f32.mxu0 0.0
      %778 = vmatmul.mubr.f32.gmra.mrb[0].mxu0 %v589
      %v779 = vpop.f32.mrb[0].mxu0
      %v780 = vadd.f32 %v456, %v779
      %v781 = vpop.f32.mrb[0].mxu0
      %782 = vmatprep.mubr.f32.mxu0 0.0
      %783 = vmatmul.mubr.f32.gmra.mrb[0].mxu0 %v592
      %v784 = vpop.f32.mrb[0].mxu0
      %v785 = vadd.f32 %v461, %v784
      %v786 = vpop.f32.mrb[0].mxu0
      %787 = vmatprep.mubr.f32.mxu0 0.0
      %788 = vmatmul.mubr.f32.gmra.mrb[0].mxu0 %v595
      %v789 = vpop.f32.mrb[0].mxu0
      %v790 = vadd.f32 %v466, %v789
      %v791 = vpop.f32.mrb[0].mxu0
      %792 = vmatprep.mubr.f32.mxu0 0.0
      %793 = vmatmul.mubr.f32.gmra.mrb[0].mxu0 %v598
      %v794 = vpop.f32.mrb[0].mxu0
      %v795 = vadd.f32 %v471, %v794
      %v796 = vpop.f32.mrb[0].mxu0
      %797 = vmatprep.mubr.f32.mxu0 0.0
      %798 = vmatmul.mubr.f32.gmra.mrb[0].mxu0 %v601
      %v799 = vpop.f32.mrb[0].mxu0
      %v800 = vadd.f32 %v476, %v799
      %v801 = vpop.f32.mrb[0].mxu0
      %802 = vmatprep.mubr.f32.mxu0 0.0
      %803 = vmatmul.mubr.f32.gmra.mrb[0].mxu0 %v604
      %v804 = vpop.f32.mrb[0].mxu0
      %v805 = vadd.f32 %v481, %v804
      %v806 = vpop.f32.mrb[0].mxu0
      %807 = vmatprep.mubr.f32.mxu0 0.0
      %808 = vmatmul.mubr.f32.gmra.mrb[0].mxu0 %v607
      %v809 = vpop.f32.mrb[0].mxu0
      %v810 = vadd.f32 %v486, %v809
      %v811 = vpop.f32.mrb[0].mxu0
      %812 = vmatprep.mubr.f32.mxu0 0.0
      %813 = vmatmul.mubr.f32.gmra.mrb[0].mxu0 %v610
      %v814 = vpop.f32.mrb[0].mxu0
      %v815 = vadd.f32 %v491, %v814
      %v816 = vpop.f32.mrb[0].mxu0
      %817 = vmatprep.mubr.f32.mxu0 0.0
      %818 = vmatmul.mubr.f32.gmra.mrb[0].mxu0 %v613
      %v819 = vpop.f32.mrb[0].mxu0
      %v820 = vadd.f32 %v496, %v819
      %v821 = vpop.f32.mrb[0].mxu0
      %822 = vmatprep.mubr.f32.mxu0 0.0
      %823 = vmatmul.mubr.f32.gmra.mrb[0].mxu0 %v616
      %v824 = vpop.f32.mrb[0].mxu0
      %v825 = vadd.f32 %v501, %v824
      %v826 = vpop.f32.mrb[0].mxu0
      %827 = vmatprep.mubr.f32.mxu0 0.0
      %828 = vmatmul.mubr.f32.gmra.mrb[0].mxu0 %v619
      %v829 = vpop.f32.mrb[0].mxu0
      %v830 = vadd.f32 %v506, %v829
      %v831 = vpop.f32.mrb[0].mxu0
      %832 = vmatprep.mubr.f32.mxu0 0.0
      %833 = vmatmul.mubr.f32.gmra.mrb[0].mxu0 %v622
      %v834 = vpop.f32.mrb[0].mxu0
      %v835 = vadd.f32 %v511, %v834
      %v836 = vpop.f32.mrb[0].mxu0
      %837 = vmatprep.mubr.f32.mxu0 0.0
      %838 = vmatmul.mubr.f32.gmra.mrb[0].mxu0 %v625
      %v839 = vpop.f32.mrb[0].mxu0
      %v840 = vadd.f32 %v516, %v839
      %v841 = vpop.f32.mrb[0].mxu0
      %842 = vmatprep.mubr.f32.mxu0 0.0
      %843 = vmatmul.mubr.f32.gmra.mrb[0].mxu0 %v628
      %v844 = vpop.f32.mrb[0].mxu0
      %v845 = vadd.f32 %v521, %v844
      %v846 = vpop.f32.mrb[0].mxu0
      %847 = vmatprep.mubr.f32.mxu0 0.0
      %848 = vmatmul.mubr.f32.gmra.mrb[0].mxu0 %v631
      %v849 = vpop.f32.mrb[0].mxu0
      %v850 = vadd.f32 %v526, %v849
      %v851 = vpop.f32.mrb[0].mxu0
      %852 = vmatprep.mubr.f32.mxu0 0.0
      %853 = vmatmul.mubr.f32.gmra.mrb[0].mxu0 %v634
      %v854 = vpop.f32.mrb[0].mxu0
      %v855 = vadd.f32 %v531, %v854
      %v856 = vpop.f32.mrb[0].mxu0
      %857 = vmatprep.mubr.f32.mxu0 0.0
      %858 = vmatmul.mubr.f32.gmra.mrb[0].mxu0 %v637
      %v859 = vpop.f32.mrb[0].mxu0
      %v860 = vadd.f32 %v536, %v859
      %v861 = vpop.f32.mrb[0].mxu0
      %862 = vmatprep.mubr.f32.mxu0 0.0
      %863 = vmatmul.mubr.f32.gmra.mrb[0].mxu0 %v640
      %v864 = vpop.f32.mrb[0].mxu0
      %v865 = vadd.f32 %v541, %v864
      %v866 = vpop.f32.mrb[0].mxu0
      %867 = vmatprep.mubr.f32.mxu0 0.0
      %868 = vmatmul.mubr.f32.gmra.mrb[0].mxu0 %v643
      %v869 = vpop.f32.mrb[0].mxu0
      %v870 = vadd.f32 %v546, %v869
      %v871 = vpop.f32.mrb[0].mxu0
      %872 = vdwg.mxu0
      %s873 = sadd.s32 %s152, 2
      %s874 = scalar_lea.vmem %s0, %s873
      %v875 = vld [vmem:[%s874] sm:$0xff]
      %v876 = vld [vmem:[%s874 + $0x8] sm:$0xff]
      %v877 = vld [vmem:[%s874 + $0x10] sm:$0xff]
      %v878 = vld [vmem:[%s874 + $0x18] sm:$0xff]
      %v879 = vld [vmem:[%s874 + $0x20] sm:$0xff]
      %v880 = vld [vmem:[%s874 + $0x28] sm:$0xff]
      %v881 = vld [vmem:[%s874 + $0x30] sm:$0xff]
      %v882 = vld [vmem:[%s874 + $0x38] sm:$0xff]
      %v883 = vld [vmem:[%s874 + $0x40] sm:$0xff]
      %v884 = vld [vmem:[%s874 + $0x48] sm:$0xff]
      %v885 = vld [vmem:[%s874 + $0x50] sm:$0xff]
      %v886 = vld [vmem:[%s874 + $0x58] sm:$0xff]
      %v887 = vld [vmem:[%s874 + $0x60] sm:$0xff]
      %v888 = vld [vmem:[%s874 + $0x68] sm:$0xff]
      %v889 = vld [vmem:[%s874 + $0x70] sm:$0xff]
      %v890 = vld [vmem:[%s874 + $0x78] sm:$0xff]
      %v891 = vld [vmem:[%s874 + $0x80] sm:$0xff]
      %v892 = vld [vmem:[%s874 + $0x88] sm:$0xff]
      %v893 = vld [vmem:[%s874 + $0x90] sm:$0xff]
      %v894 = vld [vmem:[%s874 + $0x98] sm:$0xff]
      %v895 = vld [vmem:[%s874 + $0xa0] sm:$0xff]
      %v896 = vld [vmem:[%s874 + $0xa8] sm:$0xff]
      %v897 = vld [vmem:[%s874 + $0xb0] sm:$0xff]
      %v898 = vld [vmem:[%s874 + $0xb8] sm:$0xff]
      %v899 = vld [vmem:[%s874 + $0xc0] sm:$0xff]
      %v900 = vld [vmem:[%s874 + $0xc8] sm:$0xff]
      %v901 = vld [vmem:[%s874 + $0xd0] sm:$0xff]
      %v902 = vld [vmem:[%s874 + $0xd8] sm:$0xff]
      %v903 = vld [vmem:[%s874 + $0xe0] sm:$0xff]
      %v904 = vld [vmem:[%s874 + $0xe8] sm:$0xff]
      %v905 = vld [vmem:[%s874 + $0xf0] sm:$0xff]
      %v906 = vld [vmem:[%s874 + $0xf8] sm:$0xff]
      %s907 = scalar_lea.vmem %s1, 8
      %v908 = vld [vmem:[%s907] sm:$0x7]
      %v910 = vsel %vm223, %v875, 0
      %v913 = vsel %vm223, %v876, 0
      %v916 = vsel %vm223, %v877, 0
      %v919 = vsel %vm223, %v878, 0
      %v922 = vsel %vm223, %v879, 0
      %v925 = vsel %vm223, %v880, 0
      %v928 = vsel %vm223, %v881, 0
      %v931 = vsel %vm223, %v882, 0
      %v934 = vsel %vm223, %v883, 0
      %v937 = vsel %vm223, %v884, 0
      %v940 = vsel %vm223, %v885, 0
      %v943 = vsel %vm223, %v886, 0
      %v946 = vsel %vm223, %v887, 0
      %v949 = vsel %vm223, %v888, 0
      %v952 = vsel %vm223, %v889, 0
      %v955 = vsel %vm223, %v890, 0
      %v958 = vsel %vm223, %v891, 0
      %v961 = vsel %vm223, %v892, 0
      %v964 = vsel %vm223, %v893, 0
      %v967 = vsel %vm223, %v894, 0
      %v970 = vsel %vm223, %v895, 0
      %v973 = vsel %vm223, %v896, 0
      %v976 = vsel %vm223, %v897, 0
      %v979 = vsel %vm223, %v898, 0
      %v982 = vsel %vm223, %v899, 0
      %v985 = vsel %vm223, %v900, 0
      %v988 = vsel %vm223, %v901, 0
      %v991 = vsel %vm223, %v902, 0
      %v994 = vsel %vm223, %v903, 0
      %v997 = vsel %vm223, %v904, 0
      %v1000 = vsel %vm223, %v905, 0
      %v1003 = vsel %vm223, %v906, 0
      %v1006 = vsel %vm320, %v908, 0
      %1008 = vmatprep.subr.mxu0 0.0
      %1009 = vmatpush1.msra.mxu0 %v1006
      %1010 = vmatprep.subr.mxu0 0.0
      %1011 = vmatpush1.msra.mxu0 0.0
      %1012 = vmatprep.subr.mxu0 0.0
      %1013 = vmatpush1.msra.mxu0 0.0
      %1014 = vmatprep.subr.mxu0 0.0
      %1015 = vmatpush1.msra.mxu0 0.0
      %1016 = vmatprep.subr.mxu0 0.0
      %1017 = vmatpush1.msra.mxu0 0.0
      %1018 = vmatprep.subr.mxu0 0.0
      %1019 = vmatpush1.msra.mxu0 0.0
      %1020 = vmatprep.subr.mxu0 0.0
      %1021 = vmatpush1.msra.mxu0 0.0
      %1022 = vmatprep.subr.mxu0 0.0
      %1023 = vmatpush1.msra.mxu0 0.0
      %1024 = vmatprep.subr.mxu0 0.0
      %1025 = vmatpush1.msra.mxu0 0.0
      %1026 = vmatprep.subr.mxu0 0.0
      %1027 = vmatpush1.msra.mxu0 0.0
      %1028 = vmatprep.subr.mxu0 0.0
      %1029 = vmatpush1.msra.mxu0 0.0
      %1030 = vmatprep.subr.mxu0 0.0
      %1031 = vmatpush1.msra.mxu0 0.0
      %1032 = vmatprep.subr.mxu0 0.0
      %1033 = vmatpush1.msra.mxu0 0.0
      %1034 = vmatprep.subr.mxu0 0.0
      %1035 = vmatpush1.msra.mxu0 0.0
      %1036 = vmatprep.subr.mxu0 0.0
      %1037 = vmatpush1.msra.mxu0 0.0
      %1038 = vmatprep.subr.mxu0 0.0
      %1039 = vmatpush1.msra.mxu0 0.0
      %1040 = vmatprep.subr.mxu0 0.0
      %1041 = vmatpush1.msra.mxu0 0.0
      %1042 = vmatprep.subr.mxu0 0.0
      %1043 = vmatpush1.msra.mxu0 0.0
      %1044 = vmatprep.subr.mxu0 0.0
      %1045 = vmatpush1.msra.mxu0 0.0
      %1046 = vmatprep.subr.mxu0 0.0
      %1047 = vmatpush1.msra.mxu0 0.0
      %1048 = vmatprep.subr.mxu0 0.0
      %1049 = vmatpush1.msra.mxu0 0.0
      %1050 = vmatprep.subr.mxu0 0.0
      %1051 = vmatpush1.msra.mxu0 0.0
      %1052 = vmatprep.subr.mxu0 0.0
      %1053 = vmatpush1.msra.mxu0 0.0
      %1054 = vmatprep.subr.mxu0 0.0
      %1055 = vmatpush1.msra.mxu0 0.0
      %1056 = vmatprep.subr.mxu0 0.0
      %1057 = vmatpush1.msra.mxu0 0.0
      %1058 = vmatprep.subr.mxu0 0.0
      %1059 = vmatpush1.msra.mxu0 0.0
      %1060 = vmatprep.subr.mxu0 0.0
      %1061 = vmatpush1.msra.mxu0 0.0
      %1062 = vmatprep.subr.mxu0 0.0
      %1063 = vmatpush1.msra.mxu0 0.0
      %1064 = vmatprep.subr.mxu0 0.0
      %1065 = vmatpush1.msra.mxu0 0.0
      %1066 = vmatprep.subr.mxu0 0.0
      %1067 = vmatpush1.msra.mxu0 0.0
      %1068 = vmatprep.subr.mxu0 0.0
      %1069 = vmatpush1.msra.mxu0 0.0
      %1070 = vmatprep.subr.mxu0 0.0
      %1071 = vmatpush1.msra.mxu0 0.0
      %1072 = vmatprep.mubr.f32.mxu0 0.0
      %1073 = vmatmul.mubr.f32.gmra.mrb[0].mxu0 %v910
      %v1074 = vpop.f32.mrb[0].mxu0
      %v1075 = vadd.f32 0.0, %v1074
      %v1076 = vpop.f32.mrb[0].mxu0
      %1077 = vmatprep.mubr.f32.mxu0 0.0
      %1078 = vmatmul.mubr.f32.gmra.mrb[0].mxu0 %v913
      %v1079 = vpop.f32.mrb[0].mxu0
      %v1080 = vadd.f32 0.0, %v1079
      %v1081 = vpop.f32.mrb[0].mxu0
      %1082 = vmatprep.mubr.f32.mxu0 0.0
      %1083 = vmatmul.mubr.f32.gmra.mrb[0].mxu0 %v916
      %v1084 = vpop.f32.mrb[0].mxu0
      %v1085 = vadd.f32 0.0, %v1084
      %v1086 = vpop.f32.mrb[0].mxu0
      %1087 = vmatprep.mubr.f32.mxu0 0.0
      %1088 = vmatmul.mubr.f32.gmra.mrb[0].mxu0 %v919
      %v1089 = vpop.f32.mrb[0].mxu0
      %v1090 = vadd.f32 0.0, %v1089
      %v1091 = vpop.f32.mrb[0].mxu0
      %1092 = vmatprep.mubr.f32.mxu0 0.0
      %1093 = vmatmul.mubr.f32.gmra.mrb[0].mxu0 %v922
      %v1094 = vpop.f32.mrb[0].mxu0
      %v1095 = vadd.f32 0.0, %v1094
      %v1096 = vpop.f32.mrb[0].mxu0
      %1097 = vmatprep.mubr.f32.mxu0 0.0
      %1098 = vmatmul.mubr.f32.gmra.mrb[0].mxu0 %v925
      %v1099 = vpop.f32.mrb[0].mxu0
      %v1100 = vadd.f32 0.0, %v1099
      %v1101 = vpop.f32.mrb[0].mxu0
      %1102 = vmatprep.mubr.f32.mxu0 0.0
      %1103 = vmatmul.mubr.f32.gmra.mrb[0].mxu0 %v928
      %v1104 = vpop.f32.mrb[0].mxu0
      %v1105 = vadd.f32 0.0, %v1104
      %v1106 = vpop.f32.mrb[0].mxu0
      %1107 = vmatprep.mubr.f32.mxu0 0.0
      %1108 = vmatmul.mubr.f32.gmra.mrb[0].mxu0 %v931
      %v1109 = vpop.f32.mrb[0].mxu0
      %v1110 = vadd.f32 0.0, %v1109
      %v1111 = vpop.f32.mrb[0].mxu0
      %1112 = vmatprep.mubr.f32.mxu0 0.0
      %1113 = vmatmul.mubr.f32.gmra.mrb[0].mxu0 %v934
      %v1114 = vpop.f32.mrb[0].mxu0
      %v1115 = vadd.f32 0.0, %v1114
      %v1116 = vpop.f32.mrb[0].mxu0
      %1117 = vmatprep.mubr.f32.mxu0 0.0
      %1118 = vmatmul.mubr.f32.gmra.mrb[0].mxu0 %v937
      %v1119 = vpop.f32.mrb[0].mxu0
      %v1120 = vadd.f32 0.0, %v1119
      %v1121 = vpop.f32.mrb[0].mxu0
      %1122 = vmatprep.mubr.f32.mxu0 0.0
      %1123 = vmatmul.mubr.f32.gmra.mrb[0].mxu0 %v940
      %v1124 = vpop.f32.mrb[0].mxu0
      %v1125 = vadd.f32 0.0, %v1124
      %v1126 = vpop.f32.mrb[0].mxu0
      %1127 = vmatprep.mubr.f32.mxu0 0.0
      %1128 = vmatmul.mubr.f32.gmra.mrb[0].mxu0 %v943
      %v1129 = vpop.f32.mrb[0].mxu0
      %v1130 = vadd.f32 0.0, %v1129
      %v1131 = vpop.f32.mrb[0].mxu0
      %1132 = vmatprep.mubr.f32.mxu0 0.0
      %1133 = vmatmul.mubr.f32.gmra.mrb[0].mxu0 %v946
      %v1134 = vpop.f32.mrb[0].mxu0
      %v1135 = vadd.f32 0.0, %v1134
      %v1136 = vpop.f32.mrb[0].mxu0
      %1137 = vmatprep.mubr.f32.mxu0 0.0
      %1138 = vmatmul.mubr.f32.gmra.mrb[0].mxu0 %v949
      %v1139 = vpop.f32.mrb[0].mxu0
      %v1140 = vadd.f32 0.0, %v1139
      %v1141 = vpop.f32.mrb[0].mxu0
      %1142 = vmatprep.mubr.f32.mxu0 0.0
      %1143 = vmatmul.mubr.f32.gmra.mrb[0].mxu0 %v952
      %v1144 = vpop.f32.mrb[0].mxu0
      %v1145 = vadd.f32 0.0, %v1144
      %v1146 = vpop.f32.mrb[0].mxu0
      %1147 = vmatprep.mubr.f32.mxu0 0.0
      %1148 = vmatmul.mubr.f32.gmra.mrb[0].mxu0 %v955
      %v1149 = vpop.f32.mrb[0].mxu0
      %v1150 = vadd.f32 0.0, %v1149
      %v1151 = vpop.f32.mrb[0].mxu0
      %1152 = vmatprep.mubr.f32.mxu0 0.0
      %1153 = vmatmul.mubr.f32.gmra.mrb[0].mxu0 %v958
      %v1154 = vpop.f32.mrb[0].mxu0
      %v1155 = vadd.f32 0.0, %v1154
      %v1156 = vpop.f32.mrb[0].mxu0
      %1157 = vmatprep.mubr.f32.mxu0 0.0
      %1158 = vmatmul.mubr.f32.gmra.mrb[0].mxu0 %v961
      %v1159 = vpop.f32.mrb[0].mxu0
      %v1160 = vadd.f32 0.0, %v1159
      %v1161 = vpop.f32.mrb[0].mxu0
      %1162 = vmatprep.mubr.f32.mxu0 0.0
      %1163 = vmatmul.mubr.f32.gmra.mrb[0].mxu0 %v964
      %v1164 = vpop.f32.mrb[0].mxu0
      %v1165 = vadd.f32 0.0, %v1164
      %v1166 = vpop.f32.mrb[0].mxu0
      %1167 = vmatprep.mubr.f32.mxu0 0.0
      %1168 = vmatmul.mubr.f32.gmra.mrb[0].mxu0 %v967
      %v1169 = vpop.f32.mrb[0].mxu0
      %v1170 = vadd.f32 0.0, %v1169
      %v1171 = vpop.f32.mrb[0].mxu0
      %1172 = vmatprep.mubr.f32.mxu0 0.0
      %1173 = vmatmul.mubr.f32.gmra.mrb[0].mxu0 %v970
      %v1174 = vpop.f32.mrb[0].mxu0
      %v1175 = vadd.f32 0.0, %v1174
      %v1176 = vpop.f32.mrb[0].mxu0
      %1177 = vmatprep.mubr.f32.mxu0 0.0
      %1178 = vmatmul.mubr.f32.gmra.mrb[0].mxu0 %v973
      %v1179 = vpop.f32.mrb[0].mxu0
      %v1180 = vadd.f32 0.0, %v1179
      %v1181 = vpop.f32.mrb[0].mxu0
      %1182 = vmatprep.mubr.f32.mxu0 0.0
      %1183 = vmatmul.mubr.f32.gmra.mrb[0].mxu0 %v976
      %v1184 = vpop.f32.mrb[0].mxu0
      %v1185 = vadd.f32 0.0, %v1184
      %v1186 = vpop.f32.mrb[0].mxu0
      %1187 = vmatprep.mubr.f32.mxu0 0.0
      %1188 = vmatmul.mubr.f32.gmra.mrb[0].mxu0 %v979
      %v1189 = vpop.f32.mrb[0].mxu0
      %v1190 = vadd.f32 0.0, %v1189
      %v1191 = vpop.f32.mrb[0].mxu0
      %1192 = vmatprep.mubr.f32.mxu0 0.0
      %1193 = vmatmul.mubr.f32.gmra.mrb[0].mxu0 %v982
      %v1194 = vpop.f32.mrb[0].mxu0
      %v1195 = vadd.f32 0.0, %v1194
      %v1196 = vpop.f32.mrb[0].mxu0
      %1197 = vmatprep.mubr.f32.mxu0 0.0
      %1198 = vmatmul.mubr.f32.gmra.mrb[0].mxu0 %v985
      %v1199 = vpop.f32.mrb[0].mxu0
      %v1200 = vadd.f32 0.0, %v1199
      %v1201 = vpop.f32.mrb[0].mxu0
      %1202 = vmatprep.mubr.f32.mxu0 0.0
      %1203 = vmatmul.mubr.f32.gmra.mrb[0].mxu0 %v988
      %v1204 = vpop.f32.mrb[0].mxu0
      %v1205 = vadd.f32 0.0, %v1204
      %v1206 = vpop.f32.mrb[0].mxu0
      %1207 = vmatprep.mubr.f32.mxu0 0.0
      %1208 = vmatmul.mubr.f32.gmra.mrb[0].mxu0 %v991
      %v1209 = vpop.f32.mrb[0].mxu0
      %v1210 = vadd.f32 0.0, %v1209
      %v1211 = vpop.f32.mrb[0].mxu0
      %1212 = vmatprep.mubr.f32.mxu0 0.0
      %1213 = vmatmul.mubr.f32.gmra.mrb[0].mxu0 %v994
      %v1214 = vpop.f32.mrb[0].mxu0
      %v1215 = vadd.f32 0.0, %v1214
      %v1216 = vpop.f32.mrb[0].mxu0
      %1217 = vmatprep.mubr.f32.mxu0 0.0
      %1218 = vmatmul.mubr.f32.gmra.mrb[0].mxu0 %v997
      %v1219 = vpop.f32.mrb[0].mxu0
      %v1220 = vadd.f32 0.0, %v1219
      %v1221 = vpop.f32.mrb[0].mxu0
      %1222 = vmatprep.mubr.f32.mxu0 0.0
      %1223 = vmatmul.mubr.f32.gmra.mrb[0].mxu0 %v1000
      %v1224 = vpop.f32.mrb[0].mxu0
      %v1225 = vadd.f32 0.0, %v1224
      %v1226 = vpop.f32.mrb[0].mxu0
      %1227 = vmatprep.mubr.f32.mxu0 0.0
      %1228 = vmatmul.mubr.f32.gmra.mrb[0].mxu0 %v1003
      %v1229 = vpop.f32.mrb[0].mxu0
      %v1230 = vadd.f32 0.0, %v1229
      %v1231 = vpop.f32.mrb[0].mxu0
      %1232 = vdwg.mxu0
      %v1233 = vadd.f32 %v715, %v1075
      %v1234 = vadd.f32 %v720, %v1080
      %v1235 = vadd.f32 %v725, %v1085
      %v1236 = vadd.f32 %v730, %v1090
      %v1237 = vadd.f32 %v735, %v1095
      %v1238 = vadd.f32 %v740, %v1100
      %v1239 = vadd.f32 %v745, %v1105
      %v1240 = vadd.f32 %v750, %v1110
      %v1241 = vadd.f32 %v755, %v1115
      %v1242 = vadd.f32 %v760, %v1120
      %v1243 = vadd.f32 %v765, %v1125
      %v1244 = vadd.f32 %v770, %v1130
      %v1245 = vadd.f32 %v775, %v1135
      %v1246 = vadd.f32 %v780, %v1140
      %v1247 = vadd.f32 %v785, %v1145
      %v1248 = vadd.f32 %v790, %v1150
      %v1249 = vadd.f32 %v795, %v1155
      %v1250 = vadd.f32 %v800, %v1160
      %v1251 = vadd.f32 %v805, %v1165
      %v1252 = vadd.f32 %v810, %v1170
      %v1253 = vadd.f32 %v815, %v1175
      %v1254 = vadd.f32 %v820, %v1180
      %v1255 = vadd.f32 %v825, %v1185
      %v1256 = vadd.f32 %v830, %v1190
      %v1257 = vadd.f32 %v835, %v1195
      %v1258 = vadd.f32 %v840, %v1200
      %v1259 = vadd.f32 %v845, %v1205
      %v1260 = vadd.f32 %v850, %v1210
      %v1261 = vadd.f32 %v855, %v1215
      %v1262 = vadd.f32 %v860, %v1220
      %v1263 = vadd.f32 %v865, %v1225
      %v1264 = vadd.f32 %v870, %v1230
      %s1265 = sadd.s32 %s152, 18
      %s1266 = scalar_lea.vmem %s0, %s1265
      %v1267 = vld [vmem:[%s1266] sm:$0xff]
      %v1268 = vld [vmem:[%s1266 + $0x8] sm:$0xff]
      %v1269 = vld [vmem:[%s1266 + $0x10] sm:$0xff]
      %v1270 = vld [vmem:[%s1266 + $0x18] sm:$0xff]
      %v1271 = vld [vmem:[%s1266 + $0x20] sm:$0xff]
      %v1272 = vld [vmem:[%s1266 + $0x28] sm:$0xff]
      %v1273 = vld [vmem:[%s1266 + $0x30] sm:$0xff]
      %v1274 = vld [vmem:[%s1266 + $0x38] sm:$0xff]
      %v1275 = vld [vmem:[%s1266 + $0x40] sm:$0xff]
      %v1276 = vld [vmem:[%s1266 + $0x48] sm:$0xff]
      %v1277 = vld [vmem:[%s1266 + $0x50] sm:$0xff]
      %v1278 = vld [vmem:[%s1266 + $0x58] sm:$0xff]
      %v1279 = vld [vmem:[%s1266 + $0x60] sm:$0xff]
      %v1280 = vld [vmem:[%s1266 + $0x68] sm:$0xff]
      %v1281 = vld [vmem:[%s1266 + $0x70] sm:$0xff]
      %v1282 = vld [vmem:[%s1266 + $0x78] sm:$0xff]
      %v1283 = vld [vmem:[%s1266 + $0x80] sm:$0xff]
      %v1284 = vld [vmem:[%s1266 + $0x88] sm:$0xff]
      %v1285 = vld [vmem:[%s1266 + $0x90] sm:$0xff]
      %v1286 = vld [vmem:[%s1266 + $0x98] sm:$0xff]
      %v1287 = vld [vmem:[%s1266 + $0xa0] sm:$0xff]
      %v1288 = vld [vmem:[%s1266 + $0xa8] sm:$0xff]
      %v1289 = vld [vmem:[%s1266 + $0xb0] sm:$0xff]
      %v1290 = vld [vmem:[%s1266 + $0xb8] sm:$0xff]
      %v1291 = vld [vmem:[%s1266 + $0xc0] sm:$0xff]
      %v1292 = vld [vmem:[%s1266 + $0xc8] sm:$0xff]
      %v1293 = vld [vmem:[%s1266 + $0xd0] sm:$0xff]
      %v1294 = vld [vmem:[%s1266 + $0xd8] sm:$0xff]
      %v1295 = vld [vmem:[%s1266 + $0xe0] sm:$0xff]
      %v1296 = vld [vmem:[%s1266 + $0xe8] sm:$0xff]
      %v1297 = vld [vmem:[%s1266 + $0xf0] sm:$0xff]
      %v1298 = vld [vmem:[%s1266 + $0xf8] sm:$0xff]
      %s1299 = scalar_lea.vmem %s1, 12
      %v1300 = vld [vmem:[%s1299] sm:$0x7]
      %v1302 = vsel %vm223, %v1267, 0
      %v1305 = vsel %vm223, %v1268, 0
      %v1308 = vsel %vm223, %v1269, 0
      %v1311 = vsel %vm223, %v1270, 0
      %v1314 = vsel %vm223, %v1271, 0
      %v1317 = vsel %vm223, %v1272, 0
      %v1320 = vsel %vm223, %v1273, 0
      %v1323 = vsel %vm223, %v1274, 0
      %v1326 = vsel %vm223, %v1275, 0
      %v1329 = vsel %vm223, %v1276, 0
      %v1332 = vsel %vm223, %v1277, 0
      %v1335 = vsel %vm223, %v1278, 0
      %v1338 = vsel %vm223, %v1279, 0
      %v1341 = vsel %vm223, %v1280, 0
      %v1344 = vsel %vm223, %v1281, 0
      %v1347 = vsel %vm223, %v1282, 0
      %v1350 = vsel %vm223, %v1283, 0
      %v1353 = vsel %vm223, %v1284, 0
      %v1356 = vsel %vm223, %v1285, 0
      %v1359 = vsel %vm223, %v1286, 0
      %v1362 = vsel %vm223, %v1287, 0
      %v1365 = vsel %vm223, %v1288, 0
      %v1368 = vsel %vm223, %v1289, 0
      %v1371 = vsel %vm223, %v1290, 0
      %v1374 = vsel %vm223, %v1291, 0
      %v1377 = vsel %vm223, %v1292, 0
      %v1380 = vsel %vm223, %v1293, 0
      %v1383 = vsel %vm223, %v1294, 0
      %v1386 = vsel %vm223, %v1295, 0
      %v1389 = vsel %vm223, %v1296, 0
      %v1392 = vsel %vm223, %v1297, 0
      %v1395 = vsel %vm223, %v1298, 0
      %v1398 = vsel %vm320, %v1300, 0
      %1400 = vmatprep.subr.mxu0 0.0
      %1401 = vmatpush1.msra.mxu0 %v1398
      %1402 = vmatprep.subr.mxu0 0.0
      %1403 = vmatpush1.msra.mxu0 0.0
      %1404 = vmatprep.subr.mxu0 0.0
      %1405 = vmatpush1.msra.mxu0 0.0
      %1406 = vmatprep.subr.mxu0 0.0
      %1407 = vmatpush1.msra.mxu0 0.0
      %1408 = vmatprep.subr.mxu0 0.0
      %1409 = vmatpush1.msra.mxu0 0.0
      %1410 = vmatprep.subr.mxu0 0.0
      %1411 = vmatpush1.msra.mxu0 0.0
      %1412 = vmatprep.subr.mxu0 0.0
      %1413 = vmatpush1.msra.mxu0 0.0
      %1414 = vmatprep.subr.mxu0 0.0
      %1415 = vmatpush1.msra.mxu0 0.0
      %1416 = vmatprep.subr.mxu0 0.0
      %1417 = vmatpush1.msra.mxu0 0.0
      %1418 = vmatprep.subr.mxu0 0.0
      %1419 = vmatpush1.msra.mxu0 0.0
      %1420 = vmatprep.subr.mxu0 0.0
      %1421 = vmatpush1.msra.mxu0 0.0
      %1422 = vmatprep.subr.mxu0 0.0
      %1423 = vmatpush1.msra.mxu0 0.0
      %1424 = vmatprep.subr.mxu0 0.0
      %1425 = vmatpush1.msra.mxu0 0.0
      %1426 = vmatprep.subr.mxu0 0.0
      %1427 = vmatpush1.msra.mxu0 0.0
      %1428 = vmatprep.subr.mxu0 0.0
      %1429 = vmatpush1.msra.mxu0 0.0
      %1430 = vmatprep.subr.mxu0 0.0
      %1431 = vmatpush1.msra.mxu0 0.0
      %1432 = vmatprep.subr.mxu0 0.0
      %1433 = vmatpush1.msra.mxu0 0.0
      %1434 = vmatprep.subr.mxu0 0.0
      %1435 = vmatpush1.msra.mxu0 0.0
      %1436 = vmatprep.subr.mxu0 0.0
      %1437 = vmatpush1.msra.mxu0 0.0
      %1438 = vmatprep.subr.mxu0 0.0
      %1439 = vmatpush1.msra.mxu0 0.0
      %1440 = vmatprep.subr.mxu0 0.0
      %1441 = vmatpush1.msra.mxu0 0.0
      %1442 = vmatprep.subr.mxu0 0.0
      %1443 = vmatpush1.msra.mxu0 0.0
      %1444 = vmatprep.subr.mxu0 0.0
      %1445 = vmatpush1.msra.mxu0 0.0
      %1446 = vmatprep.subr.mxu0 0.0
      %1447 = vmatpush1.msra.mxu0 0.0
      %1448 = vmatprep.subr.mxu0 0.0
      %1449 = vmatpush1.msra.mxu0 0.0
      %1450 = vmatprep.subr.mxu0 0.0
      %1451 = vmatpush1.msra.mxu0 0.0
      %1452 = vmatprep.subr.mxu0 0.0
      %1453 = vmatpush1.msra.mxu0 0.0
      %1454 = vmatprep.subr.mxu0 0.0
      %1455 = vmatpush1.msra.mxu0 0.0
      %1456 = vmatprep.subr.mxu0 0.0
      %1457 = vmatpush1.msra.mxu0 0.0
      %1458 = vmatprep.subr.mxu0 0.0
      %1459 = vmatpush1.msra.mxu0 0.0
      %1460 = vmatprep.subr.mxu0 0.0
      %1461 = vmatpush1.msra.mxu0 0.0
      %1462 = vmatprep.subr.mxu0 0.0
      %1463 = vmatpush1.msra.mxu0 0.0
      %1464 = vmatprep.mubr.f32.mxu0 0.0
      %1465 = vmatmul.mubr.f32.gmra.mrb[0].mxu0 %v1302
      %v1466 = vpop.f32.mrb[0].mxu0
      %v1467 = vadd.f32 0.0, %v1466
      %v1468 = vpop.f32.mrb[0].mxu0
      %1469 = vmatprep.mubr.f32.mxu0 0.0
      %1470 = vmatmul.mubr.f32.gmra.mrb[0].mxu0 %v1305
      %v1471 = vpop.f32.mrb[0].mxu0
      %v1472 = vadd.f32 0.0, %v1471
      %v1473 = vpop.f32.mrb[0].mxu0
      %1474 = vmatprep.mubr.f32.mxu0 0.0
      %1475 = vmatmul.mubr.f32.gmra.mrb[0].mxu0 %v1308
      %v1476 = vpop.f32.mrb[0].mxu0
      %v1477 = vadd.f32 0.0, %v1476
      %v1478 = vpop.f32.mrb[0].mxu0
      %1479 = vmatprep.mubr.f32.mxu0 0.0
      %1480 = vmatmul.mubr.f32.gmra.mrb[0].mxu0 %v1311
      %v1481 = vpop.f32.mrb[0].mxu0
      %v1482 = vadd.f32 0.0, %v1481
      %v1483 = vpop.f32.mrb[0].mxu0
      %1484 = vmatprep.mubr.f32.mxu0 0.0
      %1485 = vmatmul.mubr.f32.gmra.mrb[0].mxu0 %v1314
      %v1486 = vpop.f32.mrb[0].mxu0
      %v1487 = vadd.f32 0.0, %v1486
      %v1488 = vpop.f32.mrb[0].mxu0
      %1489 = vmatprep.mubr.f32.mxu0 0.0
      %1490 = vmatmul.mubr.f32.gmra.mrb[0].mxu0 %v1317
      %v1491 = vpop.f32.mrb[0].mxu0
      %v1492 = vadd.f32 0.0, %v1491
      %v1493 = vpop.f32.mrb[0].mxu0
      %1494 = vmatprep.mubr.f32.mxu0 0.0
      %1495 = vmatmul.mubr.f32.gmra.mrb[0].mxu0 %v1320
      %v1496 = vpop.f32.mrb[0].mxu0
      %v1497 = vadd.f32 0.0, %v1496
      %v1498 = vpop.f32.mrb[0].mxu0
      %1499 = vmatprep.mubr.f32.mxu0 0.0
      %1500 = vmatmul.mubr.f32.gmra.mrb[0].mxu0 %v1323
      %v1501 = vpop.f32.mrb[0].mxu0
      %v1502 = vadd.f32 0.0, %v1501
      %v1503 = vpop.f32.mrb[0].mxu0
      %1504 = vmatprep.mubr.f32.mxu0 0.0
      %1505 = vmatmul.mubr.f32.gmra.mrb[0].mxu0 %v1326
      %v1506 = vpop.f32.mrb[0].mxu0
      %v1507 = vadd.f32 0.0, %v1506
      %v1508 = vpop.f32.mrb[0].mxu0
      %1509 = vmatprep.mubr.f32.mxu0 0.0
      %1510 = vmatmul.mubr.f32.gmra.mrb[0].mxu0 %v1329
      %v1511 = vpop.f32.mrb[0].mxu0
      %v1512 = vadd.f32 0.0, %v1511
      %v1513 = vpop.f32.mrb[0].mxu0
      %1514 = vmatprep.mubr.f32.mxu0 0.0
      %1515 = vmatmul.mubr.f32.gmra.mrb[0].mxu0 %v1332
      %v1516 = vpop.f32.mrb[0].mxu0
      %v1517 = vadd.f32 0.0, %v1516
      %v1518 = vpop.f32.mrb[0].mxu0
      %1519 = vmatprep.mubr.f32.mxu0 0.0
      %1520 = vmatmul.mubr.f32.gmra.mrb[0].mxu0 %v1335
      %v1521 = vpop.f32.mrb[0].mxu0
      %v1522 = vadd.f32 0.0, %v1521
      %v1523 = vpop.f32.mrb[0].mxu0
      %1524 = vmatprep.mubr.f32.mxu0 0.0
      %1525 = vmatmul.mubr.f32.gmra.mrb[0].mxu0 %v1338
      %v1526 = vpop.f32.mrb[0].mxu0
      %v1527 = vadd.f32 0.0, %v1526
      %v1528 = vpop.f32.mrb[0].mxu0
      %1529 = vmatprep.mubr.f32.mxu0 0.0
      %1530 = vmatmul.mubr.f32.gmra.mrb[0].mxu0 %v1341
      %v1531 = vpop.f32.mrb[0].mxu0
      %v1532 = vadd.f32 0.0, %v1531
      %v1533 = vpop.f32.mrb[0].mxu0
      %1534 = vmatprep.mubr.f32.mxu0 0.0
      %1535 = vmatmul.mubr.f32.gmra.mrb[0].mxu0 %v1344
      %v1536 = vpop.f32.mrb[0].mxu0
      %v1537 = vadd.f32 0.0, %v1536
      %v1538 = vpop.f32.mrb[0].mxu0
      %1539 = vmatprep.mubr.f32.mxu0 0.0
      %1540 = vmatmul.mubr.f32.gmra.mrb[0].mxu0 %v1347
      %v1541 = vpop.f32.mrb[0].mxu0
      %v1542 = vadd.f32 0.0, %v1541
      %v1543 = vpop.f32.mrb[0].mxu0
      %1544 = vmatprep.mubr.f32.mxu0 0.0
      %1545 = vmatmul.mubr.f32.gmra.mrb[0].mxu0 %v1350
      %v1546 = vpop.f32.mrb[0].mxu0
      %v1547 = vadd.f32 0.0, %v1546
      %v1548 = vpop.f32.mrb[0].mxu0
      %1549 = vmatprep.mubr.f32.mxu0 0.0
      %1550 = vmatmul.mubr.f32.gmra.mrb[0].mxu0 %v1353
      %v1551 = vpop.f32.mrb[0].mxu0
      %v1552 = vadd.f32 0.0, %v1551
      %v1553 = vpop.f32.mrb[0].mxu0
      %1554 = vmatprep.mubr.f32.mxu0 0.0
      %1555 = vmatmul.mubr.f32.gmra.mrb[0].mxu0 %v1356
      %v1556 = vpop.f32.mrb[0].mxu0
      %v1557 = vadd.f32 0.0, %v1556
      %v1558 = vpop.f32.mrb[0].mxu0
      %1559 = vmatprep.mubr.f32.mxu0 0.0
      %1560 = vmatmul.mubr.f32.gmra.mrb[0].mxu0 %v1359
      %v1561 = vpop.f32.mrb[0].mxu0
      %v1562 = vadd.f32 0.0, %v1561
      %v1563 = vpop.f32.mrb[0].mxu0
      %1564 = vmatprep.mubr.f32.mxu0 0.0
      %1565 = vmatmul.mubr.f32.gmra.mrb[0].mxu0 %v1362
      %v1566 = vpop.f32.mrb[0].mxu0
      %v1567 = vadd.f32 0.0, %v1566
      %v1568 = vpop.f32.mrb[0].mxu0
      %1569 = vmatprep.mubr.f32.mxu0 0.0
      %1570 = vmatmul.mubr.f32.gmra.mrb[0].mxu0 %v1365
      %v1571 = vpop.f32.mrb[0].mxu0
      %v1572 = vadd.f32 0.0, %v1571
      %v1573 = vpop.f32.mrb[0].mxu0
      %1574 = vmatprep.mubr.f32.mxu0 0.0
      %1575 = vmatmul.mubr.f32.gmra.mrb[0].mxu0 %v1368
      %v1576 = vpop.f32.mrb[0].mxu0
      %v1577 = vadd.f32 0.0, %v1576
      %v1578 = vpop.f32.mrb[0].mxu0
      %1579 = vmatprep.mubr.f32.mxu0 0.0
      %1580 = vmatmul.mubr.f32.gmra.mrb[0].mxu0 %v1371
      %v1581 = vpop.f32.mrb[0].mxu0
      %v1582 = vadd.f32 0.0, %v1581
      %v1583 = vpop.f32.mrb[0].mxu0
      %1584 = vmatprep.mubr.f32.mxu0 0.0
      %1585 = vmatmul.mubr.f32.gmra.mrb[0].mxu0 %v1374
      %v1586 = vpop.f32.mrb[0].mxu0
      %v1587 = vadd.f32 0.0, %v1586
      %v1588 = vpop.f32.mrb[0].mxu0
      %1589 = vmatprep.mubr.f32.mxu0 0.0
      %1590 = vmatmul.mubr.f32.gmra.mrb[0].mxu0 %v1377
      %v1591 = vpop.f32.mrb[0].mxu0
      %v1592 = vadd.f32 0.0, %v1591
      %v1593 = vpop.f32.mrb[0].mxu0
      %1594 = vmatprep.mubr.f32.mxu0 0.0
      %1595 = vmatmul.mubr.f32.gmra.mrb[0].mxu0 %v1380
      %v1596 = vpop.f32.mrb[0].mxu0
      %v1597 = vadd.f32 0.0, %v1596
      %v1598 = vpop.f32.mrb[0].mxu0
      %1599 = vmatprep.mubr.f32.mxu0 0.0
      %1600 = vmatmul.mubr.f32.gmra.mrb[0].mxu0 %v1383
      %v1601 = vpop.f32.mrb[0].mxu0
      %v1602 = vadd.f32 0.0, %v1601
      %v1603 = vpop.f32.mrb[0].mxu0
      %1604 = vmatprep.mubr.f32.mxu0 0.0
      %1605 = vmatmul.mubr.f32.gmra.mrb[0].mxu0 %v1386
      %v1606 = vpop.f32.mrb[0].mxu0
      %v1607 = vadd.f32 0.0, %v1606
      %v1608 = vpop.f32.mrb[0].mxu0
      %1609 = vmatprep.mubr.f32.mxu0 0.0
      %1610 = vmatmul.mubr.f32.gmra.mrb[0].mxu0 %v1389
      %v1611 = vpop.f32.mrb[0].mxu0
      %v1612 = vadd.f32 0.0, %v1611
      %v1613 = vpop.f32.mrb[0].mxu0
      %1614 = vmatprep.mubr.f32.mxu0 0.0
      %1615 = vmatmul.mubr.f32.gmra.mrb[0].mxu0 %v1392
      %v1616 = vpop.f32.mrb[0].mxu0
      %v1617 = vadd.f32 0.0, %v1616
      %v1618 = vpop.f32.mrb[0].mxu0
      %1619 = vmatprep.mubr.f32.mxu0 0.0
      %1620 = vmatmul.mubr.f32.gmra.mrb[0].mxu0 %v1395
      %v1621 = vpop.f32.mrb[0].mxu0
      %v1622 = vadd.f32 0.0, %v1621
      %v1623 = vpop.f32.mrb[0].mxu0
      %1624 = vdwg.mxu0
      %v1625 = vadd.f32 %v1233, %v1467
      %v1626 = vadd.f32 %v1234, %v1472
      %v1627 = vadd.f32 %v1235, %v1477
      %v1628 = vadd.f32 %v1236, %v1482
      %v1629 = vadd.f32 %v1237, %v1487
      %v1630 = vadd.f32 %v1238, %v1492
      %v1631 = vadd.f32 %v1239, %v1497
      %v1632 = vadd.f32 %v1240, %v1502
      %v1633 = vadd.f32 %v1241, %v1507
      %v1634 = vadd.f32 %v1242, %v1512
      %v1635 = vadd.f32 %v1243, %v1517
      %v1636 = vadd.f32 %v1244, %v1522
      %v1637 = vadd.f32 %v1245, %v1527
      %v1638 = vadd.f32 %v1246, %v1532
      %v1639 = vadd.f32 %v1247, %v1537
      %v1640 = vadd.f32 %v1248, %v1542
      %v1641 = vadd.f32 %v1249, %v1547
      %v1642 = vadd.f32 %v1250, %v1552
      %v1643 = vadd.f32 %v1251, %v1557
      %v1644 = vadd.f32 %v1252, %v1562
      %v1645 = vadd.f32 %v1253, %v1567
      %v1646 = vadd.f32 %v1254, %v1572
      %v1647 = vadd.f32 %v1255, %v1577
      %v1648 = vadd.f32 %v1256, %v1582
      %v1649 = vadd.f32 %v1257, %v1587
      %v1650 = vadd.f32 %v1258, %v1592
      %v1651 = vadd.f32 %v1259, %v1597
      %v1652 = vadd.f32 %v1260, %v1602
      %v1653 = vadd.f32 %v1261, %v1607
      %v1654 = vadd.f32 %v1262, %v1612
      %v1655 = vadd.f32 %v1263, %v1617
      %v1656 = vadd.f32 %v1264, %v1622
      %s1657 = sadd.s32 %s152, 19
      %s1658 = scalar_lea.vmem %s0, %s1657
      %v1659 = vld [vmem:[%s1658] sm:$0xff]
      %v1660 = vld [vmem:[%s1658 + $0x8] sm:$0xff]
      %v1661 = vld [vmem:[%s1658 + $0x10] sm:$0xff]
      %v1662 = vld [vmem:[%s1658 + $0x18] sm:$0xff]
      %v1663 = vld [vmem:[%s1658 + $0x20] sm:$0xff]
      %v1664 = vld [vmem:[%s1658 + $0x28] sm:$0xff]
      %v1665 = vld [vmem:[%s1658 + $0x30] sm:$0xff]
      %v1666 = vld [vmem:[%s1658 + $0x38] sm:$0xff]
      %v1667 = vld [vmem:[%s1658 + $0x40] sm:$0xff]
      %v1668 = vld [vmem:[%s1658 + $0x48] sm:$0xff]
      %v1669 = vld [vmem:[%s1658 + $0x50] sm:$0xff]
      %v1670 = vld [vmem:[%s1658 + $0x58] sm:$0xff]
      %v1671 = vld [vmem:[%s1658 + $0x60] sm:$0xff]
      %v1672 = vld [vmem:[%s1658 + $0x68] sm:$0xff]
      %v1673 = vld [vmem:[%s1658 + $0x70] sm:$0xff]
      %v1674 = vld [vmem:[%s1658 + $0x78] sm:$0xff]
      %v1675 = vld [vmem:[%s1658 + $0x80] sm:$0xff]
      %v1676 = vld [vmem:[%s1658 + $0x88] sm:$0xff]
      %v1677 = vld [vmem:[%s1658 + $0x90] sm:$0xff]
      %v1678 = vld [vmem:[%s1658 + $0x98] sm:$0xff]
      %v1679 = vld [vmem:[%s1658 + $0xa0] sm:$0xff]
      %v1680 = vld [vmem:[%s1658 + $0xa8] sm:$0xff]
      %v1681 = vld [vmem:[%s1658 + $0xb0] sm:$0xff]
      %v1682 = vld [vmem:[%s1658 + $0xb8] sm:$0xff]
      %v1683 = vld [vmem:[%s1658 + $0xc0] sm:$0xff]
      %v1684 = vld [vmem:[%s1658 + $0xc8] sm:$0xff]
      %v1685 = vld [vmem:[%s1658 + $0xd0] sm:$0xff]
      %v1686 = vld [vmem:[%s1658 + $0xd8] sm:$0xff]
      %v1687 = vld [vmem:[%s1658 + $0xe0] sm:$0xff]
      %v1688 = vld [vmem:[%s1658 + $0xe8] sm:$0xff]
      %v1689 = vld [vmem:[%s1658 + $0xf0] sm:$0xff]
      %v1690 = vld [vmem:[%s1658 + $0xf8] sm:$0xff]
      %s1691 = scalar_lea.vmem %s1, 16
      %v1692 = vld [vmem:[%s1691] sm:$0x7]
      %v1694 = vsel %vm223, %v1659, 0
      %v1697 = vsel %vm223, %v1660, 0
      %v1700 = vsel %vm223, %v1661, 0
      %v1703 = vsel %vm223, %v1662, 0
      %v1706 = vsel %vm223, %v1663, 0
      %v1709 = vsel %vm223, %v1664, 0
      %v1712 = vsel %vm223, %v1665, 0
      %v1715 = vsel %vm223, %v1666, 0
      %v1718 = vsel %vm223, %v1667, 0
      %v1721 = vsel %vm223, %v1668, 0
      %v1724 = vsel %vm223, %v1669, 0
      %v1727 = vsel %vm223, %v1670, 0
      %v1730 = vsel %vm223, %v1671, 0
      %v1733 = vsel %vm223, %v1672, 0
      %v1736 = vsel %vm223, %v1673, 0
      %v1739 = vsel %vm223, %v1674, 0
      %v1742 = vsel %vm223, %v1675, 0
      %v1745 = vsel %vm223, %v1676, 0
      %v1748 = vsel %vm223, %v1677, 0
      %v1751 = vsel %vm223, %v1678, 0
      %v1754 = vsel %vm223, %v1679, 0
      %v1757 = vsel %vm223, %v1680, 0
      %v1760 = vsel %vm223, %v1681, 0
      %v1763 = vsel %vm223, %v1682, 0
      %v1766 = vsel %vm223, %v1683, 0
      %v1769 = vsel %vm223, %v1684, 0
      %v1772 = vsel %vm223, %v1685, 0
      %v1775 = vsel %vm223, %v1686, 0
      %v1778 = vsel %vm223, %v1687, 0
      %v1781 = vsel %vm223, %v1688, 0
      %v1784 = vsel %vm223, %v1689, 0
      %v1787 = vsel %vm223, %v1690, 0
      %v1790 = vsel %vm320, %v1692, 0
      %1792 = vmatprep.subr.mxu0 0.0
      %1793 = vmatpush1.msra.mxu0 %v1790
      %1794 = vmatprep.subr.mxu0 0.0
      %1795 = vmatpush1.msra.mxu0 0.0
      %1796 = vmatprep.subr.mxu0 0.0
      %1797 = vmatpush1.msra.mxu0 0.0
      %1798 = vmatprep.subr.mxu0 0.0
      %1799 = vmatpush1.msra.mxu0 0.0
      %1800 = vmatprep.subr.mxu0 0.0
      %1801 = vmatpush1.msra.mxu0 0.0
      %1802 = vmatprep.subr.mxu0 0.0
      %1803 = vmatpush1.msra.mxu0 0.0
      %1804 = vmatprep.subr.mxu0 0.0
      %1805 = vmatpush1.msra.mxu0 0.0
      %1806 = vmatprep.subr.mxu0 0.0
      %1807 = vmatpush1.msra.mxu0 0.0
      %1808 = vmatprep.subr.mxu0 0.0
      %1809 = vmatpush1.msra.mxu0 0.0
      %1810 = vmatprep.subr.mxu0 0.0
      %1811 = vmatpush1.msra.mxu0 0.0
      %1812 = vmatprep.subr.mxu0 0.0
      %1813 = vmatpush1.msra.mxu0 0.0
      %1814 = vmatprep.subr.mxu0 0.0
      %1815 = vmatpush1.msra.mxu0 0.0
      %1816 = vmatprep.subr.mxu0 0.0
      %1817 = vmatpush1.msra.mxu0 0.0
      %1818 = vmatprep.subr.mxu0 0.0
      %1819 = vmatpush1.msra.mxu0 0.0
      %1820 = vmatprep.subr.mxu0 0.0
      %1821 = vmatpush1.msra.mxu0 0.0
      %1822 = vmatprep.subr.mxu0 0.0
      %1823 = vmatpush1.msra.mxu0 0.0
      %1824 = vmatprep.subr.mxu0 0.0
      %1825 = vmatpush1.msra.mxu0 0.0
      %1826 = vmatprep.subr.mxu0 0.0
      %1827 = vmatpush1.msra.mxu0 0.0
      %1828 = vmatprep.subr.mxu0 0.0
      %1829 = vmatpush1.msra.mxu0 0.0
      %1830 = vmatprep.subr.mxu0 0.0
      %1831 = vmatpush1.msra.mxu0 0.0
      %1832 = vmatprep.subr.mxu0 0.0
      %1833 = vmatpush1.msra.mxu0 0.0
      %1834 = vmatprep.subr.mxu0 0.0
      %1835 = vmatpush1.msra.mxu0 0.0
      %1836 = vmatprep.subr.mxu0 0.0
      %1837 = vmatpush1.msra.mxu0 0.0
      %1838 = vmatprep.subr.mxu0 0.0
      %1839 = vmatpush1.msra.mxu0 0.0
      %1840 = vmatprep.subr.mxu0 0.0
      %1841 = vmatpush1.msra.mxu0 0.0
      %1842 = vmatprep.subr.mxu0 0.0
      %1843 = vmatpush1.msra.mxu0 0.0
      %1844 = vmatprep.subr.mxu0 0.0
      %1845 = vmatpush1.msra.mxu0 0.0
      %1846 = vmatprep.subr.mxu0 0.0
      %1847 = vmatpush1.msra.mxu0 0.0
      %1848 = vmatprep.subr.mxu0 0.0
      %1849 = vmatpush1.msra.mxu0 0.0
      %1850 = vmatprep.subr.mxu0 0.0
      %1851 = vmatpush1.msra.mxu0 0.0
      %1852 = vmatprep.subr.mxu0 0.0
      %1853 = vmatpush1.msra.mxu0 0.0
      %1854 = vmatprep.subr.mxu0 0.0
      %1855 = vmatpush1.msra.mxu0 0.0
      %1856 = vmatprep.mubr.f32.mxu0 0.0
      %1857 = vmatmul.mubr.f32.gmra.mrb[0].mxu0 %v1694
      %v1858 = vpop.f32.mrb[0].mxu0
      %v1859 = vadd.f32 0.0, %v1858
      %v1860 = vpop.f32.mrb[0].mxu0
      %1861 = vmatprep.mubr.f32.mxu0 0.0
      %1862 = vmatmul.mubr.f32.gmra.mrb[0].mxu0 %v1697
      %v1863 = vpop.f32.mrb[0].mxu0
      %v1864 = vadd.f32 0.0, %v1863
      %v1865 = vpop.f32.mrb[0].mxu0
      %1866 = vmatprep.mubr.f32.mxu0 0.0
      %1867 = vmatmul.mubr.f32.gmra.mrb[0].mxu0 %v1700
      %v1868 = vpop.f32.mrb[0].mxu0
      %v1869 = vadd.f32 0.0, %v1868
      %v1870 = vpop.f32.mrb[0].mxu0
      %1871 = vmatprep.mubr.f32.mxu0 0.0
      %1872 = vmatmul.mubr.f32.gmra.mrb[0].mxu0 %v1703
      %v1873 = vpop.f32.mrb[0].mxu0
      %v1874 = vadd.f32 0.0, %v1873
      %v1875 = vpop.f32.mrb[0].mxu0
      %1876 = vmatprep.mubr.f32.mxu0 0.0
      %1877 = vmatmul.mubr.f32.gmra.mrb[0].mxu0 %v1706
      %v1878 = vpop.f32.mrb[0].mxu0
      %v1879 = vadd.f32 0.0, %v1878
      %v1880 = vpop.f32.mrb[0].mxu0
      %1881 = vmatprep.mubr.f32.mxu0 0.0
      %1882 = vmatmul.mubr.f32.gmra.mrb[0].mxu0 %v1709
      %v1883 = vpop.f32.mrb[0].mxu0
      %v1884 = vadd.f32 0.0, %v1883
      %v1885 = vpop.f32.mrb[0].mxu0
      %1886 = vmatprep.mubr.f32.mxu0 0.0
      %1887 = vmatmul.mubr.f32.gmra.mrb[0].mxu0 %v1712
      %v1888 = vpop.f32.mrb[0].mxu0
      %v1889 = vadd.f32 0.0, %v1888
      %v1890 = vpop.f32.mrb[0].mxu0
      %1891 = vmatprep.mubr.f32.mxu0 0.0
      %1892 = vmatmul.mubr.f32.gmra.mrb[0].mxu0 %v1715
      %v1893 = vpop.f32.mrb[0].mxu0
      %v1894 = vadd.f32 0.0, %v1893
      %v1895 = vpop.f32.mrb[0].mxu0
      %1896 = vmatprep.mubr.f32.mxu0 0.0
      %1897 = vmatmul.mubr.f32.gmra.mrb[0].mxu0 %v1718
      %v1898 = vpop.f32.mrb[0].mxu0
      %v1899 = vadd.f32 0.0, %v1898
      %v1900 = vpop.f32.mrb[0].mxu0
      %1901 = vmatprep.mubr.f32.mxu0 0.0
      %1902 = vmatmul.mubr.f32.gmra.mrb[0].mxu0 %v1721
      %v1903 = vpop.f32.mrb[0].mxu0
      %v1904 = vadd.f32 0.0, %v1903
      %v1905 = vpop.f32.mrb[0].mxu0
      %1906 = vmatprep.mubr.f32.mxu0 0.0
      %1907 = vmatmul.mubr.f32.gmra.mrb[0].mxu0 %v1724
      %v1908 = vpop.f32.mrb[0].mxu0
      %v1909 = vadd.f32 0.0, %v1908
      %v1910 = vpop.f32.mrb[0].mxu0
      %1911 = vmatprep.mubr.f32.mxu0 0.0
      %1912 = vmatmul.mubr.f32.gmra.mrb[0].mxu0 %v1727
      %v1913 = vpop.f32.mrb[0].mxu0
      %v1914 = vadd.f32 0.0, %v1913
      %v1915 = vpop.f32.mrb[0].mxu0
      %1916 = vmatprep.mubr.f32.mxu0 0.0
      %1917 = vmatmul.mubr.f32.gmra.mrb[0].mxu0 %v1730
      %v1918 = vpop.f32.mrb[0].mxu0
      %v1919 = vadd.f32 0.0, %v1918
      %v1920 = vpop.f32.mrb[0].mxu0
      %1921 = vmatprep.mubr.f32.mxu0 0.0
      %1922 = vmatmul.mubr.f32.gmra.mrb[0].mxu0 %v1733
      %v1923 = vpop.f32.mrb[0].mxu0
      %v1924 = vadd.f32 0.0, %v1923
      %v1925 = vpop.f32.mrb[0].mxu0
      %1926 = vmatprep.mubr.f32.mxu0 0.0
      %1927 = vmatmul.mubr.f32.gmra.mrb[0].mxu0 %v1736
      %v1928 = vpop.f32.mrb[0].mxu0
      %v1929 = vadd.f32 0.0, %v1928
      %v1930 = vpop.f32.mrb[0].mxu0
      %1931 = vmatprep.mubr.f32.mxu0 0.0
      %1932 = vmatmul.mubr.f32.gmra.mrb[0].mxu0 %v1739
      %v1933 = vpop.f32.mrb[0].mxu0
      %v1934 = vadd.f32 0.0, %v1933
      %v1935 = vpop.f32.mrb[0].mxu0
      %1936 = vmatprep.mubr.f32.mxu0 0.0
      %1937 = vmatmul.mubr.f32.gmra.mrb[0].mxu0 %v1742
      %v1938 = vpop.f32.mrb[0].mxu0
      %v1939 = vadd.f32 0.0, %v1938
      %v1940 = vpop.f32.mrb[0].mxu0
      %1941 = vmatprep.mubr.f32.mxu0 0.0
      %1942 = vmatmul.mubr.f32.gmra.mrb[0].mxu0 %v1745
      %v1943 = vpop.f32.mrb[0].mxu0
      %v1944 = vadd.f32 0.0, %v1943
      %v1945 = vpop.f32.mrb[0].mxu0
      %1946 = vmatprep.mubr.f32.mxu0 0.0
      %1947 = vmatmul.mubr.f32.gmra.mrb[0].mxu0 %v1748
      %v1948 = vpop.f32.mrb[0].mxu0
      %v1949 = vadd.f32 0.0, %v1948
      %v1950 = vpop.f32.mrb[0].mxu0
      %1951 = vmatprep.mubr.f32.mxu0 0.0
      %1952 = vmatmul.mubr.f32.gmra.mrb[0].mxu0 %v1751
      %v1953 = vpop.f32.mrb[0].mxu0
      %v1954 = vadd.f32 0.0, %v1953
      %v1955 = vpop.f32.mrb[0].mxu0
      %1956 = vmatprep.mubr.f32.mxu0 0.0
      %1957 = vmatmul.mubr.f32.gmra.mrb[0].mxu0 %v1754
      %v1958 = vpop.f32.mrb[0].mxu0
      %v1959 = vadd.f32 0.0, %v1958
      %v1960 = vpop.f32.mrb[0].mxu0
      %1961 = vmatprep.mubr.f32.mxu0 0.0
      %1962 = vmatmul.mubr.f32.gmra.mrb[0].mxu0 %v1757
      %v1963 = vpop.f32.mrb[0].mxu0
      %v1964 = vadd.f32 0.0, %v1963
      %v1965 = vpop.f32.mrb[0].mxu0
      %1966 = vmatprep.mubr.f32.mxu0 0.0
      %1967 = vmatmul.mubr.f32.gmra.mrb[0].mxu0 %v1760
      %v1968 = vpop.f32.mrb[0].mxu0
      %v1969 = vadd.f32 0.0, %v1968
      %v1970 = vpop.f32.mrb[0].mxu0
      %1971 = vmatprep.mubr.f32.mxu0 0.0
      %1972 = vmatmul.mubr.f32.gmra.mrb[0].mxu0 %v1763
      %v1973 = vpop.f32.mrb[0].mxu0
      %v1974 = vadd.f32 0.0, %v1973
      %v1975 = vpop.f32.mrb[0].mxu0
      %1976 = vmatprep.mubr.f32.mxu0 0.0
      %1977 = vmatmul.mubr.f32.gmra.mrb[0].mxu0 %v1766
      %v1978 = vpop.f32.mrb[0].mxu0
      %v1979 = vadd.f32 0.0, %v1978
      %v1980 = vpop.f32.mrb[0].mxu0
      %1981 = vmatprep.mubr.f32.mxu0 0.0
      %1982 = vmatmul.mubr.f32.gmra.mrb[0].mxu0 %v1769
      %v1983 = vpop.f32.mrb[0].mxu0
      %v1984 = vadd.f32 0.0, %v1983
      %v1985 = vpop.f32.mrb[0].mxu0
      %1986 = vmatprep.mubr.f32.mxu0 0.0
      %1987 = vmatmul.mubr.f32.gmra.mrb[0].mxu0 %v1772
      %v1988 = vpop.f32.mrb[0].mxu0
      %v1989 = vadd.f32 0.0, %v1988
      %v1990 = vpop.f32.mrb[0].mxu0
      %1991 = vmatprep.mubr.f32.mxu0 0.0
      %1992 = vmatmul.mubr.f32.gmra.mrb[0].mxu0 %v1775
      %v1993 = vpop.f32.mrb[0].mxu0
      %v1994 = vadd.f32 0.0, %v1993
      %v1995 = vpop.f32.mrb[0].mxu0
      %1996 = vmatprep.mubr.f32.mxu0 0.0
      %1997 = vmatmul.mubr.f32.gmra.mrb[0].mxu0 %v1778
      %v1998 = vpop.f32.mrb[0].mxu0
      %v1999 = vadd.f32 0.0, %v1998
      %v2000 = vpop.f32.mrb[0].mxu0
      %2001 = vmatprep.mubr.f32.mxu0 0.0
      %2002 = vmatmul.mubr.f32.gmra.mrb[0].mxu0 %v1781
      %v2003 = vpop.f32.mrb[0].mxu0
      %v2004 = vadd.f32 0.0, %v2003
      %v2005 = vpop.f32.mrb[0].mxu0
      %2006 = vmatprep.mubr.f32.mxu0 0.0
      %2007 = vmatmul.mubr.f32.gmra.mrb[0].mxu0 %v1784
      %v2008 = vpop.f32.mrb[0].mxu0
      %v2009 = vadd.f32 0.0, %v2008
      %v2010 = vpop.f32.mrb[0].mxu0
      %2011 = vmatprep.mubr.f32.mxu0 0.0
      %2012 = vmatmul.mubr.f32.gmra.mrb[0].mxu0 %v1787
      %v2013 = vpop.f32.mrb[0].mxu0
      %v2014 = vadd.f32 0.0, %v2013
      %v2015 = vpop.f32.mrb[0].mxu0
      %2016 = vdwg.mxu0
      %v2017 = vadd.f32 %v1625, %v1859
      %v2018 = vadd.f32 %v1626, %v1864
      %v2019 = vadd.f32 %v1627, %v1869
      %v2020 = vadd.f32 %v1628, %v1874
      %v2021 = vadd.f32 %v1629, %v1879
      %v2022 = vadd.f32 %v1630, %v1884
      %v2023 = vadd.f32 %v1631, %v1889
      %v2024 = vadd.f32 %v1632, %v1894
      %v2025 = vadd.f32 %v1633, %v1899
      %v2026 = vadd.f32 %v1634, %v1904
      %v2027 = vadd.f32 %v1635, %v1909
      %v2028 = vadd.f32 %v1636, %v1914
      %v2029 = vadd.f32 %v1637, %v1919
      %v2030 = vadd.f32 %v1638, %v1924
      %v2031 = vadd.f32 %v1639, %v1929
      %v2032 = vadd.f32 %v1640, %v1934
      %v2033 = vadd.f32 %v1641, %v1939
      %v2034 = vadd.f32 %v1642, %v1944
      %v2035 = vadd.f32 %v1643, %v1949
      %v2036 = vadd.f32 %v1644, %v1954
      %v2037 = vadd.f32 %v1645, %v1959
      %v2038 = vadd.f32 %v1646, %v1964
      %v2039 = vadd.f32 %v1647, %v1969
      %v2040 = vadd.f32 %v1648, %v1974
      %v2041 = vadd.f32 %v1649, %v1979
      %v2042 = vadd.f32 %v1650, %v1984
      %v2043 = vadd.f32 %v1651, %v1989
      %v2044 = vadd.f32 %v1652, %v1994
      %v2045 = vadd.f32 %v1653, %v1999
      %v2046 = vadd.f32 %v1654, %v2004
      %v2047 = vadd.f32 %v1655, %v2009
      %v2048 = vadd.f32 %v1656, %v2014
      %s2049 = sadd.s32 %s152, 20
      %s2050 = scalar_lea.vmem %s0, %s2049
      %v2051 = vld [vmem:[%s2050] sm:$0xff]
      %v2052 = vld [vmem:[%s2050 + $0x8] sm:$0xff]
      %v2053 = vld [vmem:[%s2050 + $0x10] sm:$0xff]
      %v2054 = vld [vmem:[%s2050 + $0x18] sm:$0xff]
      %v2055 = vld [vmem:[%s2050 + $0x20] sm:$0xff]
      %v2056 = vld [vmem:[%s2050 + $0x28] sm:$0xff]
      %v2057 = vld [vmem:[%s2050 + $0x30] sm:$0xff]
      %v2058 = vld [vmem:[%s2050 + $0x38] sm:$0xff]
      %v2059 = vld [vmem:[%s2050 + $0x40] sm:$0xff]
      %v2060 = vld [vmem:[%s2050 + $0x48] sm:$0xff]
      %v2061 = vld [vmem:[%s2050 + $0x50] sm:$0xff]
      %v2062 = vld [vmem:[%s2050 + $0x58] sm:$0xff]
      %v2063 = vld [vmem:[%s2050 + $0x60] sm:$0xff]
      %v2064 = vld [vmem:[%s2050 + $0x68] sm:$0xff]
      %v2065 = vld [vmem:[%s2050 + $0x70] sm:$0xff]
      %v2066 = vld [vmem:[%s2050 + $0x78] sm:$0xff]
      %v2067 = vld [vmem:[%s2050 + $0x80] sm:$0xff]
      %v2068 = vld [vmem:[%s2050 + $0x88] sm:$0xff]
      %v2069 = vld [vmem:[%s2050 + $0x90] sm:$0xff]
      %v2070 = vld [vmem:[%s2050 + $0x98] sm:$0xff]
      %v2071 = vld [vmem:[%s2050 + $0xa0] sm:$0xff]
      %v2072 = vld [vmem:[%s2050 + $0xa8] sm:$0xff]
      %v2073 = vld [vmem:[%s2050 + $0xb0] sm:$0xff]
      %v2074 = vld [vmem:[%s2050 + $0xb8] sm:$0xff]
      %v2075 = vld [vmem:[%s2050 + $0xc0] sm:$0xff]
      %v2076 = vld [vmem:[%s2050 + $0xc8] sm:$0xff]
      %v2077 = vld [vmem:[%s2050 + $0xd0] sm:$0xff]
      %v2078 = vld [vmem:[%s2050 + $0xd8] sm:$0xff]
      %v2079 = vld [vmem:[%s2050 + $0xe0] sm:$0xff]
      %v2080 = vld [vmem:[%s2050 + $0xe8] sm:$0xff]
      %v2081 = vld [vmem:[%s2050 + $0xf0] sm:$0xff]
      %v2082 = vld [vmem:[%s2050 + $0xf8] sm:$0xff]
      %s2083 = scalar_lea.vmem %s1, 20
      %v2084 = vld [vmem:[%s2083] sm:$0x7]
      %v2086 = vsel %vm223, %v2051, 0
      %v2089 = vsel %vm223, %v2052, 0
      %v2092 = vsel %vm223, %v2053, 0
      %v2095 = vsel %vm223, %v2054, 0
      %v2098 = vsel %vm223, %v2055, 0
      %v2101 = vsel %vm223, %v2056, 0
      %v2104 = vsel %vm223, %v2057, 0
      %v2107 = vsel %vm223, %v2058, 0
      %v2110 = vsel %vm223, %v2059, 0
      %v2113 = vsel %vm223, %v2060, 0
      %v2116 = vsel %vm223, %v2061, 0
      %v2119 = vsel %vm223, %v2062, 0
      %v2122 = vsel %vm223, %v2063, 0
      %v2125 = vsel %vm223, %v2064, 0
      %v2128 = vsel %vm223, %v2065, 0
      %v2131 = vsel %vm223, %v2066, 0
      %v2134 = vsel %vm223, %v2067, 0
      %v2137 = vsel %vm223, %v2068, 0
      %v2140 = vsel %vm223, %v2069, 0
      %v2143 = vsel %vm223, %v2070, 0
      %v2146 = vsel %vm223, %v2071, 0
      %v2149 = vsel %vm223, %v2072, 0
      %v2152 = vsel %vm223, %v2073, 0
      %v2155 = vsel %vm223, %v2074, 0
      %v2158 = vsel %vm223, %v2075, 0
      %v2161 = vsel %vm223, %v2076, 0
      %v2164 = vsel %vm223, %v2077, 0
      %v2167 = vsel %vm223, %v2078, 0
      %v2170 = vsel %vm223, %v2079, 0
      %v2173 = vsel %vm223, %v2080, 0
      %v2176 = vsel %vm223, %v2081, 0
      %v2179 = vsel %vm223, %v2082, 0
      %v2182 = vsel %vm320, %v2084, 0
      %2184 = vmatprep.subr.mxu0 0.0
      %2185 = vmatpush1.msra.mxu0 %v2182
      %2186 = vmatprep.subr.mxu0 0.0
      %2187 = vmatpush1.msra.mxu0 0.0
      %2188 = vmatprep.subr.mxu0 0.0
      %2189 = vmatpush1.msra.mxu0 0.0
      %2190 = vmatprep.subr.mxu0 0.0
      %2191 = vmatpush1.msra.mxu0 0.0
      %2192 = vmatprep.subr.mxu0 0.0
      %2193 = vmatpush1.msra.mxu0 0.0
      %2194 = vmatprep.subr.mxu0 0.0
      %2195 = vmatpush1.msra.mxu0 0.0
      %2196 = vmatprep.subr.mxu0 0.0
      %2197 = vmatpush1.msra.mxu0 0.0
      %2198 = vmatprep.subr.mxu0 0.0
      %2199 = vmatpush1.msra.mxu0 0.0
      %2200 = vmatprep.subr.mxu0 0.0
      %2201 = vmatpush1.msra.mxu0 0.0
      %2202 = vmatprep.subr.mxu0 0.0
      %2203 = vmatpush1.msra.mxu0 0.0
      %2204 = vmatprep.subr.mxu0 0.0
      %2205 = vmatpush1.msra.mxu0 0.0
      %2206 = vmatprep.subr.mxu0 0.0
      %2207 = vmatpush1.msra.mxu0 0.0
      %2208 = vmatprep.subr.mxu0 0.0
      %2209 = vmatpush1.msra.mxu0 0.0
      %2210 = vmatprep.subr.mxu0 0.0
      %2211 = vmatpush1.msra.mxu0 0.0
      %2212 = vmatprep.subr.mxu0 0.0
      %2213 = vmatpush1.msra.mxu0 0.0
      %2214 = vmatprep.subr.mxu0 0.0
      %2215 = vmatpush1.msra.mxu0 0.0
      %2216 = vmatprep.subr.mxu0 0.0
      %2217 = vmatpush1.msra.mxu0 0.0
      %2218 = vmatprep.subr.mxu0 0.0
      %2219 = vmatpush1.msra.mxu0 0.0
      %2220 = vmatprep.subr.mxu0 0.0
      %2221 = vmatpush1.msra.mxu0 0.0
      %2222 = vmatprep.subr.mxu0 0.0
      %2223 = vmatpush1.msra.mxu0 0.0
      %2224 = vmatprep.subr.mxu0 0.0
      %2225 = vmatpush1.msra.mxu0 0.0
      %2226 = vmatprep.subr.mxu0 0.0
      %2227 = vmatpush1.msra.mxu0 0.0
      %2228 = vmatprep.subr.mxu0 0.0
      %2229 = vmatpush1.msra.mxu0 0.0
      %2230 = vmatprep.subr.mxu0 0.0
      %2231 = vmatpush1.msra.mxu0 0.0
      %2232 = vmatprep.subr.mxu0 0.0
      %2233 = vmatpush1.msra.mxu0 0.0
      %2234 = vmatprep.subr.mxu0 0.0
      %2235 = vmatpush1.msra.mxu0 0.0
      %2236 = vmatprep.subr.mxu0 0.0
      %2237 = vmatpush1.msra.mxu0 0.0
      %2238 = vmatprep.subr.mxu0 0.0
      %2239 = vmatpush1.msra.mxu0 0.0
      %2240 = vmatprep.subr.mxu0 0.0
      %2241 = vmatpush1.msra.mxu0 0.0
      %2242 = vmatprep.subr.mxu0 0.0
      %2243 = vmatpush1.msra.mxu0 0.0
      %2244 = vmatprep.subr.mxu0 0.0
      %2245 = vmatpush1.msra.mxu0 0.0
      %2246 = vmatprep.subr.mxu0 0.0
      %2247 = vmatpush1.msra.mxu0 0.0
      %2248 = vmatprep.mubr.f32.mxu0 0.0
      %2249 = vmatmul.mubr.f32.gmra.mrb[0].mxu0 %v2086
      %v2250 = vpop.f32.mrb[0].mxu0
      %v2251 = vadd.f32 0.0, %v2250
      %v2252 = vpop.f32.mrb[0].mxu0
      %2253 = vmatprep.mubr.f32.mxu0 0.0
      %2254 = vmatmul.mubr.f32.gmra.mrb[0].mxu0 %v2089
      %v2255 = vpop.f32.mrb[0].mxu0
      %v2256 = vadd.f32 0.0, %v2255
      %v2257 = vpop.f32.mrb[0].mxu0
      %2258 = vmatprep.mubr.f32.mxu0 0.0
      %2259 = vmatmul.mubr.f32.gmra.mrb[0].mxu0 %v2092
      %v2260 = vpop.f32.mrb[0].mxu0
      %v2261 = vadd.f32 0.0, %v2260
      %v2262 = vpop.f32.mrb[0].mxu0
      %2263 = vmatprep.mubr.f32.mxu0 0.0
      %2264 = vmatmul.mubr.f32.gmra.mrb[0].mxu0 %v2095
      %v2265 = vpop.f32.mrb[0].mxu0
      %v2266 = vadd.f32 0.0, %v2265
      %v2267 = vpop.f32.mrb[0].mxu0
      %2268 = vmatprep.mubr.f32.mxu0 0.0
      %2269 = vmatmul.mubr.f32.gmra.mrb[0].mxu0 %v2098
      %v2270 = vpop.f32.mrb[0].mxu0
      %v2271 = vadd.f32 0.0, %v2270
      %v2272 = vpop.f32.mrb[0].mxu0
      %2273 = vmatprep.mubr.f32.mxu0 0.0
      %2274 = vmatmul.mubr.f32.gmra.mrb[0].mxu0 %v2101
      %v2275 = vpop.f32.mrb[0].mxu0
      %v2276 = vadd.f32 0.0, %v2275
      %v2277 = vpop.f32.mrb[0].mxu0
      %2278 = vmatprep.mubr.f32.mxu0 0.0
      %2279 = vmatmul.mubr.f32.gmra.mrb[0].mxu0 %v2104
      %v2280 = vpop.f32.mrb[0].mxu0
      %v2281 = vadd.f32 0.0, %v2280
      %v2282 = vpop.f32.mrb[0].mxu0
      %2283 = vmatprep.mubr.f32.mxu0 0.0
      %2284 = vmatmul.mubr.f32.gmra.mrb[0].mxu0 %v2107
      %v2285 = vpop.f32.mrb[0].mxu0
      %v2286 = vadd.f32 0.0, %v2285
      %v2287 = vpop.f32.mrb[0].mxu0
      %2288 = vmatprep.mubr.f32.mxu0 0.0
      %2289 = vmatmul.mubr.f32.gmra.mrb[0].mxu0 %v2110
      %v2290 = vpop.f32.mrb[0].mxu0
      %v2291 = vadd.f32 0.0, %v2290
      %v2292 = vpop.f32.mrb[0].mxu0
      %2293 = vmatprep.mubr.f32.mxu0 0.0
      %2294 = vmatmul.mubr.f32.gmra.mrb[0].mxu0 %v2113
      %v2295 = vpop.f32.mrb[0].mxu0
      %v2296 = vadd.f32 0.0, %v2295
      %v2297 = vpop.f32.mrb[0].mxu0
      %2298 = vmatprep.mubr.f32.mxu0 0.0
      %2299 = vmatmul.mubr.f32.gmra.mrb[0].mxu0 %v2116
      %v2300 = vpop.f32.mrb[0].mxu0
      %v2301 = vadd.f32 0.0, %v2300
      %v2302 = vpop.f32.mrb[0].mxu0
      %2303 = vmatprep.mubr.f32.mxu0 0.0
      %2304 = vmatmul.mubr.f32.gmra.mrb[0].mxu0 %v2119
      %v2305 = vpop.f32.mrb[0].mxu0
      %v2306 = vadd.f32 0.0, %v2305
      %v2307 = vpop.f32.mrb[0].mxu0
      %2308 = vmatprep.mubr.f32.mxu0 0.0
      %2309 = vmatmul.mubr.f32.gmra.mrb[0].mxu0 %v2122
      %v2310 = vpop.f32.mrb[0].mxu0
      %v2311 = vadd.f32 0.0, %v2310
      %v2312 = vpop.f32.mrb[0].mxu0
      %2313 = vmatprep.mubr.f32.mxu0 0.0
      %2314 = vmatmul.mubr.f32.gmra.mrb[0].mxu0 %v2125
      %v2315 = vpop.f32.mrb[0].mxu0
      %v2316 = vadd.f32 0.0, %v2315
      %v2317 = vpop.f32.mrb[0].mxu0
      %2318 = vmatprep.mubr.f32.mxu0 0.0
      %2319 = vmatmul.mubr.f32.gmra.mrb[0].mxu0 %v2128
      %v2320 = vpop.f32.mrb[0].mxu0
      %v2321 = vadd.f32 0.0, %v2320
      %v2322 = vpop.f32.mrb[0].mxu0
      %2323 = vmatprep.mubr.f32.mxu0 0.0
      %2324 = vmatmul.mubr.f32.gmra.mrb[0].mxu0 %v2131
      %v2325 = vpop.f32.mrb[0].mxu0
      %v2326 = vadd.f32 0.0, %v2325
      %v2327 = vpop.f32.mrb[0].mxu0
      %2328 = vmatprep.mubr.f32.mxu0 0.0
      %2329 = vmatmul.mubr.f32.gmra.mrb[0].mxu0 %v2134
      %v2330 = vpop.f32.mrb[0].mxu0
      %v2331 = vadd.f32 0.0, %v2330
      %v2332 = vpop.f32.mrb[0].mxu0
      %2333 = vmatprep.mubr.f32.mxu0 0.0
      %2334 = vmatmul.mubr.f32.gmra.mrb[0].mxu0 %v2137
      %v2335 = vpop.f32.mrb[0].mxu0
      %v2336 = vadd.f32 0.0, %v2335
      %v2337 = vpop.f32.mrb[0].mxu0
      %2338 = vmatprep.mubr.f32.mxu0 0.0
      %2339 = vmatmul.mubr.f32.gmra.mrb[0].mxu0 %v2140
      %v2340 = vpop.f32.mrb[0].mxu0
      %v2341 = vadd.f32 0.0, %v2340
      %v2342 = vpop.f32.mrb[0].mxu0
      %2343 = vmatprep.mubr.f32.mxu0 0.0
      %2344 = vmatmul.mubr.f32.gmra.mrb[0].mxu0 %v2143
      %v2345 = vpop.f32.mrb[0].mxu0
      %v2346 = vadd.f32 0.0, %v2345
      %v2347 = vpop.f32.mrb[0].mxu0
      %2348 = vmatprep.mubr.f32.mxu0 0.0
      %2349 = vmatmul.mubr.f32.gmra.mrb[0].mxu0 %v2146
      %v2350 = vpop.f32.mrb[0].mxu0
      %v2351 = vadd.f32 0.0, %v2350
      %v2352 = vpop.f32.mrb[0].mxu0
      %2353 = vmatprep.mubr.f32.mxu0 0.0
      %2354 = vmatmul.mubr.f32.gmra.mrb[0].mxu0 %v2149
      %v2355 = vpop.f32.mrb[0].mxu0
      %v2356 = vadd.f32 0.0, %v2355
      %v2357 = vpop.f32.mrb[0].mxu0
      %2358 = vmatprep.mubr.f32.mxu0 0.0
      %2359 = vmatmul.mubr.f32.gmra.mrb[0].mxu0 %v2152
      %v2360 = vpop.f32.mrb[0].mxu0
      %v2361 = vadd.f32 0.0, %v2360
      %v2362 = vpop.f32.mrb[0].mxu0
      %2363 = vmatprep.mubr.f32.mxu0 0.0
      %2364 = vmatmul.mubr.f32.gmra.mrb[0].mxu0 %v2155
      %v2365 = vpop.f32.mrb[0].mxu0
      %v2366 = vadd.f32 0.0, %v2365
      %v2367 = vpop.f32.mrb[0].mxu0
      %2368 = vmatprep.mubr.f32.mxu0 0.0
      %2369 = vmatmul.mubr.f32.gmra.mrb[0].mxu0 %v2158
      %v2370 = vpop.f32.mrb[0].mxu0
      %v2371 = vadd.f32 0.0, %v2370
      %v2372 = vpop.f32.mrb[0].mxu0
      %2373 = vmatprep.mubr.f32.mxu0 0.0
      %2374 = vmatmul.mubr.f32.gmra.mrb[0].mxu0 %v2161
      %v2375 = vpop.f32.mrb[0].mxu0
      %v2376 = vadd.f32 0.0, %v2375
      %v2377 = vpop.f32.mrb[0].mxu0
      %2378 = vmatprep.mubr.f32.mxu0 0.0
      %2379 = vmatmul.mubr.f32.gmra.mrb[0].mxu0 %v2164
      %v2380 = vpop.f32.mrb[0].mxu0
      %v2381 = vadd.f32 0.0, %v2380
      %v2382 = vpop.f32.mrb[0].mxu0
      %2383 = vmatprep.mubr.f32.mxu0 0.0
      %2384 = vmatmul.mubr.f32.gmra.mrb[0].mxu0 %v2167
      %v2385 = vpop.f32.mrb[0].mxu0
      %v2386 = vadd.f32 0.0, %v2385
      %v2387 = vpop.f32.mrb[0].mxu0
      %2388 = vmatprep.mubr.f32.mxu0 0.0
      %2389 = vmatmul.mubr.f32.gmra.mrb[0].mxu0 %v2170
      %v2390 = vpop.f32.mrb[0].mxu0
      %v2391 = vadd.f32 0.0, %v2390
      %v2392 = vpop.f32.mrb[0].mxu0
      %2393 = vmatprep.mubr.f32.mxu0 0.0
      %2394 = vmatmul.mubr.f32.gmra.mrb[0].mxu0 %v2173
      %v2395 = vpop.f32.mrb[0].mxu0
      %v2396 = vadd.f32 0.0, %v2395
      %v2397 = vpop.f32.mrb[0].mxu0
      %2398 = vmatprep.mubr.f32.mxu0 0.0
      %2399 = vmatmul.mubr.f32.gmra.mrb[0].mxu0 %v2176
      %v2400 = vpop.f32.mrb[0].mxu0
      %v2401 = vadd.f32 0.0, %v2400
      %v2402 = vpop.f32.mrb[0].mxu0
      %2403 = vmatprep.mubr.f32.mxu0 0.0
      %2404 = vmatmul.mubr.f32.gmra.mrb[0].mxu0 %v2179
      %v2405 = vpop.f32.mrb[0].mxu0
      %v2406 = vadd.f32 0.0, %v2405
      %v2407 = vpop.f32.mrb[0].mxu0
      %2408 = vdwg.mxu0
      %v2409 = vadd.f32 %v2017, %v2251
      %v2410 = vadd.f32 %v2018, %v2256
      %v2411 = vadd.f32 %v2019, %v2261
      %v2412 = vadd.f32 %v2020, %v2266
      %v2413 = vadd.f32 %v2021, %v2271
      %v2414 = vadd.f32 %v2022, %v2276
      %v2415 = vadd.f32 %v2023, %v2281
      %v2416 = vadd.f32 %v2024, %v2286
      %v2417 = vadd.f32 %v2025, %v2291
      %v2418 = vadd.f32 %v2026, %v2296
      %v2419 = vadd.f32 %v2027, %v2301
      %v2420 = vadd.f32 %v2028, %v2306
      %v2421 = vadd.f32 %v2029, %v2311
      %v2422 = vadd.f32 %v2030, %v2316
      %v2423 = vadd.f32 %v2031, %v2321
      %v2424 = vadd.f32 %v2032, %v2326
      %v2425 = vadd.f32 %v2033, %v2331
      %v2426 = vadd.f32 %v2034, %v2336
      %v2427 = vadd.f32 %v2035, %v2341
      %v2428 = vadd.f32 %v2036, %v2346
      %v2429 = vadd.f32 %v2037, %v2351
      %v2430 = vadd.f32 %v2038, %v2356
      %v2431 = vadd.f32 %v2039, %v2361
      %v2432 = vadd.f32 %v2040, %v2366
      %v2433 = vadd.f32 %v2041, %v2371
      %v2434 = vadd.f32 %v2042, %v2376
      %v2435 = vadd.f32 %v2043, %v2381
      %v2436 = vadd.f32 %v2044, %v2386
      %v2437 = vadd.f32 %v2045, %v2391
      %v2438 = vadd.f32 %v2046, %v2396
      %v2439 = vadd.f32 %v2047, %v2401
      %v2440 = vadd.f32 %v2048, %v2406
      %s2441 = sadd.s32 %s152, 36
      %s2442 = scalar_lea.vmem %s0, %s2441
      %v2443 = vld [vmem:[%s2442] sm:$0xff]
      %v2444 = vld [vmem:[%s2442 + $0x8] sm:$0xff]
      %v2445 = vld [vmem:[%s2442 + $0x10] sm:$0xff]
      %v2446 = vld [vmem:[%s2442 + $0x18] sm:$0xff]
      %v2447 = vld [vmem:[%s2442 + $0x20] sm:$0xff]
      %v2448 = vld [vmem:[%s2442 + $0x28] sm:$0xff]
      %v2449 = vld [vmem:[%s2442 + $0x30] sm:$0xff]
      %v2450 = vld [vmem:[%s2442 + $0x38] sm:$0xff]
      %v2451 = vld [vmem:[%s2442 + $0x40] sm:$0xff]
      %v2452 = vld [vmem:[%s2442 + $0x48] sm:$0xff]
      %v2453 = vld [vmem:[%s2442 + $0x50] sm:$0xff]
      %v2454 = vld [vmem:[%s2442 + $0x58] sm:$0xff]
      %v2455 = vld [vmem:[%s2442 + $0x60] sm:$0xff]
      %v2456 = vld [vmem:[%s2442 + $0x68] sm:$0xff]
      %v2457 = vld [vmem:[%s2442 + $0x70] sm:$0xff]
      %v2458 = vld [vmem:[%s2442 + $0x78] sm:$0xff]
      %v2459 = vld [vmem:[%s2442 + $0x80] sm:$0xff]
      %v2460 = vld [vmem:[%s2442 + $0x88] sm:$0xff]
      %v2461 = vld [vmem:[%s2442 + $0x90] sm:$0xff]
      %v2462 = vld [vmem:[%s2442 + $0x98] sm:$0xff]
      %v2463 = vld [vmem:[%s2442 + $0xa0] sm:$0xff]
      %v2464 = vld [vmem:[%s2442 + $0xa8] sm:$0xff]
      %v2465 = vld [vmem:[%s2442 + $0xb0] sm:$0xff]
      %v2466 = vld [vmem:[%s2442 + $0xb8] sm:$0xff]
      %v2467 = vld [vmem:[%s2442 + $0xc0] sm:$0xff]
      %v2468 = vld [vmem:[%s2442 + $0xc8] sm:$0xff]
      %v2469 = vld [vmem:[%s2442 + $0xd0] sm:$0xff]
      %v2470 = vld [vmem:[%s2442 + $0xd8] sm:$0xff]
      %v2471 = vld [vmem:[%s2442 + $0xe0] sm:$0xff]
      %v2472 = vld [vmem:[%s2442 + $0xe8] sm:$0xff]
      %v2473 = vld [vmem:[%s2442 + $0xf0] sm:$0xff]
      %v2474 = vld [vmem:[%s2442 + $0xf8] sm:$0xff]
      %s2475 = scalar_lea.vmem %s1, 24
      %v2476 = vld [vmem:[%s2475] sm:$0x7]
      %v2478 = vsel %vm223, %v2443, 0
      %v2481 = vsel %vm223, %v2444, 0
      %v2484 = vsel %vm223, %v2445, 0
      %v2487 = vsel %vm223, %v2446, 0
      %v2490 = vsel %vm223, %v2447, 0
      %v2493 = vsel %vm223, %v2448, 0
      %v2496 = vsel %vm223, %v2449, 0
      %v2499 = vsel %vm223, %v2450, 0
      %v2502 = vsel %vm223, %v2451, 0
      %v2505 = vsel %vm223, %v2452, 0
      %v2508 = vsel %vm223, %v2453, 0
      %v2511 = vsel %vm223, %v2454, 0
      %v2514 = vsel %vm223, %v2455, 0
      %v2517 = vsel %vm223, %v2456, 0
      %v2520 = vsel %vm223, %v2457, 0
      %v2523 = vsel %vm223, %v2458, 0
      %v2526 = vsel %vm223, %v2459, 0
      %v2529 = vsel %vm223, %v2460, 0
      %v2532 = vsel %vm223, %v2461, 0
      %v2535 = vsel %vm223, %v2462, 0
      %v2538 = vsel %vm223, %v2463, 0
      %v2541 = vsel %vm223, %v2464, 0
      %v2544 = vsel %vm223, %v2465, 0
      %v2547 = vsel %vm223, %v2466, 0
      %v2550 = vsel %vm223, %v2467, 0
      %v2553 = vsel %vm223, %v2468, 0
      %v2556 = vsel %vm223, %v2469, 0
      %v2559 = vsel %vm223, %v2470, 0
      %v2562 = vsel %vm223, %v2471, 0
      %v2565 = vsel %vm223, %v2472, 0
      %v2568 = vsel %vm223, %v2473, 0
      %v2571 = vsel %vm223, %v2474, 0
      %v2574 = vsel %vm320, %v2476, 0
      %2576 = vmatprep.subr.mxu0 0.0
      %2577 = vmatpush1.msra.mxu0 %v2574
      %2578 = vmatprep.subr.mxu0 0.0
      %2579 = vmatpush1.msra.mxu0 0.0
      %2580 = vmatprep.subr.mxu0 0.0
      %2581 = vmatpush1.msra.mxu0 0.0
      %2582 = vmatprep.subr.mxu0 0.0
      %2583 = vmatpush1.msra.mxu0 0.0
      %2584 = vmatprep.subr.mxu0 0.0
      %2585 = vmatpush1.msra.mxu0 0.0
      %2586 = vmatprep.subr.mxu0 0.0
      %2587 = vmatpush1.msra.mxu0 0.0
      %2588 = vmatprep.subr.mxu0 0.0
      %2589 = vmatpush1.msra.mxu0 0.0
      %2590 = vmatprep.subr.mxu0 0.0
      %2591 = vmatpush1.msra.mxu0 0.0
      %2592 = vmatprep.subr.mxu0 0.0
      %2593 = vmatpush1.msra.mxu0 0.0
      %2594 = vmatprep.subr.mxu0 0.0
      %2595 = vmatpush1.msra.mxu0 0.0
      %2596 = vmatprep.subr.mxu0 0.0
      %2597 = vmatpush1.msra.mxu0 0.0
      %2598 = vmatprep.subr.mxu0 0.0
      %2599 = vmatpush1.msra.mxu0 0.0
      %2600 = vmatprep.subr.mxu0 0.0
      %2601 = vmatpush1.msra.mxu0 0.0
      %2602 = vmatprep.subr.mxu0 0.0
      %2603 = vmatpush1.msra.mxu0 0.0
      %2604 = vmatprep.subr.mxu0 0.0
      %2605 = vmatpush1.msra.mxu0 0.0
      %2606 = vmatprep.subr.mxu0 0.0
      %2607 = vmatpush1.msra.mxu0 0.0
      %2608 = vmatprep.subr.mxu0 0.0
      %2609 = vmatpush1.msra.mxu0 0.0
      %2610 = vmatprep.subr.mxu0 0.0
      %2611 = vmatpush1.msra.mxu0 0.0
      %2612 = vmatprep.subr.mxu0 0.0
      %2613 = vmatpush1.msra.mxu0 0.0
      %2614 = vmatprep.subr.mxu0 0.0
      %2615 = vmatpush1.msra.mxu0 0.0
      %2616 = vmatprep.subr.mxu0 0.0
      %2617 = vmatpush1.msra.mxu0 0.0
      %2618 = vmatprep.subr.mxu0 0.0
      %2619 = vmatpush1.msra.mxu0 0.0
      %2620 = vmatprep.subr.mxu0 0.0
      %2621 = vmatpush1.msra.mxu0 0.0
      %2622 = vmatprep.subr.mxu0 0.0
      %2623 = vmatpush1.msra.mxu0 0.0
      %2624 = vmatprep.subr.mxu0 0.0
      %2625 = vmatpush1.msra.mxu0 0.0
      %2626 = vmatprep.subr.mxu0 0.0
      %2627 = vmatpush1.msra.mxu0 0.0
      %2628 = vmatprep.subr.mxu0 0.0
      %2629 = vmatpush1.msra.mxu0 0.0
      %2630 = vmatprep.subr.mxu0 0.0
      %2631 = vmatpush1.msra.mxu0 0.0
      %2632 = vmatprep.subr.mxu0 0.0
      %2633 = vmatpush1.msra.mxu0 0.0
      %2634 = vmatprep.subr.mxu0 0.0
      %2635 = vmatpush1.msra.mxu0 0.0
      %2636 = vmatprep.subr.mxu0 0.0
      %2637 = vmatpush1.msra.mxu0 0.0
      %2638 = vmatprep.subr.mxu0 0.0
      %2639 = vmatpush1.msra.mxu0 0.0
      %2640 = vmatprep.mubr.f32.mxu0 0.0
      %2641 = vmatmul.mubr.f32.gmra.mrb[0].mxu0 %v2478
      %v2642 = vpop.f32.mrb[0].mxu0
      %v2643 = vadd.f32 0.0, %v2642
      %v2644 = vpop.f32.mrb[0].mxu0
      %2645 = vmatprep.mubr.f32.mxu0 0.0
      %2646 = vmatmul.mubr.f32.gmra.mrb[0].mxu0 %v2481
      %v2647 = vpop.f32.mrb[0].mxu0
      %v2648 = vadd.f32 0.0, %v2647
      %v2649 = vpop.f32.mrb[0].mxu0
      %2650 = vmatprep.mubr.f32.mxu0 0.0
      %2651 = vmatmul.mubr.f32.gmra.mrb[0].mxu0 %v2484
      %v2652 = vpop.f32.mrb[0].mxu0
      %v2653 = vadd.f32 0.0, %v2652
      %v2654 = vpop.f32.mrb[0].mxu0
      %2655 = vmatprep.mubr.f32.mxu0 0.0
      %2656 = vmatmul.mubr.f32.gmra.mrb[0].mxu0 %v2487
      %v2657 = vpop.f32.mrb[0].mxu0
      %v2658 = vadd.f32 0.0, %v2657
      %v2659 = vpop.f32.mrb[0].mxu0
      %2660 = vmatprep.mubr.f32.mxu0 0.0
      %2661 = vmatmul.mubr.f32.gmra.mrb[0].mxu0 %v2490
      %v2662 = vpop.f32.mrb[0].mxu0
      %v2663 = vadd.f32 0.0, %v2662
      %v2664 = vpop.f32.mrb[0].mxu0
      %2665 = vmatprep.mubr.f32.mxu0 0.0
      %2666 = vmatmul.mubr.f32.gmra.mrb[0].mxu0 %v2493
      %v2667 = vpop.f32.mrb[0].mxu0
      %v2668 = vadd.f32 0.0, %v2667
      %v2669 = vpop.f32.mrb[0].mxu0
      %2670 = vmatprep.mubr.f32.mxu0 0.0
      %2671 = vmatmul.mubr.f32.gmra.mrb[0].mxu0 %v2496
      %v2672 = vpop.f32.mrb[0].mxu0
      %v2673 = vadd.f32 0.0, %v2672
      %v2674 = vpop.f32.mrb[0].mxu0
      %2675 = vmatprep.mubr.f32.mxu0 0.0
      %2676 = vmatmul.mubr.f32.gmra.mrb[0].mxu0 %v2499
      %v2677 = vpop.f32.mrb[0].mxu0
      %v2678 = vadd.f32 0.0, %v2677
      %v2679 = vpop.f32.mrb[0].mxu0
      %2680 = vmatprep.mubr.f32.mxu0 0.0
      %2681 = vmatmul.mubr.f32.gmra.mrb[0].mxu0 %v2502
      %v2682 = vpop.f32.mrb[0].mxu0
      %v2683 = vadd.f32 0.0, %v2682
      %v2684 = vpop.f32.mrb[0].mxu0
      %2685 = vmatprep.mubr.f32.mxu0 0.0
      %2686 = vmatmul.mubr.f32.gmra.mrb[0].mxu0 %v2505
      %v2687 = vpop.f32.mrb[0].mxu0
      %v2688 = vadd.f32 0.0, %v2687
      %v2689 = vpop.f32.mrb[0].mxu0
      %2690 = vmatprep.mubr.f32.mxu0 0.0
      %2691 = vmatmul.mubr.f32.gmra.mrb[0].mxu0 %v2508
      %v2692 = vpop.f32.mrb[0].mxu0
      %v2693 = vadd.f32 0.0, %v2692
      %v2694 = vpop.f32.mrb[0].mxu0
      %2695 = vmatprep.mubr.f32.mxu0 0.0
      %2696 = vmatmul.mubr.f32.gmra.mrb[0].mxu0 %v2511
      %v2697 = vpop.f32.mrb[0].mxu0
      %v2698 = vadd.f32 0.0, %v2697
      %v2699 = vpop.f32.mrb[0].mxu0
      %2700 = vmatprep.mubr.f32.mxu0 0.0
      %2701 = vmatmul.mubr.f32.gmra.mrb[0].mxu0 %v2514
      %v2702 = vpop.f32.mrb[0].mxu0
      %v2703 = vadd.f32 0.0, %v2702
      %v2704 = vpop.f32.mrb[0].mxu0
      %2705 = vmatprep.mubr.f32.mxu0 0.0
      %2706 = vmatmul.mubr.f32.gmra.mrb[0].mxu0 %v2517
      %v2707 = vpop.f32.mrb[0].mxu0
      %v2708 = vadd.f32 0.0, %v2707
      %v2709 = vpop.f32.mrb[0].mxu0
      %2710 = vmatprep.mubr.f32.mxu0 0.0
      %2711 = vmatmul.mubr.f32.gmra.mrb[0].mxu0 %v2520
      %v2712 = vpop.f32.mrb[0].mxu0
      %v2713 = vadd.f32 0.0, %v2712
      %v2714 = vpop.f32.mrb[0].mxu0
      %2715 = vmatprep.mubr.f32.mxu0 0.0
      %2716 = vmatmul.mubr.f32.gmra.mrb[0].mxu0 %v2523
      %v2717 = vpop.f32.mrb[0].mxu0
      %v2718 = vadd.f32 0.0, %v2717
      %v2719 = vpop.f32.mrb[0].mxu0
      %2720 = vmatprep.mubr.f32.mxu0 0.0
      %2721 = vmatmul.mubr.f32.gmra.mrb[0].mxu0 %v2526
      %v2722 = vpop.f32.mrb[0].mxu0
      %v2723 = vadd.f32 0.0, %v2722
      %v2724 = vpop.f32.mrb[0].mxu0
      %2725 = vmatprep.mubr.f32.mxu0 0.0
      %2726 = vmatmul.mubr.f32.gmra.mrb[0].mxu0 %v2529
      %v2727 = vpop.f32.mrb[0].mxu0
      %v2728 = vadd.f32 0.0, %v2727
      %v2729 = vpop.f32.mrb[0].mxu0
      %2730 = vmatprep.mubr.f32.mxu0 0.0
      %2731 = vmatmul.mubr.f32.gmra.mrb[0].mxu0 %v2532
      %v2732 = vpop.f32.mrb[0].mxu0
      %v2733 = vadd.f32 0.0, %v2732
      %v2734 = vpop.f32.mrb[0].mxu0
      %2735 = vmatprep.mubr.f32.mxu0 0.0
      %2736 = vmatmul.mubr.f32.gmra.mrb[0].mxu0 %v2535
      %v2737 = vpop.f32.mrb[0].mxu0
      %v2738 = vadd.f32 0.0, %v2737
      %v2739 = vpop.f32.mrb[0].mxu0
      %2740 = vmatprep.mubr.f32.mxu0 0.0
      %2741 = vmatmul.mubr.f32.gmra.mrb[0].mxu0 %v2538
      %v2742 = vpop.f32.mrb[0].mxu0
      %v2743 = vadd.f32 0.0, %v2742
      %v2744 = vpop.f32.mrb[0].mxu0
      %2745 = vmatprep.mubr.f32.mxu0 0.0
      %2746 = vmatmul.mubr.f32.gmra.mrb[0].mxu0 %v2541
      %v2747 = vpop.f32.mrb[0].mxu0
      %v2748 = vadd.f32 0.0, %v2747
      %v2749 = vpop.f32.mrb[0].mxu0
      %2750 = vmatprep.mubr.f32.mxu0 0.0
      %2751 = vmatmul.mubr.f32.gmra.mrb[0].mxu0 %v2544
      %v2752 = vpop.f32.mrb[0].mxu0
      %v2753 = vadd.f32 0.0, %v2752
      %v2754 = vpop.f32.mrb[0].mxu0
      %2755 = vmatprep.mubr.f32.mxu0 0.0
      %2756 = vmatmul.mubr.f32.gmra.mrb[0].mxu0 %v2547
      %v2757 = vpop.f32.mrb[0].mxu0
      %v2758 = vadd.f32 0.0, %v2757
      %v2759 = vpop.f32.mrb[0].mxu0
      %2760 = vmatprep.mubr.f32.mxu0 0.0
      %2761 = vmatmul.mubr.f32.gmra.mrb[0].mxu0 %v2550
      %v2762 = vpop.f32.mrb[0].mxu0
      %v2763 = vadd.f32 0.0, %v2762
      %v2764 = vpop.f32.mrb[0].mxu0
      %2765 = vmatprep.mubr.f32.mxu0 0.0
      %2766 = vmatmul.mubr.f32.gmra.mrb[0].mxu0 %v2553
      %v2767 = vpop.f32.mrb[0].mxu0
      %v2768 = vadd.f32 0.0, %v2767
      %v2769 = vpop.f32.mrb[0].mxu0
      %2770 = vmatprep.mubr.f32.mxu0 0.0
      %2771 = vmatmul.mubr.f32.gmra.mrb[0].mxu0 %v2556
      %v2772 = vpop.f32.mrb[0].mxu0
      %v2773 = vadd.f32 0.0, %v2772
      %v2774 = vpop.f32.mrb[0].mxu0
      %2775 = vmatprep.mubr.f32.mxu0 0.0
      %2776 = vmatmul.mubr.f32.gmra.mrb[0].mxu0 %v2559
      %v2777 = vpop.f32.mrb[0].mxu0
      %v2778 = vadd.f32 0.0, %v2777
      %v2779 = vpop.f32.mrb[0].mxu0
      %2780 = vmatprep.mubr.f32.mxu0 0.0
      %2781 = vmatmul.mubr.f32.gmra.mrb[0].mxu0 %v2562
      %v2782 = vpop.f32.mrb[0].mxu0
      %v2783 = vadd.f32 0.0, %v2782
      %v2784 = vpop.f32.mrb[0].mxu0
      %2785 = vmatprep.mubr.f32.mxu0 0.0
      %2786 = vmatmul.mubr.f32.gmra.mrb[0].mxu0 %v2565
      %v2787 = vpop.f32.mrb[0].mxu0
      %v2788 = vadd.f32 0.0, %v2787
      %v2789 = vpop.f32.mrb[0].mxu0
      %2790 = vmatprep.mubr.f32.mxu0 0.0
      %2791 = vmatmul.mubr.f32.gmra.mrb[0].mxu0 %v2568
      %v2792 = vpop.f32.mrb[0].mxu0
      %v2793 = vadd.f32 0.0, %v2792
      %v2794 = vpop.f32.mrb[0].mxu0
      %2795 = vmatprep.mubr.f32.mxu0 0.0
      %2796 = vmatmul.mubr.f32.gmra.mrb[0].mxu0 %v2571
      %v2797 = vpop.f32.mrb[0].mxu0
      %v2798 = vadd.f32 0.0, %v2797
      %v2799 = vpop.f32.mrb[0].mxu0
      %2800 = vdwg.mxu0
      %v2801 = vadd.f32 %v2409, %v2643
      %v2802 = vadd.f32 %v2410, %v2648
      %v2803 = vadd.f32 %v2411, %v2653
      %v2804 = vadd.f32 %v2412, %v2658
      %v2805 = vadd.f32 %v2413, %v2663
      %v2806 = vadd.f32 %v2414, %v2668
      %v2807 = vadd.f32 %v2415, %v2673
      %v2808 = vadd.f32 %v2416, %v2678
      %v2809 = vadd.f32 %v2417, %v2683
      %v2810 = vadd.f32 %v2418, %v2688
      %v2811 = vadd.f32 %v2419, %v2693
      %v2812 = vadd.f32 %v2420, %v2698
      %v2813 = vadd.f32 %v2421, %v2703
      %v2814 = vadd.f32 %v2422, %v2708
      %v2815 = vadd.f32 %v2423, %v2713
      %v2816 = vadd.f32 %v2424, %v2718
      %v2817 = vadd.f32 %v2425, %v2723
      %v2818 = vadd.f32 %v2426, %v2728
      %v2819 = vadd.f32 %v2427, %v2733
      %v2820 = vadd.f32 %v2428, %v2738
      %v2821 = vadd.f32 %v2429, %v2743
      %v2822 = vadd.f32 %v2430, %v2748
      %v2823 = vadd.f32 %v2431, %v2753
      %v2824 = vadd.f32 %v2432, %v2758
      %v2825 = vadd.f32 %v2433, %v2763
      %v2826 = vadd.f32 %v2434, %v2768
      %v2827 = vadd.f32 %v2435, %v2773
      %v2828 = vadd.f32 %v2436, %v2778
      %v2829 = vadd.f32 %v2437, %v2783
      %v2830 = vadd.f32 %v2438, %v2788
      %v2831 = vadd.f32 %v2439, %v2793
      %v2832 = vadd.f32 %v2440, %v2798
      %s2833 = sadd.s32 %s152, 37
      %s2834 = scalar_lea.vmem %s0, %s2833
      %v2835 = vld [vmem:[%s2834] sm:$0xff]
      %v2836 = vld [vmem:[%s2834 + $0x8] sm:$0xff]
      %v2837 = vld [vmem:[%s2834 + $0x10] sm:$0xff]
      %v2838 = vld [vmem:[%s2834 + $0x18] sm:$0xff]
      %v2839 = vld [vmem:[%s2834 + $0x20] sm:$0xff]
      %v2840 = vld [vmem:[%s2834 + $0x28] sm:$0xff]
      %v2841 = vld [vmem:[%s2834 + $0x30] sm:$0xff]
      %v2842 = vld [vmem:[%s2834 + $0x38] sm:$0xff]
      %v2843 = vld [vmem:[%s2834 + $0x40] sm:$0xff]
      %v2844 = vld [vmem:[%s2834 + $0x48] sm:$0xff]
      %v2845 = vld [vmem:[%s2834 + $0x50] sm:$0xff]
      %v2846 = vld [vmem:[%s2834 + $0x58] sm:$0xff]
      %v2847 = vld [vmem:[%s2834 + $0x60] sm:$0xff]
      %v2848 = vld [vmem:[%s2834 + $0x68] sm:$0xff]
      %v2849 = vld [vmem:[%s2834 + $0x70] sm:$0xff]
      %v2850 = vld [vmem:[%s2834 + $0x78] sm:$0xff]
      %v2851 = vld [vmem:[%s2834 + $0x80] sm:$0xff]
      %v2852 = vld [vmem:[%s2834 + $0x88] sm:$0xff]
      %v2853 = vld [vmem:[%s2834 + $0x90] sm:$0xff]
      %v2854 = vld [vmem:[%s2834 + $0x98] sm:$0xff]
      %v2855 = vld [vmem:[%s2834 + $0xa0] sm:$0xff]
      %v2856 = vld [vmem:[%s2834 + $0xa8] sm:$0xff]
      %v2857 = vld [vmem:[%s2834 + $0xb0] sm:$0xff]
      %v2858 = vld [vmem:[%s2834 + $0xb8] sm:$0xff]
      %v2859 = vld [vmem:[%s2834 + $0xc0] sm:$0xff]
      %v2860 = vld [vmem:[%s2834 + $0xc8] sm:$0xff]
      %v2861 = vld [vmem:[%s2834 + $0xd0] sm:$0xff]
      %v2862 = vld [vmem:[%s2834 + $0xd8] sm:$0xff]
      %v2863 = vld [vmem:[%s2834 + $0xe0] sm:$0xff]
      %v2864 = vld [vmem:[%s2834 + $0xe8] sm:$0xff]
      %v2865 = vld [vmem:[%s2834 + $0xf0] sm:$0xff]
      %v2866 = vld [vmem:[%s2834 + $0xf8] sm:$0xff]
      %s2867 = scalar_lea.vmem %s1, 28
      %v2868 = vld [vmem:[%s2867] sm:$0x7]
      %v2870 = vsel %vm223, %v2835, 0
      %v2873 = vsel %vm223, %v2836, 0
      %v2876 = vsel %vm223, %v2837, 0
      %v2879 = vsel %vm223, %v2838, 0
      %v2882 = vsel %vm223, %v2839, 0
      %v2885 = vsel %vm223, %v2840, 0
      %v2888 = vsel %vm223, %v2841, 0
      %v2891 = vsel %vm223, %v2842, 0
      %v2894 = vsel %vm223, %v2843, 0
      %v2897 = vsel %vm223, %v2844, 0
      %v2900 = vsel %vm223, %v2845, 0
      %v2903 = vsel %vm223, %v2846, 0
      %v2906 = vsel %vm223, %v2847, 0
      %v2909 = vsel %vm223, %v2848, 0
      %v2912 = vsel %vm223, %v2849, 0
      %v2915 = vsel %vm223, %v2850, 0
      %v2918 = vsel %vm223, %v2851, 0
      %v2921 = vsel %vm223, %v2852, 0
      %v2924 = vsel %vm223, %v2853, 0
      %v2927 = vsel %vm223, %v2854, 0
      %v2930 = vsel %vm223, %v2855, 0
      %v2933 = vsel %vm223, %v2856, 0
      %v2936 = vsel %vm223, %v2857, 0
      %v2939 = vsel %vm223, %v2858, 0
      %v2942 = vsel %vm223, %v2859, 0
      %v2945 = vsel %vm223, %v2860, 0
      %v2948 = vsel %vm223, %v2861, 0
      %v2951 = vsel %vm223, %v2862, 0
      %v2954 = vsel %vm223, %v2863, 0
      %v2957 = vsel %vm223, %v2864, 0
      %v2960 = vsel %vm223, %v2865, 0
      %v2963 = vsel %vm223, %v2866, 0
      %v2966 = vsel %vm320, %v2868, 0
      %2968 = vmatprep.subr.mxu0 0.0
      %2969 = vmatpush1.msra.mxu0 %v2966
      %2970 = vmatprep.subr.mxu0 0.0
      %2971 = vmatpush1.msra.mxu0 0.0
      %2972 = vmatprep.subr.mxu0 0.0
      %2973 = vmatpush1.msra.mxu0 0.0
      %2974 = vmatprep.subr.mxu0 0.0
      %2975 = vmatpush1.msra.mxu0 0.0
      %2976 = vmatprep.subr.mxu0 0.0
      %2977 = vmatpush1.msra.mxu0 0.0
      %2978 = vmatprep.subr.mxu0 0.0
      %2979 = vmatpush1.msra.mxu0 0.0
      %2980 = vmatprep.subr.mxu0 0.0
      %2981 = vmatpush1.msra.mxu0 0.0
      %2982 = vmatprep.subr.mxu0 0.0
      %2983 = vmatpush1.msra.mxu0 0.0
      %2984 = vmatprep.subr.mxu0 0.0
      %2985 = vmatpush1.msra.mxu0 0.0
      %2986 = vmatprep.subr.mxu0 0.0
      %2987 = vmatpush1.msra.mxu0 0.0
      %2988 = vmatprep.subr.mxu0 0.0
      %2989 = vmatpush1.msra.mxu0 0.0
      %2990 = vmatprep.subr.mxu0 0.0
      %2991 = vmatpush1.msra.mxu0 0.0
      %2992 = vmatprep.subr.mxu0 0.0
      %2993 = vmatpush1.msra.mxu0 0.0
      %2994 = vmatprep.subr.mxu0 0.0
      %2995 = vmatpush1.msra.mxu0 0.0
      %2996 = vmatprep.subr.mxu0 0.0
      %2997 = vmatpush1.msra.mxu0 0.0
      %2998 = vmatprep.subr.mxu0 0.0
      %2999 = vmatpush1.msra.mxu0 0.0
      %3000 = vmatprep.subr.mxu0 0.0
      %3001 = vmatpush1.msra.mxu0 0.0
      %3002 = vmatprep.subr.mxu0 0.0
      %3003 = vmatpush1.msra.mxu0 0.0
      %3004 = vmatprep.subr.mxu0 0.0
      %3005 = vmatpush1.msra.mxu0 0.0
      %3006 = vmatprep.subr.mxu0 0.0
      %3007 = vmatpush1.msra.mxu0 0.0
      %3008 = vmatprep.subr.mxu0 0.0
      %3009 = vmatpush1.msra.mxu0 0.0
      %3010 = vmatprep.subr.mxu0 0.0
      %3011 = vmatpush1.msra.mxu0 0.0
      %3012 = vmatprep.subr.mxu0 0.0
      %3013 = vmatpush1.msra.mxu0 0.0
      %3014 = vmatprep.subr.mxu0 0.0
      %3015 = vmatpush1.msra.mxu0 0.0
      %3016 = vmatprep.subr.mxu0 0.0
      %3017 = vmatpush1.msra.mxu0 0.0
      %3018 = vmatprep.subr.mxu0 0.0
      %3019 = vmatpush1.msra.mxu0 0.0
      %3020 = vmatprep.subr.mxu0 0.0
      %3021 = vmatpush1.msra.mxu0 0.0
      %3022 = vmatprep.subr.mxu0 0.0
      %3023 = vmatpush1.msra.mxu0 0.0
      %3024 = vmatprep.subr.mxu0 0.0
      %3025 = vmatpush1.msra.mxu0 0.0
      %3026 = vmatprep.subr.mxu0 0.0
      %3027 = vmatpush1.msra.mxu0 0.0
      %3028 = vmatprep.subr.mxu0 0.0
      %3029 = vmatpush1.msra.mxu0 0.0
      %3030 = vmatprep.subr.mxu0 0.0
      %3031 = vmatpush1.msra.mxu0 0.0
      %3032 = vmatprep.mubr.f32.mxu0 0.0
      %3033 = vmatmul.mubr.f32.gmra.mrb[0].mxu0 %v2870
      %v3034 = vpop.f32.mrb[0].mxu0
      %v3035 = vadd.f32 0.0, %v3034
      %v3036 = vpop.f32.mrb[0].mxu0
      %3037 = vmatprep.mubr.f32.mxu0 0.0
      %3038 = vmatmul.mubr.f32.gmra.mrb[0].mxu0 %v2873
      %v3039 = vpop.f32.mrb[0].mxu0
      %v3040 = vadd.f32 0.0, %v3039
      %v3041 = vpop.f32.mrb[0].mxu0
      %3042 = vmatprep.mubr.f32.mxu0 0.0
      %3043 = vmatmul.mubr.f32.gmra.mrb[0].mxu0 %v2876
      %v3044 = vpop.f32.mrb[0].mxu0
      %v3045 = vadd.f32 0.0, %v3044
      %v3046 = vpop.f32.mrb[0].mxu0
      %3047 = vmatprep.mubr.f32.mxu0 0.0
      %3048 = vmatmul.mubr.f32.gmra.mrb[0].mxu0 %v2879
      %v3049 = vpop.f32.mrb[0].mxu0
      %v3050 = vadd.f32 0.0, %v3049
      %v3051 = vpop.f32.mrb[0].mxu0
      %3052 = vmatprep.mubr.f32.mxu0 0.0
      %3053 = vmatmul.mubr.f32.gmra.mrb[0].mxu0 %v2882
      %v3054 = vpop.f32.mrb[0].mxu0
      %v3055 = vadd.f32 0.0, %v3054
      %v3056 = vpop.f32.mrb[0].mxu0
      %3057 = vmatprep.mubr.f32.mxu0 0.0
      %3058 = vmatmul.mubr.f32.gmra.mrb[0].mxu0 %v2885
      %v3059 = vpop.f32.mrb[0].mxu0
      %v3060 = vadd.f32 0.0, %v3059
      %v3061 = vpop.f32.mrb[0].mxu0
      %3062 = vmatprep.mubr.f32.mxu0 0.0
      %3063 = vmatmul.mubr.f32.gmra.mrb[0].mxu0 %v2888
      %v3064 = vpop.f32.mrb[0].mxu0
      %v3065 = vadd.f32 0.0, %v3064
      %v3066 = vpop.f32.mrb[0].mxu0
      %3067 = vmatprep.mubr.f32.mxu0 0.0
      %3068 = vmatmul.mubr.f32.gmra.mrb[0].mxu0 %v2891
      %v3069 = vpop.f32.mrb[0].mxu0
      %v3070 = vadd.f32 0.0, %v3069
      %v3071 = vpop.f32.mrb[0].mxu0
      %3072 = vmatprep.mubr.f32.mxu0 0.0
      %3073 = vmatmul.mubr.f32.gmra.mrb[0].mxu0 %v2894
      %v3074 = vpop.f32.mrb[0].mxu0
      %v3075 = vadd.f32 0.0, %v3074
      %v3076 = vpop.f32.mrb[0].mxu0
      %3077 = vmatprep.mubr.f32.mxu0 0.0
      %3078 = vmatmul.mubr.f32.gmra.mrb[0].mxu0 %v2897
      %v3079 = vpop.f32.mrb[0].mxu0
      %v3080 = vadd.f32 0.0, %v3079
      %v3081 = vpop.f32.mrb[0].mxu0
      %3082 = vmatprep.mubr.f32.mxu0 0.0
      %3083 = vmatmul.mubr.f32.gmra.mrb[0].mxu0 %v2900
      %v3084 = vpop.f32.mrb[0].mxu0
      %v3085 = vadd.f32 0.0, %v3084
      %v3086 = vpop.f32.mrb[0].mxu0
      %3087 = vmatprep.mubr.f32.mxu0 0.0
      %3088 = vmatmul.mubr.f32.gmra.mrb[0].mxu0 %v2903
      %v3089 = vpop.f32.mrb[0].mxu0
      %v3090 = vadd.f32 0.0, %v3089
      %v3091 = vpop.f32.mrb[0].mxu0
      %3092 = vmatprep.mubr.f32.mxu0 0.0
      %3093 = vmatmul.mubr.f32.gmra.mrb[0].mxu0 %v2906
      %v3094 = vpop.f32.mrb[0].mxu0
      %v3095 = vadd.f32 0.0, %v3094
      %v3096 = vpop.f32.mrb[0].mxu0
      %3097 = vmatprep.mubr.f32.mxu0 0.0
      %3098 = vmatmul.mubr.f32.gmra.mrb[0].mxu0 %v2909
      %v3099 = vpop.f32.mrb[0].mxu0
      %v3100 = vadd.f32 0.0, %v3099
      %v3101 = vpop.f32.mrb[0].mxu0
      %3102 = vmatprep.mubr.f32.mxu0 0.0
      %3103 = vmatmul.mubr.f32.gmra.mrb[0].mxu0 %v2912
      %v3104 = vpop.f32.mrb[0].mxu0
      %v3105 = vadd.f32 0.0, %v3104
      %v3106 = vpop.f32.mrb[0].mxu0
      %3107 = vmatprep.mubr.f32.mxu0 0.0
      %3108 = vmatmul.mubr.f32.gmra.mrb[0].mxu0 %v2915
      %v3109 = vpop.f32.mrb[0].mxu0
      %v3110 = vadd.f32 0.0, %v3109
      %v3111 = vpop.f32.mrb[0].mxu0
      %3112 = vmatprep.mubr.f32.mxu0 0.0
      %3113 = vmatmul.mubr.f32.gmra.mrb[0].mxu0 %v2918
      %v3114 = vpop.f32.mrb[0].mxu0
      %v3115 = vadd.f32 0.0, %v3114
      %v3116 = vpop.f32.mrb[0].mxu0
      %3117 = vmatprep.mubr.f32.mxu0 0.0
      %3118 = vmatmul.mubr.f32.gmra.mrb[0].mxu0 %v2921
      %v3119 = vpop.f32.mrb[0].mxu0
      %v3120 = vadd.f32 0.0, %v3119
      %v3121 = vpop.f32.mrb[0].mxu0
      %3122 = vmatprep.mubr.f32.mxu0 0.0
      %3123 = vmatmul.mubr.f32.gmra.mrb[0].mxu0 %v2924
      %v3124 = vpop.f32.mrb[0].mxu0
      %v3125 = vadd.f32 0.0, %v3124
      %v3126 = vpop.f32.mrb[0].mxu0
      %3127 = vmatprep.mubr.f32.mxu0 0.0
      %3128 = vmatmul.mubr.f32.gmra.mrb[0].mxu0 %v2927
      %v3129 = vpop.f32.mrb[0].mxu0
      %v3130 = vadd.f32 0.0, %v3129
      %v3131 = vpop.f32.mrb[0].mxu0
      %3132 = vmatprep.mubr.f32.mxu0 0.0
      %3133 = vmatmul.mubr.f32.gmra.mrb[0].mxu0 %v2930
      %v3134 = vpop.f32.mrb[0].mxu0
      %v3135 = vadd.f32 0.0, %v3134
      %v3136 = vpop.f32.mrb[0].mxu0
      %3137 = vmatprep.mubr.f32.mxu0 0.0
      %3138 = vmatmul.mubr.f32.gmra.mrb[0].mxu0 %v2933
      %v3139 = vpop.f32.mrb[0].mxu0
      %v3140 = vadd.f32 0.0, %v3139
      %v3141 = vpop.f32.mrb[0].mxu0
      %3142 = vmatprep.mubr.f32.mxu0 0.0
      %3143 = vmatmul.mubr.f32.gmra.mrb[0].mxu0 %v2936
      %v3144 = vpop.f32.mrb[0].mxu0
      %v3145 = vadd.f32 0.0, %v3144
      %v3146 = vpop.f32.mrb[0].mxu0
      %3147 = vmatprep.mubr.f32.mxu0 0.0
      %3148 = vmatmul.mubr.f32.gmra.mrb[0].mxu0 %v2939
      %v3149 = vpop.f32.mrb[0].mxu0
      %v3150 = vadd.f32 0.0, %v3149
      %v3151 = vpop.f32.mrb[0].mxu0
      %3152 = vmatprep.mubr.f32.mxu0 0.0
      %3153 = vmatmul.mubr.f32.gmra.mrb[0].mxu0 %v2942
      %v3154 = vpop.f32.mrb[0].mxu0
      %v3155 = vadd.f32 0.0, %v3154
      %v3156 = vpop.f32.mrb[0].mxu0
      %3157 = vmatprep.mubr.f32.mxu0 0.0
      %3158 = vmatmul.mubr.f32.gmra.mrb[0].mxu0 %v2945
      %v3159 = vpop.f32.mrb[0].mxu0
      %v3160 = vadd.f32 0.0, %v3159
      %v3161 = vpop.f32.mrb[0].mxu0
      %3162 = vmatprep.mubr.f32.mxu0 0.0
      %3163 = vmatmul.mubr.f32.gmra.mrb[0].mxu0 %v2948
      %v3164 = vpop.f32.mrb[0].mxu0
      %v3165 = vadd.f32 0.0, %v3164
      %v3166 = vpop.f32.mrb[0].mxu0
      %3167 = vmatprep.mubr.f32.mxu0 0.0
      %3168 = vmatmul.mubr.f32.gmra.mrb[0].mxu0 %v2951
      %v3169 = vpop.f32.mrb[0].mxu0
      %v3170 = vadd.f32 0.0, %v3169
      %v3171 = vpop.f32.mrb[0].mxu0
      %3172 = vmatprep.mubr.f32.mxu0 0.0
      %3173 = vmatmul.mubr.f32.gmra.mrb[0].mxu0 %v2954
      %v3174 = vpop.f32.mrb[0].mxu0
      %v3175 = vadd.f32 0.0, %v3174
      %v3176 = vpop.f32.mrb[0].mxu0
      %3177 = vmatprep.mubr.f32.mxu0 0.0
      %3178 = vmatmul.mubr.f32.gmra.mrb[0].mxu0 %v2957
      %v3179 = vpop.f32.mrb[0].mxu0
      %v3180 = vadd.f32 0.0, %v3179
      %v3181 = vpop.f32.mrb[0].mxu0
      %3182 = vmatprep.mubr.f32.mxu0 0.0
      %3183 = vmatmul.mubr.f32.gmra.mrb[0].mxu0 %v2960
      %v3184 = vpop.f32.mrb[0].mxu0
      %v3185 = vadd.f32 0.0, %v3184
      %v3186 = vpop.f32.mrb[0].mxu0
      %3187 = vmatprep.mubr.f32.mxu0 0.0
      %3188 = vmatmul.mubr.f32.gmra.mrb[0].mxu0 %v2963
      %v3189 = vpop.f32.mrb[0].mxu0
      %v3190 = vadd.f32 0.0, %v3189
      %v3191 = vpop.f32.mrb[0].mxu0
      %3192 = vdwg.mxu0
      %v3193 = vadd.f32 %v2801, %v3035
      %v3194 = vadd.f32 %v2802, %v3040
      %v3195 = vadd.f32 %v2803, %v3045
      %v3196 = vadd.f32 %v2804, %v3050
      %v3197 = vadd.f32 %v2805, %v3055
      %v3198 = vadd.f32 %v2806, %v3060
      %v3199 = vadd.f32 %v2807, %v3065
      %v3200 = vadd.f32 %v2808, %v3070
      %v3201 = vadd.f32 %v2809, %v3075
      %v3202 = vadd.f32 %v2810, %v3080
      %v3203 = vadd.f32 %v2811, %v3085
      %v3204 = vadd.f32 %v2812, %v3090
      %v3205 = vadd.f32 %v2813, %v3095
      %v3206 = vadd.f32 %v2814, %v3100
      %v3207 = vadd.f32 %v2815, %v3105
      %v3208 = vadd.f32 %v2816, %v3110
      %v3209 = vadd.f32 %v2817, %v3115
      %v3210 = vadd.f32 %v2818, %v3120
      %v3211 = vadd.f32 %v2819, %v3125
      %v3212 = vadd.f32 %v2820, %v3130
      %v3213 = vadd.f32 %v2821, %v3135
      %v3214 = vadd.f32 %v2822, %v3140
      %v3215 = vadd.f32 %v2823, %v3145
      %v3216 = vadd.f32 %v2824, %v3150
      %v3217 = vadd.f32 %v2825, %v3155
      %v3218 = vadd.f32 %v2826, %v3160
      %v3219 = vadd.f32 %v2827, %v3165
      %v3220 = vadd.f32 %v2828, %v3170
      %v3221 = vadd.f32 %v2829, %v3175
      %v3222 = vadd.f32 %v2830, %v3180
      %v3223 = vadd.f32 %v2831, %v3185
      %v3224 = vadd.f32 %v2832, %v3190
      %s3225 = sadd.s32 %s152, 38
      %s3226 = scalar_lea.vmem %s0, %s3225
      %v3227 = vld [vmem:[%s3226] sm:$0xff]
      %v3228 = vld [vmem:[%s3226 + $0x8] sm:$0xff]
      %v3229 = vld [vmem:[%s3226 + $0x10] sm:$0xff]
      %v3230 = vld [vmem:[%s3226 + $0x18] sm:$0xff]
      %v3231 = vld [vmem:[%s3226 + $0x20] sm:$0xff]
      %v3232 = vld [vmem:[%s3226 + $0x28] sm:$0xff]
      %v3233 = vld [vmem:[%s3226 + $0x30] sm:$0xff]
      %v3234 = vld [vmem:[%s3226 + $0x38] sm:$0xff]
      %v3235 = vld [vmem:[%s3226 + $0x40] sm:$0xff]
      %v3236 = vld [vmem:[%s3226 + $0x48] sm:$0xff]
      %v3237 = vld [vmem:[%s3226 + $0x50] sm:$0xff]
      %v3238 = vld [vmem:[%s3226 + $0x58] sm:$0xff]
      %v3239 = vld [vmem:[%s3226 + $0x60] sm:$0xff]
      %v3240 = vld [vmem:[%s3226 + $0x68] sm:$0xff]
      %v3241 = vld [vmem:[%s3226 + $0x70] sm:$0xff]
      %v3242 = vld [vmem:[%s3226 + $0x78] sm:$0xff]
      %v3243 = vld [vmem:[%s3226 + $0x80] sm:$0xff]
      %v3244 = vld [vmem:[%s3226 + $0x88] sm:$0xff]
      %v3245 = vld [vmem:[%s3226 + $0x90] sm:$0xff]
      %v3246 = vld [vmem:[%s3226 + $0x98] sm:$0xff]
      %v3247 = vld [vmem:[%s3226 + $0xa0] sm:$0xff]
      %v3248 = vld [vmem:[%s3226 + $0xa8] sm:$0xff]
      %v3249 = vld [vmem:[%s3226 + $0xb0] sm:$0xff]
      %v3250 = vld [vmem:[%s3226 + $0xb8] sm:$0xff]
      %v3251 = vld [vmem:[%s3226 + $0xc0] sm:$0xff]
      %v3252 = vld [vmem:[%s3226 + $0xc8] sm:$0xff]
      %v3253 = vld [vmem:[%s3226 + $0xd0] sm:$0xff]
      %v3254 = vld [vmem:[%s3226 + $0xd8] sm:$0xff]
      %v3255 = vld [vmem:[%s3226 + $0xe0] sm:$0xff]
      %v3256 = vld [vmem:[%s3226 + $0xe8] sm:$0xff]
      %v3257 = vld [vmem:[%s3226 + $0xf0] sm:$0xff]
      %v3258 = vld [vmem:[%s3226 + $0xf8] sm:$0xff]
      %s3259 = scalar_lea.vmem %s1, 32
      %v3260 = vld [vmem:[%s3259] sm:$0x7]
      %v3262 = vsel %vm223, %v3227, 0
      %v3265 = vsel %vm223, %v3228, 0
      %v3268 = vsel %vm223, %v3229, 0
      %v3271 = vsel %vm223, %v3230, 0
      %v3274 = vsel %vm223, %v3231, 0
      %v3277 = vsel %vm223, %v3232, 0
      %v3280 = vsel %vm223, %v3233, 0
      %v3283 = vsel %vm223, %v3234, 0
      %v3286 = vsel %vm223, %v3235, 0
      %v3289 = vsel %vm223, %v3236, 0
      %v3292 = vsel %vm223, %v3237, 0
      %v3295 = vsel %vm223, %v3238, 0
      %v3298 = vsel %vm223, %v3239, 0
      %v3301 = vsel %vm223, %v3240, 0
      %v3304 = vsel %vm223, %v3241, 0
      %v3307 = vsel %vm223, %v3242, 0
      %v3310 = vsel %vm223, %v3243, 0
      %v3313 = vsel %vm223, %v3244, 0
      %v3316 = vsel %vm223, %v3245, 0
      %v3319 = vsel %vm223, %v3246, 0
      %v3322 = vsel %vm223, %v3247, 0
      %v3325 = vsel %vm223, %v3248, 0
      %v3328 = vsel %vm223, %v3249, 0
      %v3331 = vsel %vm223, %v3250, 0
      %v3334 = vsel %vm223, %v3251, 0
      %v3337 = vsel %vm223, %v3252, 0
      %v3340 = vsel %vm223, %v3253, 0
      %v3343 = vsel %vm223, %v3254, 0
      %v3346 = vsel %vm223, %v3255, 0
      %v3349 = vsel %vm223, %v3256, 0
      %v3352 = vsel %vm223, %v3257, 0
      %v3355 = vsel %vm223, %v3258, 0
      %v3358 = vsel %vm320, %v3260, 0
      %3360 = vmatprep.subr.mxu0 0.0
      %3361 = vmatpush1.msra.mxu0 %v3358
      %3362 = vmatprep.subr.mxu0 0.0
      %3363 = vmatpush1.msra.mxu0 0.0
      %3364 = vmatprep.subr.mxu0 0.0
      %3365 = vmatpush1.msra.mxu0 0.0
      %3366 = vmatprep.subr.mxu0 0.0
      %3367 = vmatpush1.msra.mxu0 0.0
      %3368 = vmatprep.subr.mxu0 0.0
      %3369 = vmatpush1.msra.mxu0 0.0
      %3370 = vmatprep.subr.mxu0 0.0
      %3371 = vmatpush1.msra.mxu0 0.0
      %3372 = vmatprep.subr.mxu0 0.0
      %3373 = vmatpush1.msra.mxu0 0.0
      %3374 = vmatprep.subr.mxu0 0.0
      %3375 = vmatpush1.msra.mxu0 0.0
      %3376 = vmatprep.subr.mxu0 0.0
      %3377 = vmatpush1.msra.mxu0 0.0
      %3378 = vmatprep.subr.mxu0 0.0
      %3379 = vmatpush1.msra.mxu0 0.0
      %3380 = vmatprep.subr.mxu0 0.0
      %3381 = vmatpush1.msra.mxu0 0.0
      %3382 = vmatprep.subr.mxu0 0.0
      %3383 = vmatpush1.msra.mxu0 0.0
      %3384 = vmatprep.subr.mxu0 0.0
      %3385 = vmatpush1.msra.mxu0 0.0
      %3386 = vmatprep.subr.mxu0 0.0
      %3387 = vmatpush1.msra.mxu0 0.0
      %3388 = vmatprep.subr.mxu0 0.0
      %3389 = vmatpush1.msra.mxu0 0.0
      %3390 = vmatprep.subr.mxu0 0.0
      %3391 = vmatpush1.msra.mxu0 0.0
      %3392 = vmatprep.subr.mxu0 0.0
      %3393 = vmatpush1.msra.mxu0 0.0
      %3394 = vmatprep.subr.mxu0 0.0
      %3395 = vmatpush1.msra.mxu0 0.0
      %3396 = vmatprep.subr.mxu0 0.0
      %3397 = vmatpush1.msra.mxu0 0.0
      %3398 = vmatprep.subr.mxu0 0.0
      %3399 = vmatpush1.msra.mxu0 0.0
      %3400 = vmatprep.subr.mxu0 0.0
      %3401 = vmatpush1.msra.mxu0 0.0
      %3402 = vmatprep.subr.mxu0 0.0
      %3403 = vmatpush1.msra.mxu0 0.0
      %3404 = vmatprep.subr.mxu0 0.0
      %3405 = vmatpush1.msra.mxu0 0.0
      %3406 = vmatprep.subr.mxu0 0.0
      %3407 = vmatpush1.msra.mxu0 0.0
      %3408 = vmatprep.subr.mxu0 0.0
      %3409 = vmatpush1.msra.mxu0 0.0
      %3410 = vmatprep.subr.mxu0 0.0
      %3411 = vmatpush1.msra.mxu0 0.0
      %3412 = vmatprep.subr.mxu0 0.0
      %3413 = vmatpush1.msra.mxu0 0.0
      %3414 = vmatprep.subr.mxu0 0.0
      %3415 = vmatpush1.msra.mxu0 0.0
      %3416 = vmatprep.subr.mxu0 0.0
      %3417 = vmatpush1.msra.mxu0 0.0
      %3418 = vmatprep.subr.mxu0 0.0
      %3419 = vmatpush1.msra.mxu0 0.0
      %3420 = vmatprep.subr.mxu0 0.0
      %3421 = vmatpush1.msra.mxu0 0.0
      %3422 = vmatprep.subr.mxu0 0.0
      %3423 = vmatpush1.msra.mxu0 0.0
      %3424 = vmatprep.mubr.f32.mxu0 0.0
      %3425 = vmatmul.mubr.f32.gmra.mrb[0].mxu0 %v3262
      %v3426 = vpop.f32.mrb[0].mxu0
      %v3427 = vadd.f32 0.0, %v3426
      %v3428 = vpop.f32.mrb[0].mxu0
      %3429 = vmatprep.mubr.f32.mxu0 0.0
      %3430 = vmatmul.mubr.f32.gmra.mrb[0].mxu0 %v3265
      %v3431 = vpop.f32.mrb[0].mxu0
      %v3432 = vadd.f32 0.0, %v3431
      %v3433 = vpop.f32.mrb[0].mxu0
      %3434 = vmatprep.mubr.f32.mxu0 0.0
      %3435 = vmatmul.mubr.f32.gmra.mrb[0].mxu0 %v3268
      %v3436 = vpop.f32.mrb[0].mxu0
      %v3437 = vadd.f32 0.0, %v3436
      %v3438 = vpop.f32.mrb[0].mxu0
      %3439 = vmatprep.mubr.f32.mxu0 0.0
      %3440 = vmatmul.mubr.f32.gmra.mrb[0].mxu0 %v3271
      %v3441 = vpop.f32.mrb[0].mxu0
      %v3442 = vadd.f32 0.0, %v3441
      %v3443 = vpop.f32.mrb[0].mxu0
      %3444 = vmatprep.mubr.f32.mxu0 0.0
      %3445 = vmatmul.mubr.f32.gmra.mrb[0].mxu0 %v3274
      %v3446 = vpop.f32.mrb[0].mxu0
      %v3447 = vadd.f32 0.0, %v3446
      %v3448 = vpop.f32.mrb[0].mxu0
      %3449 = vmatprep.mubr.f32.mxu0 0.0
      %3450 = vmatmul.mubr.f32.gmra.mrb[0].mxu0 %v3277
      %v3451 = vpop.f32.mrb[0].mxu0
      %v3452 = vadd.f32 0.0, %v3451
      %v3453 = vpop.f32.mrb[0].mxu0
      %3454 = vmatprep.mubr.f32.mxu0 0.0
      %3455 = vmatmul.mubr.f32.gmra.mrb[0].mxu0 %v3280
      %v3456 = vpop.f32.mrb[0].mxu0
      %v3457 = vadd.f32 0.0, %v3456
      %v3458 = vpop.f32.mrb[0].mxu0
      %3459 = vmatprep.mubr.f32.mxu0 0.0
      %3460 = vmatmul.mubr.f32.gmra.mrb[0].mxu0 %v3283
      %v3461 = vpop.f32.mrb[0].mxu0
      %v3462 = vadd.f32 0.0, %v3461
      %v3463 = vpop.f32.mrb[0].mxu0
      %3464 = vmatprep.mubr.f32.mxu0 0.0
      %3465 = vmatmul.mubr.f32.gmra.mrb[0].mxu0 %v3286
      %v3466 = vpop.f32.mrb[0].mxu0
      %v3467 = vadd.f32 0.0, %v3466
      %v3468 = vpop.f32.mrb[0].mxu0
      %3469 = vmatprep.mubr.f32.mxu0 0.0
      %3470 = vmatmul.mubr.f32.gmra.mrb[0].mxu0 %v3289
      %v3471 = vpop.f32.mrb[0].mxu0
      %v3472 = vadd.f32 0.0, %v3471
      %v3473 = vpop.f32.mrb[0].mxu0
      %3474 = vmatprep.mubr.f32.mxu0 0.0
      %3475 = vmatmul.mubr.f32.gmra.mrb[0].mxu0 %v3292
      %v3476 = vpop.f32.mrb[0].mxu0
      %v3477 = vadd.f32 0.0, %v3476
      %v3478 = vpop.f32.mrb[0].mxu0
      %3479 = vmatprep.mubr.f32.mxu0 0.0
      %3480 = vmatmul.mubr.f32.gmra.mrb[0].mxu0 %v3295
      %v3481 = vpop.f32.mrb[0].mxu0
      %v3482 = vadd.f32 0.0, %v3481
      %v3483 = vpop.f32.mrb[0].mxu0
      %3484 = vmatprep.mubr.f32.mxu0 0.0
      %3485 = vmatmul.mubr.f32.gmra.mrb[0].mxu0 %v3298
      %v3486 = vpop.f32.mrb[0].mxu0
      %v3487 = vadd.f32 0.0, %v3486
      %v3488 = vpop.f32.mrb[0].mxu0
      %3489 = vmatprep.mubr.f32.mxu0 0.0
      %3490 = vmatmul.mubr.f32.gmra.mrb[0].mxu0 %v3301
      %v3491 = vpop.f32.mrb[0].mxu0
      %v3492 = vadd.f32 0.0, %v3491
      %v3493 = vpop.f32.mrb[0].mxu0
      %3494 = vmatprep.mubr.f32.mxu0 0.0
      %3495 = vmatmul.mubr.f32.gmra.mrb[0].mxu0 %v3304
      %v3496 = vpop.f32.mrb[0].mxu0
      %v3497 = vadd.f32 0.0, %v3496
      %v3498 = vpop.f32.mrb[0].mxu0
      %3499 = vmatprep.mubr.f32.mxu0 0.0
      %3500 = vmatmul.mubr.f32.gmra.mrb[0].mxu0 %v3307
      %v3501 = vpop.f32.mrb[0].mxu0
      %v3502 = vadd.f32 0.0, %v3501
      %v3503 = vpop.f32.mrb[0].mxu0
      %3504 = vmatprep.mubr.f32.mxu0 0.0
      %3505 = vmatmul.mubr.f32.gmra.mrb[0].mxu0 %v3310
      %v3506 = vpop.f32.mrb[0].mxu0
      %v3507 = vadd.f32 0.0, %v3506
      %v3508 = vpop.f32.mrb[0].mxu0
      %3509 = vmatprep.mubr.f32.mxu0 0.0
      %3510 = vmatmul.mubr.f32.gmra.mrb[0].mxu0 %v3313
      %v3511 = vpop.f32.mrb[0].mxu0
      %v3512 = vadd.f32 0.0, %v3511
      %v3513 = vpop.f32.mrb[0].mxu0
      %3514 = vmatprep.mubr.f32.mxu0 0.0
      %3515 = vmatmul.mubr.f32.gmra.mrb[0].mxu0 %v3316
      %v3516 = vpop.f32.mrb[0].mxu0
      %v3517 = vadd.f32 0.0, %v3516
      %v3518 = vpop.f32.mrb[0].mxu0
      %3519 = vmatprep.mubr.f32.mxu0 0.0
      %3520 = vmatmul.mubr.f32.gmra.mrb[0].mxu0 %v3319
      %v3521 = vpop.f32.mrb[0].mxu0
      %v3522 = vadd.f32 0.0, %v3521
      %v3523 = vpop.f32.mrb[0].mxu0
      %3524 = vmatprep.mubr.f32.mxu0 0.0
      %3525 = vmatmul.mubr.f32.gmra.mrb[0].mxu0 %v3322
      %v3526 = vpop.f32.mrb[0].mxu0
      %v3527 = vadd.f32 0.0, %v3526
      %v3528 = vpop.f32.mrb[0].mxu0
      %3529 = vmatprep.mubr.f32.mxu0 0.0
      %3530 = vmatmul.mubr.f32.gmra.mrb[0].mxu0 %v3325
      %v3531 = vpop.f32.mrb[0].mxu0
      %v3532 = vadd.f32 0.0, %v3531
      %v3533 = vpop.f32.mrb[0].mxu0
      %3534 = vmatprep.mubr.f32.mxu0 0.0
      %3535 = vmatmul.mubr.f32.gmra.mrb[0].mxu0 %v3328
      %v3536 = vpop.f32.mrb[0].mxu0
      %v3537 = vadd.f32 0.0, %v3536
      %v3538 = vpop.f32.mrb[0].mxu0
      %3539 = vmatprep.mubr.f32.mxu0 0.0
      %3540 = vmatmul.mubr.f32.gmra.mrb[0].mxu0 %v3331
      %v3541 = vpop.f32.mrb[0].mxu0
      %v3542 = vadd.f32 0.0, %v3541
      %v3543 = vpop.f32.mrb[0].mxu0
      %3544 = vmatprep.mubr.f32.mxu0 0.0
      %3545 = vmatmul.mubr.f32.gmra.mrb[0].mxu0 %v3334
      %v3546 = vpop.f32.mrb[0].mxu0
      %v3547 = vadd.f32 0.0, %v3546
      %v3548 = vpop.f32.mrb[0].mxu0
      %3549 = vmatprep.mubr.f32.mxu0 0.0
      %3550 = vmatmul.mubr.f32.gmra.mrb[0].mxu0 %v3337
      %v3551 = vpop.f32.mrb[0].mxu0
      %v3552 = vadd.f32 0.0, %v3551
      %v3553 = vpop.f32.mrb[0].mxu0
      %3554 = vmatprep.mubr.f32.mxu0 0.0
      %3555 = vmatmul.mubr.f32.gmra.mrb[0].mxu0 %v3340
      %v3556 = vpop.f32.mrb[0].mxu0
      %v3557 = vadd.f32 0.0, %v3556
      %v3558 = vpop.f32.mrb[0].mxu0
      %3559 = vmatprep.mubr.f32.mxu0 0.0
      %3560 = vmatmul.mubr.f32.gmra.mrb[0].mxu0 %v3343
      %v3561 = vpop.f32.mrb[0].mxu0
      %v3562 = vadd.f32 0.0, %v3561
      %v3563 = vpop.f32.mrb[0].mxu0
      %3564 = vmatprep.mubr.f32.mxu0 0.0
      %3565 = vmatmul.mubr.f32.gmra.mrb[0].mxu0 %v3346
      %v3566 = vpop.f32.mrb[0].mxu0
      %v3567 = vadd.f32 0.0, %v3566
      %v3568 = vpop.f32.mrb[0].mxu0
      %3569 = vmatprep.mubr.f32.mxu0 0.0
      %3570 = vmatmul.mubr.f32.gmra.mrb[0].mxu0 %v3349
      %v3571 = vpop.f32.mrb[0].mxu0
      %v3572 = vadd.f32 0.0, %v3571
      %v3573 = vpop.f32.mrb[0].mxu0
      %3574 = vmatprep.mubr.f32.mxu0 0.0
      %3575 = vmatmul.mubr.f32.gmra.mrb[0].mxu0 %v3352
      %v3576 = vpop.f32.mrb[0].mxu0
      %v3577 = vadd.f32 0.0, %v3576
      %v3578 = vpop.f32.mrb[0].mxu0
      %3579 = vmatprep.mubr.f32.mxu0 0.0
      %3580 = vmatmul.mubr.f32.gmra.mrb[0].mxu0 %v3355
      %v3581 = vpop.f32.mrb[0].mxu0
      %v3582 = vadd.f32 0.0, %v3581
      %v3583 = vpop.f32.mrb[0].mxu0
      %3584 = vdwg.mxu0
      %v3585 = vadd.f32 %v3193, %v3427
      %v3586 = vadd.f32 %v3194, %v3432
      %v3587 = vadd.f32 %v3195, %v3437
      %v3588 = vadd.f32 %v3196, %v3442
      %v3589 = vadd.f32 %v3197, %v3447
      %v3590 = vadd.f32 %v3198, %v3452
      %v3591 = vadd.f32 %v3199, %v3457
      %v3592 = vadd.f32 %v3200, %v3462
      %v3593 = vadd.f32 %v3201, %v3467
      %v3594 = vadd.f32 %v3202, %v3472
      %v3595 = vadd.f32 %v3203, %v3477
      %v3596 = vadd.f32 %v3204, %v3482
      %v3597 = vadd.f32 %v3205, %v3487
      %v3598 = vadd.f32 %v3206, %v3492
      %v3599 = vadd.f32 %v3207, %v3497
      %v3600 = vadd.f32 %v3208, %v3502
      %v3601 = vadd.f32 %v3209, %v3507
      %v3602 = vadd.f32 %v3210, %v3512
      %v3603 = vadd.f32 %v3211, %v3517
      %v3604 = vadd.f32 %v3212, %v3522
      %v3605 = vadd.f32 %v3213, %v3527
      %v3606 = vadd.f32 %v3214, %v3532
      %v3607 = vadd.f32 %v3215, %v3537
      %v3608 = vadd.f32 %v3216, %v3542
      %v3609 = vadd.f32 %v3217, %v3547
      %v3610 = vadd.f32 %v3218, %v3552
      %v3611 = vadd.f32 %v3219, %v3557
      %v3612 = vadd.f32 %v3220, %v3562
      %v3613 = vadd.f32 %v3221, %v3567
      %v3614 = vadd.f32 %v3222, %v3572
      %v3615 = vadd.f32 %v3223, %v3577
      %v3616 = vadd.f32 %v3224, %v3582
      %v3617 = vld [vmem:[%s2] sm:$0x1]
      %v3619 = vlaneseq
      %v3620 = vshrl.u32 %v3619, 7
      %v3621 = vsub.s32 0, %v3620
      %v3622 = vrot.slane %v3617, %v3621
      %v3624 = vadd.f32 %v3585, %v3622
      %v3625 = vadd.f32 %v3586, %v3622
      %v3626 = vadd.f32 %v3587, %v3622
      %v3627 = vadd.f32 %v3588, %v3622
      %v3628 = vadd.f32 %v3589, %v3622
      %v3629 = vadd.f32 %v3590, %v3622
      %v3630 = vadd.f32 %v3591, %v3622
      %v3631 = vadd.f32 %v3592, %v3622
      %v3632 = vadd.f32 %v3593, %v3622
      %v3633 = vadd.f32 %v3594, %v3622
      %v3634 = vadd.f32 %v3595, %v3622
      %v3635 = vadd.f32 %v3596, %v3622
      %v3636 = vadd.f32 %v3597, %v3622
      %v3637 = vadd.f32 %v3598, %v3622
      %v3638 = vadd.f32 %v3599, %v3622
      %v3639 = vadd.f32 %v3600, %v3622
      %v3640 = vadd.f32 %v3601, %v3622
      %v3641 = vadd.f32 %v3602, %v3622
      %v3642 = vadd.f32 %v3603, %v3622
      %v3643 = vadd.f32 %v3604, %v3622
      %v3644 = vadd.f32 %v3605, %v3622
      %v3645 = vadd.f32 %v3606, %v3622
      %v3646 = vadd.f32 %v3607, %v3622
      %v3647 = vadd.f32 %v3608, %v3622
      %v3648 = vadd.f32 %v3609, %v3622
      %v3649 = vadd.f32 %v3610, %v3622
      %v3650 = vadd.f32 %v3611, %v3622
      %v3651 = vadd.f32 %v3612, %v3622
      %v3652 = vadd.f32 %v3613, %v3622
      %v3653 = vadd.f32 %v3614, %v3622
      %v3654 = vadd.f32 %v3615, %v3622
      %v3655 = vadd.f32 %v3616, %v3622
      %v3656 = vpack.c.bf16 %v3625, %v3624
      %v3657 = vpack.c.bf16 %v3627, %v3626
      %v3658 = vpack.c.bf16 %v3629, %v3628
      %v3659 = vpack.c.bf16 %v3631, %v3630
      %v3660 = vpack.c.bf16 %v3633, %v3632
      %v3661 = vpack.c.bf16 %v3635, %v3634
      %v3662 = vpack.c.bf16 %v3637, %v3636
      %v3663 = vpack.c.bf16 %v3639, %v3638
      %v3664 = vpack.c.bf16 %v3641, %v3640
      %v3665 = vpack.c.bf16 %v3643, %v3642
      %v3666 = vpack.c.bf16 %v3645, %v3644
      %v3667 = vpack.c.bf16 %v3647, %v3646
      %v3668 = vpack.c.bf16 %v3649, %v3648
      %v3669 = vpack.c.bf16 %v3651, %v3650
      %v3670 = vpack.c.bf16 %v3653, %v3652
      %v3671 = vpack.c.bf16 %v3655, %v3654
      %v3688 = vunpack.c.l.b16 %v3656
      %v3689 = vunpack.c.h.b16 %v3656
      %v3690 = vunpack.c.l.b16 %v3657
      %v3691 = vunpack.c.h.b16 %v3657
      %v3692 = vunpack.c.l.b16 %v3658
      %v3693 = vunpack.c.h.b16 %v3658
      %v3694 = vunpack.c.l.b16 %v3659
      %v3695 = vunpack.c.h.b16 %v3659
      %v3696 = vunpack.c.l.b16 %v3660
      %v3697 = vunpack.c.h.b16 %v3660
      %v3698 = vunpack.c.l.b16 %v3661
      %v3699 = vunpack.c.h.b16 %v3661
      %v3700 = vunpack.c.l.b16 %v3662
      %v3701 = vunpack.c.h.b16 %v3662
      %v3702 = vunpack.c.l.b16 %v3663
      %v3703 = vunpack.c.h.b16 %v3663
      %v3704 = vunpack.c.l.b16 %v3664
      %v3705 = vunpack.c.h.b16 %v3664
      %v3706 = vunpack.c.l.b16 %v3665
      %v3707 = vunpack.c.h.b16 %v3665
      %v3708 = vunpack.c.l.b16 %v3666
      %v3709 = vunpack.c.h.b16 %v3666
      %v3710 = vunpack.c.l.b16 %v3667
      %v3711 = vunpack.c.h.b16 %v3667
      %v3712 = vunpack.c.l.b16 %v3668
      %v3713 = vunpack.c.h.b16 %v3668
      %v3714 = vunpack.c.l.b16 %v3669
      %v3715 = vunpack.c.h.b16 %v3669
      %v3716 = vunpack.c.l.b16 %v3670
      %v3717 = vunpack.c.h.b16 %v3670
      %v3718 = vunpack.c.l.b16 %v3671
      %v3719 = vunpack.c.h.b16 %v3671
      %v3720 = vpack.c.b16 %v3688, %v3688
      %v3721 = vpack.c.b16 %v3689, %v3689
      %v3722 = vpack.c.b16 %v3690, %v3690
      %v3723 = vpack.c.b16 %v3691, %v3691
      %v3724 = vpack.c.b16 %v3692, %v3692
      %v3725 = vpack.c.b16 %v3693, %v3693
      %v3726 = vpack.c.b16 %v3694, %v3694
      %v3727 = vpack.c.b16 %v3695, %v3695
      %v3728 = vpack.c.b16 %v3696, %v3696
      %v3729 = vpack.c.b16 %v3697, %v3697
      %v3730 = vpack.c.b16 %v3698, %v3698
      %v3731 = vpack.c.b16 %v3699, %v3699
      %v3732 = vpack.c.b16 %v3700, %v3700
      %v3733 = vpack.c.b16 %v3701, %v3701
      %v3734 = vpack.c.b16 %v3702, %v3702
      %v3735 = vpack.c.b16 %v3703, %v3703
      %v3736 = vpack.c.b16 %v3704, %v3704
      %v3737 = vpack.c.b16 %v3705, %v3705
      %v3738 = vpack.c.b16 %v3706, %v3706
      %v3739 = vpack.c.b16 %v3707, %v3707
      %v3740 = vpack.c.b16 %v3708, %v3708
      %v3741 = vpack.c.b16 %v3709, %v3709
      %v3742 = vpack.c.b16 %v3710, %v3710
      %v3743 = vpack.c.b16 %v3711, %v3711
      %v3744 = vpack.c.b16 %v3712, %v3712
      %v3745 = vpack.c.b16 %v3713, %v3713
      %v3746 = vpack.c.b16 %v3714, %v3714
      %v3747 = vpack.c.b16 %v3715, %v3715
      %v3748 = vpack.c.b16 %v3716, %v3716
      %v3749 = vpack.c.b16 %v3717, %v3717
      %v3750 = vpack.c.b16 %v3718, %v3718
      %v3751 = vpack.c.b16 %v3719, %v3719
      %vm3784 = vcmask 93184
      %3785 = vst.msk [vmem:[%s150] sm:$0xf] %vm3784, %v3720
      %3786 = vst.msk [vmem:[%s150 + $0x4] sm:$0xf] %vm3784, %v3721
      %3787 = vst.msk [vmem:[%s150 + $0x8] sm:$0xf] %vm3784, %v3722
      %3788 = vst.msk [vmem:[%s150 + $0xc] sm:$0xf] %vm3784, %v3723
      %3789 = vst.msk [vmem:[%s150 + $0x10] sm:$0xf] %vm3784, %v3724
      %3790 = vst.msk [vmem:[%s150 + $0x14] sm:$0xf] %vm3784, %v3725
      %3791 = vst.msk [vmem:[%s150 + $0x18] sm:$0xf] %vm3784, %v3726
      %3792 = vst.msk [vmem:[%s150 + $0x1c] sm:$0xf] %vm3784, %v3727
      %3793 = vst.msk [vmem:[%s150 + $0x20] sm:$0xf] %vm3784, %v3728
      %3794 = vst.msk [vmem:[%s150 + $0x24] sm:$0xf] %vm3784, %v3729
      %3795 = vst.msk [vmem:[%s150 + $0x28] sm:$0xf] %vm3784, %v3730
      %3796 = vst.msk [vmem:[%s150 + $0x2c] sm:$0xf] %vm3784, %v3731
      %3797 = vst.msk [vmem:[%s150 + $0x30] sm:$0xf] %vm3784, %v3732
      %3798 = vst.msk [vmem:[%s150 + $0x34] sm:$0xf] %vm3784, %v3733
      %3799 = vst.msk [vmem:[%s150 + $0x38] sm:$0xf] %vm3784, %v3734
      %3800 = vst.msk [vmem:[%s150 + $0x3c] sm:$0xf] %vm3784, %v3735
      %3801 = vst.msk [vmem:[%s150 + $0x40] sm:$0xf] %vm3784, %v3736
      %3802 = vst.msk [vmem:[%s150 + $0x44] sm:$0xf] %vm3784, %v3737
      %3803 = vst.msk [vmem:[%s150 + $0x48] sm:$0xf] %vm3784, %v3738
      %3804 = vst.msk [vmem:[%s150 + $0x4c] sm:$0xf] %vm3784, %v3739
      %3805 = vst.msk [vmem:[%s150 + $0x50] sm:$0xf] %vm3784, %v3740
      %3806 = vst.msk [vmem:[%s150 + $0x54] sm:$0xf] %vm3784, %v3741
      %3807 = vst.msk [vmem:[%s150 + $0x58] sm:$0xf] %vm3784, %v3742
      %3808 = vst.msk [vmem:[%s150 + $0x5c] sm:$0xf] %vm3784, %v3743
      %3809 = vst.msk [vmem:[%s150 + $0x60] sm:$0xf] %vm3784, %v3744
      %3810 = vst.msk [vmem:[%s150 + $0x64] sm:$0xf] %vm3784, %v3745
      %3811 = vst.msk [vmem:[%s150 + $0x68] sm:$0xf] %vm3784, %v3746
      %3812 = vst.msk [vmem:[%s150 + $0x6c] sm:$0xf] %vm3784, %v3747
      %3813 = vst.msk [vmem:[%s150 + $0x70] sm:$0xf] %vm3784, %v3748
      %3814 = vst.msk [vmem:[%s150 + $0x74] sm:$0xf] %vm3784, %v3749
      %3815 = vst.msk [vmem:[%s150 + $0x78] sm:$0xf] %vm3784, %v3750
      %3816 = vst.msk [vmem:[%s150 + $0x7c] sm:$0xf] %vm3784, %v3751
      %s3817 = smul.u32 32, %s14
      %p3818 = scmp.lt.s32.totalorder %s3817, 95
      %s3819 = scalar_select %p3818, %s3817, 95
      %s3820 = smul.addr %s3819, 4
      %s3821 = scalar_lea.vmem %s3, %s3820
      // Predicated region
      $region33: #{tpu_custom_call.1} parent=31 // pred_check
        %p3822 = pneg %p95
      $region34: #{tpu_custom_call.1} parent=31 // pred_check_branch
        %3824 = sbr.rel (%p3822) target = $region36
      $region35: #{tpu_custom_call.1} parent=31 // pred_region
        %s3825 = smul.u32 32, %s14
      $region36: #{tpu_custom_call.1} parent=31 // pred_fallthru
        _
    $region32: #{tpu_custom_call.1} parent=5 // pred_fallthru
      _
    %p3826 = scmp.le.s32.totalorder 2, %s9
    // Predicated region
    $region37: #{tpu_custom_call.1} parent=5 // pred_check
      %p3827 = pneg %p3826
    $region38: #{tpu_custom_call.1} parent=5 // pred_check_branch
      %3829 = sbr.rel (%p3827) target = $region40
    $region39: #{tpu_custom_call.1} parent=5 // pred_region
      %s3830 = ssub.s32 %s9, 2
      // Predicated region
      $region41: #{tpu_custom_call.1} parent=39 // pred_check
        %p3831 = pneg %p101
      $region42: #{tpu_custom_call.1} parent=39 // pred_check_branch
        %3833 = sbr.rel (%p3831) target = $region44
      $region43: #{tpu_custom_call.1} parent=39 // pred_region
        %s3834 = smul.u32 32, %s15
        %p3835 = scmp.lt.s32.totalorder %s3834, 95
        %s3836 = scalar_select %p3835, %s3834, 95
        %s3837 = smul.addr %s3836, 4
        %s3838 = scalar_lea.vmem %s3, %s3837
      $region44: #{tpu_custom_call.1} parent=39 // pred_fallthru
        _
    $region40: #{tpu_custom_call.1} parent=5 // pred_fallthru
      _
  $region6: #{tpu_custom_call.1} parent=0 // loop_footer
    %s13 = sadd.s32 1, %s9
  $region7: #{tpu_custom_call.1} parent=0 // loop_footer_branch
    %8 = sbr.rel target = $region3
  $region8: #{tpu_custom_call.1} parent=0 // loop_exit
    _

</llo_original>
